<compile_context>
chip_gen: v5e
topology: v5e:2x2
jax: 0.10.0
libtpu: 0.0.40
codegen_flags: <defaults>
</compile_context>

<pallas_src>
import functools
import math

import jax
import jax.numpy as jnp
from jax.experimental import pallas as pl
from jax.experimental.pallas import tpu as pltpu

_HALF_LOG_2PI = 0.5 * math.log(2.0 * math.pi)


# ---------------- tap-packed same-padding 3x3 conv patch (in VMEM) ----------------

def _build_patches(x_flat, pad_value, bt, hs, ws, mxu_dtype):
    """im2col for a 3x3 same-padded conv, packed into the contraction axis.

    x_flat: (bt*hs*ws, cin) f32.  Returns (bt*hs*ws, 9*cin) in `mxu_dtype` with
    tap-major / cin-minor layout (matches w.reshape(9*cin, cout)).  Rows are
    padded per-image via a leading-axis concat; column shifts use a sublane roll
    plus two boundary masks hoisted out of the tap loop.  Nothing touches HBM,
    and the single matmul replaces 9 tiny MXU pushes.
    """
    cin = x_flat.shape[-1]
    x4 = x_flat.reshape(bt, hs, ws, cin)
    prow = jnp.full((bt, 1, ws, cin), pad_value, x_flat.dtype)
    xp = jnp.concatenate([prow, x4, prow], axis=1)             # (bt, hs+2, ws, cin)

    col = jax.lax.broadcasted_iota(jnp.int32, (bt * hs, ws, cin), 1)
    left_ok = col >= 1                                         # tap column offset -1
    right_ok = col <= ws - 2                                   # tap column offset +1
    pad = jnp.asarray(pad_value, x_flat.dtype)

    taps = []
    for dy in range(3):
        rows = xp[:, dy:dy + hs].reshape(bt * hs, ws, cin)
        for dx in range(3):
            sx = dx - 1
            if sx == 0:
                patch = rows
            else:
                rolled = pltpu.roll(rows, shift=(-sx) % ws, axis=1)
                patch = jnp.where(left_ok if sx < 0 else right_ok, rolled, pad)
            taps.append(patch.astype(mxu_dtype))
    patch9 = jnp.concatenate(taps, axis=-1)                    # (bt*hs, ws, 9*cin)
    return patch9.reshape(bt * hs * ws, 9 * cin)


# ----------------------------- fused Glow block kernel ----------------------------

def _glow_block_kernel(*refs, hs, ws, final):
    if final:
        (x_ref, wp_ref, bp_ref, w1_ref, b1_ref, w2_ref, b2_ref, w3_ref, b3_ref,
         xo_ref, ld_ref, lp_ref, ld_acc) = refs
        wpr_ref = bpr_ref = None
    else:
        (x_ref, wp_ref, bp_ref, w1_ref, b1_ref, w2_ref, b2_ref, w3_ref, b3_ref,
         wpr_ref, bpr_ref, xo_ref, ld_ref, lp_ref, ld_acc) = refs

    k = pl.program_id(1)
    bt, hw, c4 = xo_ref.shape
    half = c4 // 2
    bhw = bt * hw

    @pl.when(k == 0)
    def _():
        xo_ref[...] = x_ref[...]
        ld_acc[...] = jnp.zeros_like(ld_acc)

    x2 = xo_ref[...].reshape(bhw, c4)

    # ActNorm folded into the invertible 1x1 conv: one bf16 MXU matmul.
    y2 = jnp.dot(x2.astype(wp_ref.dtype), wp_ref[0],
                 preferred_element_type=jnp.float32) + bp_ref[0]
    xa = y2[:, :half]
    xb = y2[:, half:]

    # Affine-coupling net: conv3x3 -> ReLU -> 1x1 -> ReLU -> zero-conv3x3;
    # each 3x3 conv is ONE matmul over a tap-packed (bhw, 9*cin) patch.
    pa = _build_patches(xa, 0.0, bt, hs, ws, w1_ref.dtype)
    h = jnp.dot(pa, w1_ref[0], preferred_element_type=jnp.float32) + b1_ref[0]
    h = jnp.maximum(h, 0.0)
    g = jnp.dot(h.astype(w2_ref.dtype), w2_ref[0],
                preferred_element_type=jnp.float32) + b2_ref[0]
    g = jnp.maximum(g, 0.0)
    pg = _build_patches(g, 1.0, bt, hs, ws, w3_ref.dtype)      # zero-conv, pad=1
    net = jnp.dot(pg, w3_ref[0], preferred_element_type=jnp.float32) + b3_ref[0]

    log_s = net[:, :half]
    t = net[:, half:]
    s = jax.nn.sigmoid(log_s + 2.0)
    yb = (xb + t) * s

    xo_ref[...] = jnp.concatenate([xa, yb], axis=-1).reshape(bt, hw, c4)

    ld3 = jnp.log(s).reshape(bt, hw, half)
    ld_acc[...] += jnp.sum(jnp.sum(ld3, axis=2, keepdims=True),
                           axis=1, keepdims=True)

    # Last step: emit logdet and fuse the split-prior / std-normal log-prob.
    @pl.when(k == pl.num_programs(1) - 1)
    def _():
        ld_ref[...] = ld_acc[...]
        if final:
            lp = (-0.5 * xa * xa - _HALF_LOG_2PI) + (-0.5 * yb * yb - _HALF_LOG_2PI)
        else:
            pr = _build_patches(xa, 1.0, bt, hs, ws, wpr_ref.dtype)
            pp = jnp.dot(pr, wpr_ref[...],
                         preferred_element_type=jnp.float32) + bpr_ref[...]
            mu = pp[:, :half]
            ls = pp[:, half:]
            d = (yb - mu) * jnp.exp(-ls)
            lp = -0.5 * d * d - ls - _HALF_LOG_2PI
        lp3 = lp.reshape(bt, hw, half)
        lp_ref[...] = jnp.sum(jnp.sum(lp3, axis=2, keepdims=True),
                              axis=1, keepdims=True)


# --------------------------------- pallas wrapper ----------------------------------

def _step_weight_spec(arr):
    nd = arr.ndim
    return pl.BlockSpec((1,) + tuple(arr.shape[1:]),
                        lambda b, k, _nd=nd: (k,) + (0,) * (_nd - 1))


def _run_glow_block(x2, prep, hs, ws, *, final, num_batch_tiles=1):
    B, HW, C4 = x2.shape
    assert B % num_batch_tiles == 0
    bt = B // num_batch_tiles
    K = prep["wp_all"].shape[0]

    weights = [prep["wp_all"], prep["bp_all"], prep["w1_all"], prep["b1_all"],
               prep["w2_all"], prep["b2_all"], prep["w3_all"], prep["b3_all"]]
    in_specs = ([pl.BlockSpec((bt, HW, C4), lambda b, k: (b, 0, 0))]
                + [_step_weight_spec(w) for w in weights])
    args = [x2] + weights
    if not final:
        wpr, bpr = prep["wprior"], prep["bprior"]
        in_specs += [pl.BlockSpec(tuple(wpr.shape), lambda b, k: (0, 0)),
                     pl.BlockSpec(tuple(bpr.shape), lambda b, k: (0, 0))]
        args += [wpr, bpr]

    kernel = functools.partial(_glow_block_kernel, hs=hs, ws=ws, final=final)
    return pl.pallas_call(
        kernel,
        grid_spec=pltpu.PrefetchScalarGridSpec(
            num_scalar_prefetch=0,
            grid=(num_batch_tiles, K),             # k innermost: carry invariant
            in_specs=in_specs,
            out_specs=(pl.BlockSpec((bt, HW, C4), lambda b, k: (b, 0, 0)),
                       pl.BlockSpec((bt, 1, 1), lambda b, k: (b, 0, 0)),
                       pl.BlockSpec((bt, 1, 1), lambda b, k: (b, 0, 0))),
            scratch_shapes=[pltpu.VMEM((bt, 1, 1), jnp.float32)],
        ),
        out_shape=(jax.ShapeDtypeStruct((B, HW, C4), jnp.float32),
                   jax.ShapeDtypeStruct((B, 1, 1), jnp.float32),
                   jax.ShapeDtypeStruct((B, 1, 1), jnp.float32)),
        compiler_params=pltpu.CompilerParams(
            dimension_semantics=("parallel", "arbitrary")),
        input_output_aliases={0: 0},
    )(*args)


# -------------------------------- parameter setup ----------------------------------

def init_params(key, num_channels, num_filters, K):
    C4 = num_channels * 4
    half = C4 // 2
    steps = []
    for _ in range(K):
        key, *ks = jax.random.split(key, 9)
        W = jnp.linalg.qr(jax.random.normal(ks[0], (C4, C4), jnp.float32))[0]
        steps.append(dict(
            an_bias=0.10 * jax.random.normal(ks[1], (C4,), jnp.float32),
            an_logs=0.05 * jax.random.normal(ks[2], (C4,), jnp.float32),
            W=W.astype(jnp.float32),
            w1=0.10 * jax.random.normal(ks[3], (3, 3, half, num_filters), jnp.float32),
            b1=jnp.zeros((num_filters,), jnp.float32),
            w2=0.10 * jax.random.normal(ks[4], (num_filters, num_filters), jnp.float32),
            b2=jnp.zeros((num_filters,), jnp.float32),
            w3=0.05 * jax.random.normal(ks[5], (3, 3, num_filters, C4), jnp.float32),
            b3=0.01 * jax.random.normal(ks[6], (C4,), jnp.float32),
            s3=0.05 * jax.random.normal(ks[7], (C4,), jnp.float32),
        ))
    key, k1, k2, k3 = jax.random.split(key, 4)
    prior = dict(
        wp=0.05 * jax.random.normal(k1, (3, 3, half, C4), jnp.float32),
        bp=0.01 * jax.random.normal(k2, (C4,), jnp.float32),
        sp=0.05 * jax.random.normal(k3, (C4,), jnp.float32),
    )
    return dict(steps=steps, prior=prior)


def prepare_params(params, hs, ws):
    """One-time host prep: fold ActNorm into the 1x1 conv, fold zero-conv gamma
    into weights/bias, tap-pack the 3x3 conv weights to (9*cin, cout), hoist the
    data-independent logdet terms, stack per-step weights on a leading K axis,
    and cast every MXU operand to bf16 (biases / logdet math stay f32)."""
    wp_l, bp_l, w1_l, b1_l, w2_l, b2_l, w3_l, b3_l = ([] for _ in range(8))
    const = jnp.zeros((), jnp.float32)
    for st in params["steps"]:
        e = jnp.exp(st["an_logs"])
        W = st["W"]
        wp_l.append((e[:, None] * W).astype(jnp.bfloat16))        # diag(exp(logs)) @ W
        bp_l.append(((st["an_bias"] * e) @ W)[None, :])
        const = const + hs * ws * (jnp.sum(st["an_logs"])
                                   + jnp.linalg.slogdet(W)[1])
        cin1, nf = st["w1"].shape[2], st["w1"].shape[3]
        w1_l.append(st["w1"].reshape(9 * cin1, nf).astype(jnp.bfloat16))
        b1_l.append(st["b1"][None, :])
        w2_l.append(st["w2"].astype(jnp.bfloat16))
        b2_l.append(st["b2"][None, :])
        g3 = jnp.exp(3.0 * st["s3"])                              # zero-conv gamma
        c4 = st["w3"].shape[3]
        w3_l.append((st["w3"] * g3).reshape(9 * nf, c4).astype(jnp.bfloat16))
        b3_l.append((st["b3"] * g3)[None, :])
    pr = params["prior"]
    gp = jnp.exp(3.0 * pr["sp"])
    cinp, c4p = pr["wp"].shape[2], pr["wp"].shape[3]
    return dict(
        wp_all=jnp.stack(wp_l),                                   # (K, C4, C4)     bf16
        bp_all=jnp.stack(bp_l),                                   # (K, 1, C4)      f32
        w1_all=jnp.stack(w1_l),                                   # (K, 9*half, nf) bf16
        b1_all=jnp.stack(b1_l),                                   # (K, 1, nf)      f32
        w2_all=jnp.stack(w2_l),                                   # (K, nf, nf)     bf16
        b2_all=jnp.stack(b2_l),                                   # (K, 1, nf)      f32
        w3_all=jnp.stack(w3_l),                                   # (K, 9*nf, C4)   bf16
        b3_all=jnp.stack(b3_l),                                   # (K, 1, C4)      f32
        const_logdet=const,
        wprior=(pr["wp"] * gp).reshape(9 * cinp, c4p).astype(jnp.bfloat16),
        bprior=(pr["bp"] * gp)[None, :],                          # (1, C4)         f32
    )


# ------------------------------------- forward -------------------------------------

def glow_block_forward(x_nchw, prep, is_final_block=False):
    B, C, H, W = x_nchw.shape
    Hs, Ws, C4 = H // 2, W // 2, 4 * C
    half = C4 // 2
    HW = Hs * Ws

    # squeeze (identical to the PyTorch reference, NCHW), then channel-last flat-spatial
    x = x_nchw.reshape(B, C, Hs, 2, Ws, 2)
    x = jnp.transpose(x, (0, 1, 3, 5, 2, 4)).reshape(B, C4, Hs, Ws)
    x = jnp.transpose(x, (0, 2, 3, 1)).reshape(B, HW, C4)

    xo, ld, lp = _run_glow_block(x, prep, Hs, Ws, final=is_final_block)
    total_logdet = ld.reshape(B) + prep["const_logdet"]
    lp = lp.reshape(B)

    xhw = xo.reshape(B, Hs, Ws, C4)
    if not is_final_block:
        # x_i / z_i are plain slices of the carried activation (done in XLA,
        # not lane-sparse kernel writebacks).
        x_i = jnp.transpose(xhw[..., :half], (0, 3, 1, 2))        # NCHW
        z_i = jnp.transpose(xhw[..., half:], (0, 3, 1, 2))
        return x_i, total_logdet, z_i, lp
    else:
        x_i = jnp.transpose(xhw, (0, 3, 1, 2))
        # TODO(synk): reverse()/sampling path of the module is not implemented (forward only).
        return x_i, total_logdet, None, lp


# --------------------------------------- main ---------------------------------------

if __name__ == "__main__":
    key = jax.random.PRNGKey(0)
    kx, kp = jax.random.split(key)
    B, C, H, W = 2, 4, 16, 16
    x = jax.random.normal(kx, (B, C, H, W), jnp.float32)

    params = init_params(kp, num_channels=C, num_filters=32, K=2)
    prep = prepare_params(params, H // 2, W // 2)   # one-time host prep (fold + hoist)

    fwd = jax.jit(glow_block_forward, static_argnames=("is_final_block",))

    # non-final block: split + ZeroConv prior fused into the last flow step
    x_i, total_logdet, z_i, z_log_prob = fwd(x, prep, is_final_block=False)
    jax.block_until_ready((x_i, total_logdet, z_i, z_log_prob))
    assert x_i.shape == (B, 2 * C, H // 2, W // 2)
    assert z_i.shape == (B, 2 * C, H // 2, W // 2)
    assert total_logdet.shape == (B,) and z_log_prob.shape == (B,)
    assert bool(jnp.all(jnp.isfinite(x_i))) and bool(jnp.all(jnp.isfinite(z_i)))
    assert bool(jnp.all(jnp.isfinite(total_logdet)))
    assert bool(jnp.all(jnp.isfinite(z_log_prob)))

    # final block: no split, std-normal log-prob fused into the last flow step
    xf, ldf, zf, lpf = fwd(x, prep, is_final_block=True)
    jax.block_until_ready((xf, ldf, lpf))
    assert xf.shape == (B, 4 * C, H // 2, W // 2) and zf is None
    assert ldf.shape == (B,) and lpf.shape == (B,)
    assert bool(jnp.all(jnp.isfinite(xf))) and bool(jnp.all(jnp.isfinite(ldf)))
    assert bool(jnp.all(jnp.isfinite(lpf)))

    print("KERNEL_OK")
</pallas_src>

<mosaic_0001>
module attributes {stable_mosaic.version = 11 : i64} {
  func.func @_glow_block_kernel(%arg0: i32, %arg1: i32, %arg2: memref<2x64x16xf32, #tpu.memory_space<vmem>>, %arg3: memref<1x16x16xbf16, #tpu.memory_space<vmem>>, %arg4: memref<1x1x16xf32, #tpu.memory_space<vmem>>, %arg5: memref<1x72x32xbf16, #tpu.memory_space<vmem>>, %arg6: memref<1x1x32xf32, #tpu.memory_space<vmem>>, %arg7: memref<1x32x32xbf16, #tpu.memory_space<vmem>>, %arg8: memref<1x1x32xf32, #tpu.memory_space<vmem>>, %arg9: memref<1x288x16xbf16, #tpu.memory_space<vmem>>, %arg10: memref<1x1x16xf32, #tpu.memory_space<vmem>>, %arg11: memref<72x16xbf16, #tpu.memory_space<vmem>>, %arg12: memref<1x16xf32, #tpu.memory_space<vmem>>, %arg13: memref<2x64x16xf32, #tpu.memory_space<vmem>>, %arg14: memref<2x1x1xf32, #tpu.memory_space<vmem>>, %arg15: memref<2x1x1xf32, #tpu.memory_space<vmem>>, %arg16: memref<2x1x1xf32, #tpu.memory_space<vmem>>) attributes {dimension_semantics = [#tpu.dimension_semantics<parallel>, #tpu.dimension_semantics<arbitrary>], iteration_bounds = array<i64: 1, 2>, scalar_prefetch = 0 : i64, scratch_operands = 1 : i64, tpu.core_type = #tpu.core_type<tc>, window_params = [{transform_indices = @transform_0, window_bounds = array<i64: 2, 64, 16>}, {transform_indices = @transform_1, window_bounds = array<i64: 1, 16, 16>}, {transform_indices = @transform_2, window_bounds = array<i64: 1, 1, 16>}, {transform_indices = @transform_3, window_bounds = array<i64: 1, 72, 32>}, {transform_indices = @transform_4, window_bounds = array<i64: 1, 1, 32>}, {transform_indices = @transform_5, window_bounds = array<i64: 1, 32, 32>}, {transform_indices = @transform_6, window_bounds = array<i64: 1, 1, 32>}, {transform_indices = @transform_7, window_bounds = array<i64: 1, 288, 16>}, {transform_indices = @transform_8, window_bounds = array<i64: 1, 1, 16>}, {pipeline_mode = #tpu.pipeline_mode<synchronous>, transform_indices = @transform_9, window_bounds = array<i64: 72, 16>}, {pipeline_mode = #tpu.pipeline_mode<synchronous>, transform_indices = @transform_10, window_bounds = array<i64: 1, 16>}, {transform_indices = @transform_11, window_bounds = array<i64: 2, 64, 16>}, {transform_indices = @transform_12, window_bounds = array<i64: 2, 1, 1>}, {transform_indices = @transform_13, window_bounds = array<i64: 2, 1, 1>}]} {
    %c0_i32 = arith.constant 0 : i32
    %0 = arith.cmpi eq, %arg1, %c0_i32 : i32
    %1 = arith.extui %0 : i1 to i32
    %c0_i32_0 = arith.constant 0 : i32
    %2 = arith.cmpi ne, %1, %c0_i32_0 : i32
    scf.if %2 {
      %c0_74 = arith.constant 0 : index
      %c0_75 = arith.constant 0 : index
      %c0_76 = arith.constant 0 : index
      %153 = vector.load %arg2[%c0_74, %c0_75, %c0_76] : memref<2x64x16xf32, #tpu.memory_space<vmem>>, vector<2x64x16xf32>
      %c0_77 = arith.constant 0 : index
      %c0_78 = arith.constant 0 : index
      %c0_79 = arith.constant 0 : index
      %154 = vector.load %arg13[%c0_77, %c0_78, %c0_79] : memref<2x64x16xf32, #tpu.memory_space<vmem>>, vector<2x64x16xf32>
      tpu.vector_store %arg13[%c0_77, %c0_78, %c0_79], %153 {strides = array<i32>} : memref<2x64x16xf32, #tpu.memory_space<vmem>>, vector<2x64x16xf32>,
      %cst_80 = arith.constant 0.000000e+00 : f32
      %155 = vector.broadcast %cst_80 : f32 to vector<2x1x1xf32>
      %c0_81 = arith.constant 0 : index
      %c0_82 = arith.constant 0 : index
      %c0_83 = arith.constant 0 : index
      %156 = vector.load %arg16[%c0_81, %c0_82, %c0_83] : memref<2x1x1xf32, #tpu.memory_space<vmem>>, vector<2x1x1xf32>
      tpu.vector_store %arg16[%c0_81, %c0_82, %c0_83], %155 {strides = array<i32>} : memref<2x1x1xf32, #tpu.memory_space<vmem>>, vector<2x1x1xf32>,
    } else {
    }
    %c0 = arith.constant 0 : index
    %c0_1 = arith.constant 0 : index
    %c0_2 = arith.constant 0 : index
    %3 = vector.load %arg13[%c0, %c0_1, %c0_2] : memref<2x64x16xf32, #tpu.memory_space<vmem>>, vector<2x64x16xf32>
    %4 = vector.shape_cast %3 : vector<2x64x16xf32> to vector<128x16xf32>
    %5 = arith.truncf %4 : vector<128x16xf32> to vector<128x16xbf16>
    %c0_3 = arith.constant 0 : index
    %c0_4 = arith.constant 0 : index
    %c0_5 = arith.constant 0 : index
    %6 = vector.load %arg3[%c0_3, %c0_4, %c0_5] : memref<1x16x16xbf16, #tpu.memory_space<vmem>>, vector<1x16x16xbf16>
    %7 = vector.shape_cast %6 : vector<1x16x16xbf16> to vector<16x16xbf16>
    %cst = arith.constant dense<0.000000e+00> : vector<128x16xf32>
    %8 = tpu.matmul %5, %7, %cst {dimension_numbers = #tpu.dot_dimension_numbers<[1], [0], [0], [1], [0, 0, 1, 1], [], []>} : vector<128x16xbf16>, vector<16x16xbf16>, vector<128x16xf32> -> vector<128x16xf32>
    %c0_6 = arith.constant 0 : index
    %c0_7 = arith.constant 0 : index
    %c0_8 = arith.constant 0 : index
    %9 = vector.load %arg4[%c0_6, %c0_7, %c0_8] : memref<1x1x16xf32, #tpu.memory_space<vmem>>, vector<1x1x16xf32>
    %10 = vector.shape_cast %9 : vector<1x1x16xf32> to vector<1x16xf32>
    %11 = vector.broadcast %10 : vector<1x16xf32> to vector<128x16xf32>
    %12 = arith.addf %8, %11 : vector<128x16xf32>
    %13 = vector.extract_strided_slice %12 {offsets = [0, 0], sizes = [128, 8], strides = [1, 1]} : vector<128x16xf32> to vector<128x8xf32>
    %14 = vector.extract_strided_slice %12 {offsets = [0, 8], sizes = [128, 8], strides = [1, 1]} : vector<128x16xf32> to vector<128x8xf32>
    %15 = vector.shape_cast %13 : vector<128x8xf32> to vector<2x8x8x8xf32>
    %cst_9 = arith.constant 0.000000e+00 : f32
    %16 = vector.broadcast %cst_9 : f32 to vector<2x1x8x8xf32>
    %17 = tpu.concatenate %16, %15, %16 in 1 : vector<2x1x8x8xf32>, vector<2x8x8x8xf32>, vector<2x1x8x8xf32> -> vector<2x10x8x8xf32>
    %18 = tpu.iota {dimensions = array<i32: 1>} : vector<16x8x8xi32>
    %c1_i32 = arith.constant 1 : i32
    %19 = vector.broadcast %c1_i32 : i32 to vector<16x8x8xi32>
    %20 = arith.cmpi sge, %18, %19 : vector<16x8x8xi32>
    %c6_i32 = arith.constant 6 : i32
    %21 = vector.broadcast %c6_i32 : i32 to vector<16x8x8xi32>
    %22 = arith.cmpi sle, %18, %21 : vector<16x8x8xi32>
    %23 = vector.extract_strided_slice %17 {offsets = [0, 0, 0, 0], sizes = [2, 8, 8, 8], strides = [1, 1, 1, 1]} : vector<2x10x8x8xf32> to vector<2x8x8x8xf32>
    %24 = vector.shape_cast %23 : vector<2x8x8x8xf32> to vector<16x8x8xf32>
    %c1_i32_10 = arith.constant 1 : i32
    %25 = tpu.dynamic_rotate %24 by %c1_i32_10 dim 1 : vector<16x8x8xf32>, i32 -> vector<16x8x8xf32>
    %cst_11 = arith.constant 0.000000e+00 : f32
    %26 = vector.broadcast %cst_11 : f32 to vector<16x8x8xf32>
    %27 = arith.select %20, %25, %26 : vector<16x8x8xi1>, vector<16x8x8xf32>
    %28 = arith.truncf %27 : vector<16x8x8xf32> to vector<16x8x8xbf16>
    %29 = arith.truncf %24 : vector<16x8x8xf32> to vector<16x8x8xbf16>
    %c7_i32 = arith.constant 7 : i32
    %30 = tpu.dynamic_rotate %24 by %c7_i32 dim 1 : vector<16x8x8xf32>, i32 -> vector<16x8x8xf32>
    %cst_12 = arith.constant 0.000000e+00 : f32
    %31 = vector.broadcast %cst_12 : f32 to vector<16x8x8xf32>
    %32 = arith.select %22, %30, %31 : vector<16x8x8xi1>, vector<16x8x8xf32>
    %33 = arith.truncf %32 : vector<16x8x8xf32> to vector<16x8x8xbf16>
    %34 = vector.extract_strided_slice %17 {offsets = [0, 1, 0, 0], sizes = [2, 8, 8, 8], strides = [1, 1, 1, 1]} : vector<2x10x8x8xf32> to vector<2x8x8x8xf32>
    %35 = vector.shape_cast %34 : vector<2x8x8x8xf32> to vector<16x8x8xf32>
    %c1_i32_13 = arith.constant 1 : i32
    %36 = tpu.dynamic_rotate %35 by %c1_i32_13 dim 1 : vector<16x8x8xf32>, i32 -> vector<16x8x8xf32>
    %cst_14 = arith.constant 0.000000e+00 : f32
    %37 = vector.broadcast %cst_14 : f32 to vector<16x8x8xf32>
    %38 = arith.select %20, %36, %37 : vector<16x8x8xi1>, vector<16x8x8xf32>
    %39 = arith.truncf %38 : vector<16x8x8xf32> to vector<16x8x8xbf16>
    %40 = arith.truncf %35 : vector<16x8x8xf32> to vector<16x8x8xbf16>
    %c7_i32_15 = arith.constant 7 : i32
    %41 = tpu.dynamic_rotate %35 by %c7_i32_15 dim 1 : vector<16x8x8xf32>, i32 -> vector<16x8x8xf32>
    %cst_16 = arith.constant 0.000000e+00 : f32
    %42 = vector.broadcast %cst_16 : f32 to vector<16x8x8xf32>
    %43 = arith.select %22, %41, %42 : vector<16x8x8xi1>, vector<16x8x8xf32>
    %44 = arith.truncf %43 : vector<16x8x8xf32> to vector<16x8x8xbf16>
    %45 = vector.extract_strided_slice %17 {offsets = [0, 2, 0, 0], sizes = [2, 8, 8, 8], strides = [1, 1, 1, 1]} : vector<2x10x8x8xf32> to vector<2x8x8x8xf32>
    %46 = vector.shape_cast %45 : vector<2x8x8x8xf32> to vector<16x8x8xf32>
    %c1_i32_17 = arith.constant 1 : i32
    %47 = tpu.dynamic_rotate %46 by %c1_i32_17 dim 1 : vector<16x8x8xf32>, i32 -> vector<16x8x8xf32>
    %cst_18 = arith.constant 0.000000e+00 : f32
    %48 = vector.broadcast %cst_18 : f32 to vector<16x8x8xf32>
    %49 = arith.select %20, %47, %48 : vector<16x8x8xi1>, vector<16x8x8xf32>
    %50 = arith.truncf %49 : vector<16x8x8xf32> to vector<16x8x8xbf16>
    %51 = arith.truncf %46 : vector<16x8x8xf32> to vector<16x8x8xbf16>
    %c7_i32_19 = arith.constant 7 : i32
    %52 = tpu.dynamic_rotate %46 by %c7_i32_19 dim 1 : vector<16x8x8xf32>, i32 -> vector<16x8x8xf32>
    %cst_20 = arith.constant 0.000000e+00 : f32
    %53 = vector.broadcast %cst_20 : f32 to vector<16x8x8xf32>
    %54 = arith.select %22, %52, %53 : vector<16x8x8xi1>, vector<16x8x8xf32>
    %55 = arith.truncf %54 : vector<16x8x8xf32> to vector<16x8x8xbf16>
    %56 = tpu.concatenate %28, %29, %33, %39, %40, %44, %50, %51, %55 in 2 : vector<16x8x8xbf16>, vector<16x8x8xbf16>, vector<16x8x8xbf16>, vector<16x8x8xbf16>, vector<16x8x8xbf16>, vector<16x8x8xbf16>, vector<16x8x8xbf16>, vector<16x8x8xbf16>, vector<16x8x8xbf16> -> vector<16x8x72xbf16>
    %57 = vector.shape_cast %56 : vector<16x8x72xbf16> to vector<128x72xbf16>
    %c0_21 = arith.constant 0 : index
    %c0_22 = arith.constant 0 : index
    %c0_23 = arith.constant 0 : index
    %58 = vector.load %arg5[%c0_21, %c0_22, %c0_23] : memref<1x72x32xbf16, #tpu.memory_space<vmem>>, vector<1x72x32xbf16>
    %59 = vector.shape_cast %58 : vector<1x72x32xbf16> to vector<72x32xbf16>
    %cst_24 = arith.constant dense<0.000000e+00> : vector<128x32xf32>
    %60 = tpu.matmul %57, %59, %cst_24 {dimension_numbers = #tpu.dot_dimension_numbers<[1], [0], [0], [1], [0, 0, 1, 1], [], []>} : vector<128x72xbf16>, vector<72x32xbf16>, vector<128x32xf32> -> vector<128x32xf32>
    %c0_25 = arith.constant 0 : index
    %c0_26 = arith.constant 0 : index
    %c0_27 = arith.constant 0 : index
    %61 = vector.load %arg6[%c0_25, %c0_26, %c0_27] : memref<1x1x32xf32, #tpu.memory_space<vmem>>, vector<1x1x32xf32>
    %62 = vector.shape_cast %61 : vector<1x1x32xf32> to vector<1x32xf32>
    %63 = vector.broadcast %62 : vector<1x32xf32> to vector<128x32xf32>
    %64 = arith.addf %60, %63 : vector<128x32xf32>
    %cst_28 = arith.constant 0.000000e+00 : f32
    %65 = vector.broadcast %cst_28 : f32 to vector<128x32xf32>
    %66 = arith.maximumf %64, %65 : vector<128x32xf32>
    %67 = arith.truncf %66 : vector<128x32xf32> to vector<128x32xbf16>
    %c0_29 = arith.constant 0 : index
    %c0_30 = arith.constant 0 : index
    %c0_31 = arith.constant 0 : index
    %68 = vector.load %arg7[%c0_29, %c0_30, %c0_31] : memref<1x32x32xbf16, #tpu.memory_space<vmem>>, vector<1x32x32xbf16>
    %69 = vector.shape_cast %68 : vector<1x32x32xbf16> to vector<32x32xbf16>
    %cst_32 = arith.constant dense<0.000000e+00> : vector<128x32xf32>
    %70 = tpu.matmul %67, %69, %cst_32 {dimension_numbers = #tpu.dot_dimension_numbers<[1], [0], [0], [1], [0, 0, 1, 1], [], []>} : vector<128x32xbf16>, vector<32x32xbf16>, vector<128x32xf32> -> vector<128x32xf32>
    %c0_33 = arith.constant 0 : index
    %c0_34 = arith.constant 0 : index
    %c0_35 = arith.constant 0 : index
    %71 = vector.load %arg8[%c0_33, %c0_34, %c0_35] : memref<1x1x32xf32, #tpu.memory_space<vmem>>, vector<1x1x32xf32>
    %72 = vector.shape_cast %71 : vector<1x1x32xf32> to vector<1x32xf32>
    %73 = vector.broadcast %72 : vector<1x32xf32> to vector<128x32xf32>
    %74 = arith.addf %70, %73 : vector<128x32xf32>
    %cst_36 = arith.constant 0.000000e+00 : f32
    %75 = vector.broadcast %cst_36 : f32 to vector<128x32xf32>
    %76 = arith.maximumf %74, %75 : vector<128x32xf32>
    %77 = vector.shape_cast %76 : vector<128x32xf32> to vector<2x8x8x32xf32>
    %cst_37 = arith.constant 1.000000e+00 : f32
    %78 = vector.broadcast %cst_37 : f32 to vector<2x1x8x32xf32>
    %79 = tpu.concatenate %78, %77, %78 in 1 : vector<2x1x8x32xf32>, vector<2x8x8x32xf32>, vector<2x1x8x32xf32> -> vector<2x10x8x32xf32>
    %80 = tpu.iota {dimensions = array<i32: 1>} : vector<16x8x32xi32>
    %c1_i32_38 = arith.constant 1 : i32
    %81 = vector.broadcast %c1_i32_38 : i32 to vector<16x8x32xi32>
    %82 = arith.cmpi sge, %80, %81 : vector<16x8x32xi32>
    %c6_i32_39 = arith.constant 6 : i32
    %83 = vector.broadcast %c6_i32_39 : i32 to vector<16x8x32xi32>
    %84 = arith.cmpi sle, %80, %83 : vector<16x8x32xi32>
    %85 = vector.extract_strided_slice %79 {offsets = [0, 0, 0, 0], sizes = [2, 8, 8, 32], strides = [1, 1, 1, 1]} : vector<2x10x8x32xf32> to vector<2x8x8x32xf32>
    %86 = vector.shape_cast %85 : vector<2x8x8x32xf32> to vector<16x8x32xf32>
    %c1_i32_40 = arith.constant 1 : i32
    %87 = tpu.dynamic_rotate %86 by %c1_i32_40 dim 1 : vector<16x8x32xf32>, i32 -> vector<16x8x32xf32>
    %cst_41 = arith.constant 1.000000e+00 : f32
    %88 = vector.broadcast %cst_41 : f32 to vector<16x8x32xf32>
    %89 = arith.select %82, %87, %88 : vector<16x8x32xi1>, vector<16x8x32xf32>
    %90 = arith.truncf %89 : vector<16x8x32xf32> to vector<16x8x32xbf16>
    %91 = arith.truncf %86 : vector<16x8x32xf32> to vector<16x8x32xbf16>
    %c7_i32_42 = arith.constant 7 : i32
    %92 = tpu.dynamic_rotate %86 by %c7_i32_42 dim 1 : vector<16x8x32xf32>, i32 -> vector<16x8x32xf32>
    %cst_43 = arith.constant 1.000000e+00 : f32
    %93 = vector.broadcast %cst_43 : f32 to vector<16x8x32xf32>
    %94 = arith.select %84, %92, %93 : vector<16x8x32xi1>, vector<16x8x32xf32>
    %95 = arith.truncf %94 : vector<16x8x32xf32> to vector<16x8x32xbf16>
    %96 = vector.extract_strided_slice %79 {offsets = [0, 1, 0, 0], sizes = [2, 8, 8, 32], strides = [1, 1, 1, 1]} : vector<2x10x8x32xf32> to vector<2x8x8x32xf32>
    %97 = vector.shape_cast %96 : vector<2x8x8x32xf32> to vector<16x8x32xf32>
    %c1_i32_44 = arith.constant 1 : i32
    %98 = tpu.dynamic_rotate %97 by %c1_i32_44 dim 1 : vector<16x8x32xf32>, i32 -> vector<16x8x32xf32>
    %cst_45 = arith.constant 1.000000e+00 : f32
    %99 = vector.broadcast %cst_45 : f32 to vector<16x8x32xf32>
    %100 = arith.select %82, %98, %99 : vector<16x8x32xi1>, vector<16x8x32xf32>
    %101 = arith.truncf %100 : vector<16x8x32xf32> to vector<16x8x32xbf16>
    %102 = arith.truncf %97 : vector<16x8x32xf32> to vector<16x8x32xbf16>
    %c7_i32_46 = arith.constant 7 : i32
    %103 = tpu.dynamic_rotate %97 by %c7_i32_46 dim 1 : vector<16x8x32xf32>, i32 -> vector<16x8x32xf32>
    %cst_47 = arith.constant 1.000000e+00 : f32
    %104 = vector.broadcast %cst_47 : f32 to vector<16x8x32xf32>
    %105 = arith.select %84, %103, %104 : vector<16x8x32xi1>, vector<16x8x32xf32>
    %106 = arith.truncf %105 : vector<16x8x32xf32> to vector<16x8x32xbf16>
    %107 = vector.extract_strided_slice %79 {offsets = [0, 2, 0, 0], sizes = [2, 8, 8, 32], strides = [1, 1, 1, 1]} : vector<2x10x8x32xf32> to vector<2x8x8x32xf32>
    %108 = vector.shape_cast %107 : vector<2x8x8x32xf32> to vector<16x8x32xf32>
    %c1_i32_48 = arith.constant 1 : i32
    %109 = tpu.dynamic_rotate %108 by %c1_i32_48 dim 1 : vector<16x8x32xf32>, i32 -> vector<16x8x32xf32>
    %cst_49 = arith.constant 1.000000e+00 : f32
    %110 = vector.broadcast %cst_49 : f32 to vector<16x8x32xf32>
    %111 = arith.select %82, %109, %110 : vector<16x8x32xi1>, vector<16x8x32xf32>
    %112 = arith.truncf %111 : vector<16x8x32xf32> to vector<16x8x32xbf16>
    %113 = arith.truncf %108 : vector<16x8x32xf32> to vector<16x8x32xbf16>
    %c7_i32_50 = arith.constant 7 : i32
    %114 = tpu.dynamic_rotate %108 by %c7_i32_50 dim 1 : vector<16x8x32xf32>, i32 -> vector<16x8x32xf32>
    %cst_51 = arith.constant 1.000000e+00 : f32
    %115 = vector.broadcast %cst_51 : f32 to vector<16x8x32xf32>
    %116 = arith.select %84, %114, %115 : vector<16x8x32xi1>, vector<16x8x32xf32>
    %117 = arith.truncf %116 : vector<16x8x32xf32> to vector<16x8x32xbf16>
    %118 = tpu.concatenate %90, %91, %95, %101, %102, %106, %112, %113, %117 in 2 : vector<16x8x32xbf16>, vector<16x8x32xbf16>, vector<16x8x32xbf16>, vector<16x8x32xbf16>, vector<16x8x32xbf16>, vector<16x8x32xbf16>, vector<16x8x32xbf16>, vector<16x8x32xbf16>, vector<16x8x32xbf16> -> vector<16x8x288xbf16>
    %119 = vector.shape_cast %118 : vector<16x8x288xbf16> to vector<128x288xbf16>
    %c0_52 = arith.constant 0 : index
    %c0_53 = arith.constant 0 : index
    %c0_54 = arith.constant 0 : index
    %120 = vector.load %arg9[%c0_52, %c0_53, %c0_54] : memref<1x288x16xbf16, #tpu.memory_space<vmem>>, vector<1x288x16xbf16>
    %121 = vector.shape_cast %120 : vector<1x288x16xbf16> to vector<288x16xbf16>
    %cst_55 = arith.constant dense<0.000000e+00> : vector<128x16xf32>
    %122 = tpu.matmul %119, %121, %cst_55 {dimension_numbers = #tpu.dot_dimension_numbers<[1], [0], [0], [1], [0, 0, 1, 1], [], []>} : vector<128x288xbf16>, vector<288x16xbf16>, vector<128x16xf32> -> vector<128x16xf32>
    %c0_56 = arith.constant 0 : index
    %c0_57 = arith.constant 0 : index
    %c0_58 = arith.constant 0 : index
    %123 = vector.load %arg10[%c0_56, %c0_57, %c0_58] : memref<1x1x16xf32, #tpu.memory_space<vmem>>, vector<1x1x16xf32>
    %124 = vector.shape_cast %123 : vector<1x1x16xf32> to vector<1x16xf32>
    %125 = vector.broadcast %124 : vector<1x16xf32> to vector<128x16xf32>
    %126 = arith.addf %122, %125 : vector<128x16xf32>
    %127 = vector.extract_strided_slice %126 {offsets = [0, 0], sizes = [128, 8], strides = [1, 1]} : vector<128x16xf32> to vector<128x8xf32>
    %128 = vector.extract_strided_slice %126 {offsets = [0, 8], sizes = [128, 8], strides = [1, 1]} : vector<128x16xf32> to vector<128x8xf32>
    %cst_59 = arith.constant 2.000000e+00 : f32
    %129 = vector.broadcast %cst_59 : f32 to vector<128x8xf32>
    %130 = arith.addf %127, %129 : vector<128x8xf32>
    %131 = arith.negf %130 : vector<128x8xf32>
    %132 = math.exp %131 : vector<128x8xf32>
    %cst_60 = arith.constant 1.000000e+00 : f32
    %133 = vector.broadcast %cst_60 : f32 to vector<128x8xf32>
    %134 = arith.addf %133, %132 : vector<128x8xf32>
    %135 = arith.divf %133, %134 : vector<128x8xf32>
    %136 = arith.addf %14, %128 : vector<128x8xf32>
    %137 = arith.mulf %136, %135 : vector<128x8xf32>
    %138 = tpu.concatenate %13, %137 in 1 : vector<128x8xf32>, vector<128x8xf32> -> vector<128x16xf32>
    %139 = vector.shape_cast %138 : vector<128x16xf32> to vector<2x64x16xf32>
    %c0_61 = arith.constant 0 : index
    %c0_62 = arith.constant 0 : index
    %c0_63 = arith.constant 0 : index
    %140 = vector.load %arg13[%c0_61, %c0_62, %c0_63] : memref<2x64x16xf32, #tpu.memory_space<vmem>>, vector<2x64x16xf32>
    tpu.vector_store %arg13[%c0_61, %c0_62, %c0_63], %139 {strides = array<i32>} : memref<2x64x16xf32, #tpu.memory_space<vmem>>, vector<2x64x16xf32>,
    %141 = math.log %135 : vector<128x8xf32>
    %142 = vector.shape_cast %141 : vector<128x8xf32> to vector<2x64x8xf32>
    %c0_64 = arith.constant 0 : index
    %c0_65 = arith.constant 0 : index
    %c0_66 = arith.constant 0 : index
    %143 = vector.load %arg16[%c0_64, %c0_65, %c0_66] : memref<2x1x1xf32, #tpu.memory_space<vmem>>, vector<2x1x1xf32>
    %cst_67 = arith.constant dense<0.000000e+00> : vector<2x64xf32>
    %144 = vector.multi_reduction <add>, %142, %cst_67 [2] : vector<2x64x8xf32> to vector<2x64xf32>
    %145 = vector.shape_cast %144 : vector<2x64xf32> to vector<2x64x1xf32>
    %cst_68 = arith.constant dense<0.000000e+00> : vector<2x1xf32>
    %146 = vector.multi_reduction <add>, %145, %cst_68 [1] : vector<2x64x1xf32> to vector<2x1xf32>
    %147 = vector.shape_cast %146 : vector<2x1xf32> to vector<2x1x1xf32>
    %148 = arith.addf %143, %147 : vector<2x1x1xf32>
    %c0_69 = arith.constant 0 : index
    %c0_70 = arith.constant 0 : index
    %c0_71 = arith.constant 0 : index
    %149 = vector.load %arg16[%c0_69, %c0_70, %c0_71] : memref<2x1x1xf32, #tpu.memory_space<vmem>>, vector<2x1x1xf32>
    tpu.vector_store %arg16[%c0_69, %c0_70, %c0_71], %148 {strides = array<i32>} : memref<2x1x1xf32, #tpu.memory_space<vmem>>, vector<2x1x1xf32>,
    %c1_i32_72 = arith.constant 1 : i32
    %150 = arith.cmpi eq, %arg1, %c1_i32_72 : i32
    %151 = arith.extui %150 : i1 to i32
    %c0_i32_73 = arith.constant 0 : i32
    %152 = arith.cmpi ne, %151, %c0_i32_73 : i32
    scf.if %152 {
      %c0_74 = arith.constant 0 : index
      %c0_75 = arith.constant 0 : index
      %c0_76 = arith.constant 0 : index
      %153 = vector.load %arg16[%c0_74, %c0_75, %c0_76] : memref<2x1x1xf32, #tpu.memory_space<vmem>>, vector<2x1x1xf32>
      %c0_77 = arith.constant 0 : index
      %c0_78 = arith.constant 0 : index
      %c0_79 = arith.constant 0 : index
      %154 = vector.load %arg14[%c0_77, %c0_78, %c0_79] : memref<2x1x1xf32, #tpu.memory_space<vmem>>, vector<2x1x1xf32>
      tpu.vector_store %arg14[%c0_77, %c0_78, %c0_79], %153 {strides = array<i32>} : memref<2x1x1xf32, #tpu.memory_space<vmem>>, vector<2x1x1xf32>,
      %155 = vector.shape_cast %13 : vector<128x8xf32> to vector<2x8x8x8xf32>
      %cst_80 = arith.constant 1.000000e+00 : f32
      %156 = vector.broadcast %cst_80 : f32 to vector<2x1x8x8xf32>
      %157 = tpu.concatenate %156, %155, %156 in 1 : vector<2x1x8x8xf32>, vector<2x8x8x8xf32>, vector<2x1x8x8xf32> -> vector<2x10x8x8xf32>
      %158 = tpu.iota {dimensions = array<i32: 1>} : vector<16x8x8xi32>
      %c1_i32_81 = arith.constant 1 : i32
      %159 = vector.broadcast %c1_i32_81 : i32 to vector<16x8x8xi32>
      %160 = arith.cmpi sge, %158, %159 : vector<16x8x8xi32>
      %c6_i32_82 = arith.constant 6 : i32
      %161 = vector.broadcast %c6_i32_82 : i32 to vector<16x8x8xi32>
      %162 = arith.cmpi sle, %158, %161 : vector<16x8x8xi32>
      %163 = vector.extract_strided_slice %157 {offsets = [0, 0, 0, 0], sizes = [2, 8, 8, 8], strides = [1, 1, 1, 1]} : vector<2x10x8x8xf32> to vector<2x8x8x8xf32>
      %164 = vector.shape_cast %163 : vector<2x8x8x8xf32> to vector<16x8x8xf32>
      %c1_i32_83 = arith.constant 1 : i32
      %165 = tpu.dynamic_rotate %164 by %c1_i32_83 dim 1 : vector<16x8x8xf32>, i32 -> vector<16x8x8xf32>
      %cst_84 = arith.constant 1.000000e+00 : f32
      %166 = vector.broadcast %cst_84 : f32 to vector<16x8x8xf32>
      %167 = arith.select %160, %165, %166 : vector<16x8x8xi1>, vector<16x8x8xf32>
      %168 = arith.truncf %167 : vector<16x8x8xf32> to vector<16x8x8xbf16>
      %169 = arith.truncf %164 : vector<16x8x8xf32> to vector<16x8x8xbf16>
      %c7_i32_85 = arith.constant 7 : i32
      %170 = tpu.dynamic_rotate %164 by %c7_i32_85 dim 1 : vector<16x8x8xf32>, i32 -> vector<16x8x8xf32>
      %cst_86 = arith.constant 1.000000e+00 : f32
      %171 = vector.broadcast %cst_86 : f32 to vector<16x8x8xf32>
      %172 = arith.select %162, %170, %171 : vector<16x8x8xi1>, vector<16x8x8xf32>
      %173 = arith.truncf %172 : vector<16x8x8xf32> to vector<16x8x8xbf16>
      %174 = vector.extract_strided_slice %157 {offsets = [0, 1, 0, 0], sizes = [2, 8, 8, 8], strides = [1, 1, 1, 1]} : vector<2x10x8x8xf32> to vector<2x8x8x8xf32>
      %175 = vector.shape_cast %174 : vector<2x8x8x8xf32> to vector<16x8x8xf32>
      %c1_i32_87 = arith.constant 1 : i32
      %176 = tpu.dynamic_rotate %175 by %c1_i32_87 dim 1 : vector<16x8x8xf32>, i32 -> vector<16x8x8xf32>
      %cst_88 = arith.constant 1.000000e+00 : f32
      %177 = vector.broadcast %cst_88 : f32 to vector<16x8x8xf32>
      %178 = arith.select %160, %176, %177 : vector<16x8x8xi1>, vector<16x8x8xf32>
      %179 = arith.truncf %178 : vector<16x8x8xf32> to vector<16x8x8xbf16>
      %180 = arith.truncf %175 : vector<16x8x8xf32> to vector<16x8x8xbf16>
      %c7_i32_89 = arith.constant 7 : i32
      %181 = tpu.dynamic_rotate %175 by %c7_i32_89 dim 1 : vector<16x8x8xf32>, i32 -> vector<16x8x8xf32>
      %cst_90 = arith.constant 1.000000e+00 : f32
      %182 = vector.broadcast %cst_90 : f32 to vector<16x8x8xf32>
      %183 = arith.select %162, %181, %182 : vector<16x8x8xi1>, vector<16x8x8xf32>
      %184 = arith.truncf %183 : vector<16x8x8xf32> to vector<16x8x8xbf16>
      %185 = vector.extract_strided_slice %157 {offsets = [0, 2, 0, 0], sizes = [2, 8, 8, 8], strides = [1, 1, 1, 1]} : vector<2x10x8x8xf32> to vector<2x8x8x8xf32>
      %186 = vector.shape_cast %185 : vector<2x8x8x8xf32> to vector<16x8x8xf32>
      %c1_i32_91 = arith.constant 1 : i32
      %187 = tpu.dynamic_rotate %186 by %c1_i32_91 dim 1 : vector<16x8x8xf32>, i32 -> vector<16x8x8xf32>
      %cst_92 = arith.constant 1.000000e+00 : f32
      %188 = vector.broadcast %cst_92 : f32 to vector<16x8x8xf32>
      %189 = arith.select %160, %187, %188 : vector<16x8x8xi1>, vector<16x8x8xf32>
      %190 = arith.truncf %189 : vector<16x8x8xf32> to vector<16x8x8xbf16>
      %191 = arith.truncf %186 : vector<16x8x8xf32> to vector<16x8x8xbf16>
      %c7_i32_93 = arith.constant 7 : i32
      %192 = tpu.dynamic_rotate %186 by %c7_i32_93 dim 1 : vector<16x8x8xf32>, i32 -> vector<16x8x8xf32>
      %cst_94 = arith.constant 1.000000e+00 : f32
      %193 = vector.broadcast %cst_94 : f32 to vector<16x8x8xf32>
      %194 = arith.select %162, %192, %193 : vector<16x8x8xi1>, vector<16x8x8xf32>
      %195 = arith.truncf %194 : vector<16x8x8xf32> to vector<16x8x8xbf16>
      %196 = tpu.concatenate %168, %169, %173, %179, %180, %184, %190, %191, %195 in 2 : vector<16x8x8xbf16>, vector<16x8x8xbf16>, vector<16x8x8xbf16>, vector<16x8x8xbf16>, vector<16x8x8xbf16>, vector<16x8x8xbf16>, vector<16x8x8xbf16>, vector<16x8x8xbf16>, vector<16x8x8xbf16> -> vector<16x8x72xbf16>
      %197 = vector.shape_cast %196 : vector<16x8x72xbf16> to vector<128x72xbf16>
      %c0_95 = arith.constant 0 : index
      %c0_96 = arith.constant 0 : index
      %198 = vector.load %arg11[%c0_95, %c0_96] : memref<72x16xbf16, #tpu.memory_space<vmem>>, vector<72x16xbf16>
      %cst_97 = arith.constant dense<0.000000e+00> : vector<128x16xf32>
      %199 = tpu.matmul %197, %198, %cst_97 {dimension_numbers = #tpu.dot_dimension_numbers<[1], [0], [0], [1], [0, 0, 1, 1], [], []>} : vector<128x72xbf16>, vector<72x16xbf16>, vector<128x16xf32> -> vector<128x16xf32>
      %c0_98 = arith.constant 0 : index
      %c0_99 = arith.constant 0 : index
      %200 = vector.load %arg12[%c0_98, %c0_99] : memref<1x16xf32, #tpu.memory_space<vmem>>, vector<1x16xf32>
      %201 = vector.broadcast %200 : vector<1x16xf32> to vector<128x16xf32>
      %202 = arith.addf %199, %201 : vector<128x16xf32>
      %203 = vector.extract_strided_slice %202 {offsets = [0, 0], sizes = [128, 8], strides = [1, 1]} : vector<128x16xf32> to vector<128x8xf32>
      %204 = vector.extract_strided_slice %202 {offsets = [0, 8], sizes = [128, 8], strides = [1, 1]} : vector<128x16xf32> to vector<128x8xf32>
      %205 = arith.subf %137, %203 : vector<128x8xf32>
      %cst_100 = arith.constant 0.000000e+00 : f32
      %206 = vector.broadcast %cst_100 : f32 to vector<128x8xf32>
      %207 = arith.subf %206, %204 : vector<128x8xf32>
      %208 = math.exp %207 : vector<128x8xf32>
      %209 = arith.mulf %205, %208 : vector<128x8xf32>
      %cst_101 = arith.constant -5.000000e-01 : f32
      %210 = vector.broadcast %cst_101 : f32 to vector<128x8xf32>
      %211 = arith.mulf %210, %209 : vector<128x8xf32>
      %212 = arith.mulf %211, %209 : vector<128x8xf32>
      %213 = arith.subf %212, %204 : vector<128x8xf32>
      %cst_102 = arith.constant 0.918938517 : f32
      %214 = vector.broadcast %cst_102 : f32 to vector<128x8xf32>
      %215 = arith.subf %213, %214 : vector<128x8xf32>
      %216 = vector.shape_cast %215 : vector<128x8xf32> to vector<2x64x8xf32>
      %cst_103 = arith.constant dense<0.000000e+00> : vector<2x64xf32>
      %217 = vector.multi_reduction <add>, %216, %cst_103 [2] : vector<2x64x8xf32> to vector<2x64xf32>
      %218 = vector.shape_cast %217 : vector<2x64xf32> to vector<2x64x1xf32>
      %cst_104 = arith.constant dense<0.000000e+00> : vector<2x1xf32>
      %219 = vector.multi_reduction <add>, %218, %cst_104 [1] : vector<2x64x1xf32> to vector<2x1xf32>
      %220 = vector.shape_cast %219 : vector<2x1xf32> to vector<2x1x1xf32>
      %c0_105 = arith.constant 0 : index
      %c0_106 = arith.constant 0 : index
      %c0_107 = arith.constant 0 : index
      %221 = vector.load %arg15[%c0_105, %c0_106, %c0_107] : memref<2x1x1xf32, #tpu.memory_space<vmem>>, vector<2x1x1xf32>
      tpu.vector_store %arg15[%c0_105, %c0_106, %c0_107], %220 {strides = array<i32>} : memref<2x1x1xf32, #tpu.memory_space<vmem>>, vector<2x1x1xf32>,
    } else {
    }
    return
  }
  func.func @transform_0(%arg0: i32, %arg1: i32) -> (i32, i32, i32) {
    %c0_i32 = arith.constant 0 : i32
    %c0_i32_0 = arith.constant 0 : i32
    %c0_i32_1 = arith.constant 0 : i32
    return %arg0, %c0_i32, %c0_i32_0 : i32, i32, i32
  }
  func.func @transform_1(%arg0: i32, %arg1: i32) -> (i32, i32, i32) {
    %c0_i32 = arith.constant 0 : i32
    %c0_i32_0 = arith.constant 0 : i32
    %c0_i32_1 = arith.constant 0 : i32
    return %arg1, %c0_i32, %c0_i32_0 : i32, i32, i32
  }
  func.func @transform_2(%arg0: i32, %arg1: i32) -> (i32, i32, i32) {
    %c0_i32 = arith.constant 0 : i32
    %c0_i32_0 = arith.constant 0 : i32
    %c0_i32_1 = arith.constant 0 : i32
    return %arg1, %c0_i32, %c0_i32_0 : i32, i32, i32
  }
  func.func @transform_3(%arg0: i32, %arg1: i32) -> (i32, i32, i32) {
    %c0_i32 = arith.constant 0 : i32
    %c0_i32_0 = arith.constant 0 : i32
    %c0_i32_1 = arith.constant 0 : i32
    return %arg1, %c0_i32, %c0_i32_0 : i32, i32, i32
  }
  func.func @transform_4(%arg0: i32, %arg1: i32) -> (i32, i32, i32) {
    %c0_i32 = arith.constant 0 : i32
    %c0_i32_0 = arith.constant 0 : i32
    %c0_i32_1 = arith.constant 0 : i32
    return %arg1, %c0_i32, %c0_i32_0 : i32, i32, i32
  }
  func.func @transform_5(%arg0: i32, %arg1: i32) -> (i32, i32, i32) {
    %c0_i32 = arith.constant 0 : i32
    %c0_i32_0 = arith.constant 0 : i32
    %c0_i32_1 = arith.constant 0 : i32
    return %arg1, %c0_i32, %c0_i32_0 : i32, i32, i32
  }
  func.func @transform_6(%arg0: i32, %arg1: i32) -> (i32, i32, i32) {
    %c0_i32 = arith.constant 0 : i32
    %c0_i32_0 = arith.constant 0 : i32
    %c0_i32_1 = arith.constant 0 : i32
    return %arg1, %c0_i32, %c0_i32_0 : i32, i32, i32
  }
  func.func @transform_7(%arg0: i32, %arg1: i32) -> (i32, i32, i32) {
    %c0_i32 = arith.constant 0 : i32
    %c0_i32_0 = arith.constant 0 : i32
    %c0_i32_1 = arith.constant 0 : i32
    return %arg1, %c0_i32, %c0_i32_0 : i32, i32, i32
  }
  func.func @transform_8(%arg0: i32, %arg1: i32) -> (i32, i32, i32) {
    %c0_i32 = arith.constant 0 : i32
    %c0_i32_0 = arith.constant 0 : i32
    %c0_i32_1 = arith.constant 0 : i32
    return %arg1, %c0_i32, %c0_i32_0 : i32, i32, i32
  }
  func.func @transform_9(%arg0: i32, %arg1: i32) -> (i32, i32) {
    %c0_i32 = arith.constant 0 : i32
    %c0_i32_0 = arith.constant 0 : i32
    %c0_i32_1 = arith.constant 0 : i32
    return %c0_i32, %c0_i32_0 : i32, i32
  }
  func.func @transform_10(%arg0: i32, %arg1: i32) -> (i32, i32) {
    %c0_i32 = arith.constant 0 : i32
    %c0_i32_0 = arith.constant 0 : i32
    %c0_i32_1 = arith.constant 0 : i32
    return %c0_i32, %c0_i32_0 : i32, i32
  }
  func.func @transform_11(%arg0: i32, %arg1: i32) -> (i32, i32, i32) {
    %c0_i32 = arith.constant 0 : i32
    %c0_i32_0 = arith.constant 0 : i32
    %c0_i32_1 = arith.constant 0 : i32
    return %arg0, %c0_i32, %c0_i32_0 : i32, i32, i32
  }
  func.func @transform_12(%arg0: i32, %arg1: i32) -> (i32, i32, i32) {
    %c0_i32 = arith.constant 0 : i32
    %c0_i32_0 = arith.constant 0 : i32
    %c0_i32_1 = arith.constant 0 : i32
    return %arg0, %c0_i32, %c0_i32_0 : i32, i32, i32
  }
  func.func @transform_13(%arg0: i32, %arg1: i32) -> (i32, i32, i32) {
    %c0_i32 = arith.constant 0 : i32
    %c0_i32_0 = arith.constant 0 : i32
    %c0_i32_1 = arith.constant 0 : i32
    return %arg0, %c0_i32, %c0_i32_0 : i32, i32, i32
  }
}

</mosaic_0001>

<llo_original>
// kernel: glow_block_forward.1
$region0: #{glow_block_forward.1}
  #allocation0 [shape = 'u32[]', space=smem, size = 0x4, offset = 0x4, fixed_abs, tag = 'smem constant byte address 0x4 - core index']
  #allocation1 [shape = 'u32[72,128]{1,0:T(1,128)}', space=vmem, size = 0x9000, scoped, tag = 'internal scratch']
  #allocation2 [shape = 'f32[2,1,1]{2,1,0:T(1,128)}', space=vmem, size = 0x400, scoped, tag = 'scratch operand']
  %s0 = inlined_call_operand.vmem [shape: f32[2,64,16], index: 0, kind: input, shape index: {}, may-alias: {0,11}]
  %s1 = inlined_call_operand.vmem [shape: bf16[2,16,16], index: 1, kind: input, shape index: {}]
  %s2 = inlined_call_operand.vmem [shape: f32[2,1,16], index: 2, kind: input, shape index: {}]
  %s3 = inlined_call_operand.vmem [shape: bf16[2,72,32], index: 3, kind: input, shape index: {}]
  %s4 = inlined_call_operand.vmem [shape: f32[2,1,32], index: 4, kind: input, shape index: {}]
  %s5 = inlined_call_operand.vmem [shape: bf16[2,32,32], index: 5, kind: input, shape index: {}]
  %s6 = inlined_call_operand.vmem [shape: f32[2,1,32], index: 6, kind: input, shape index: {}]
  %s7 = inlined_call_operand.vmem [shape: bf16[2,288,16], index: 7, kind: input, shape index: {}]
  %s8 = inlined_call_operand.vmem [shape: f32[2,1,16], index: 8, kind: input, shape index: {}]
  %s9 = inlined_call_operand.vmem [shape: bf16[72,16], index: 9, kind: input, shape index: {}]
  %s10 = inlined_call_operand.vmem [shape: f32[1,16], index: 10, kind: input, shape index: {}]
  %s11 = inlined_call_operand.vmem [shape: f32[2,64,16], index: 11, kind: output, shape index: {0}, may-alias: {0,11}]
  %s12 = inlined_call_operand.vmem [shape: f32[2,1,1], index: 12, kind: output, shape index: {1}]
  %s13 = inlined_call_operand.vmem [shape: f32[2,1,1], index: 13, kind: output, shape index: {2}]
  %14 = xla_tuple %s11, %s12, %s13
  %s15 = sld [smem:[#allocation0]]
  $region101: #{glow_block_forward.1} parent=0
    _
  %s17 = ssub.s32 1, %s15
  %s18 = scalar_select 0, %s17, %s15
  loop: start=0, step=1, limit=4
  $region2: #{glow_block_forward.1} parent=0 // loop_pre_header
    _
  $region3: #{glow_block_forward.1} parent=0 // loop_header
    %s20 = sphi 0, %s24
    %p21 = scmp.ge.s32.totalorder %s20, 4
    %s27 = sphi 0, %s39
    %s28 = sphi 0, %s35
    %s29 = sphi 0, %s27
    %s30 = sphi 0, %s28
    %s31 = sphi 0, %s29
    %s32 = sphi 0, %s30
    %s42 = sphi 0, %s44
    %s45 = sphi 0, %s42
    %s46 = sphi 0, %s45
    %s62 = sphi 0, %s46
    %s68 = sphi 0, %s70
    %s71 = sphi 0, %s68
    %s72 = sphi 0, %s71
    %s88 = sphi 0, %s72
    %s94 = sphi 0, %s96
    %s97 = sphi 0, %s94
    %s98 = sphi 0, %s97
    %s114 = sphi 0, %s98
    %s120 = sphi 0, %s122
    %s123 = sphi 0, %s120
    %s124 = sphi 0, %s123
    %s140 = sphi 0, %s124
    %s146 = sphi 0, %s148
    %s149 = sphi 0, %s146
    %s150 = sphi 0, %s149
    %s166 = sphi 0, %s150
    %s172 = sphi 0, %s174
    %s175 = sphi 0, %s172
    %s176 = sphi 0, %s175
    %s192 = sphi 0, %s176
    %s198 = sphi 0, %s200
    %s201 = sphi 0, %s198
    %s202 = sphi 0, %s201
    %s218 = sphi 0, %s202
    %s224 = sphi 0, %s226
    %s227 = sphi 0, %s224
    %s228 = sphi 0, %s227
    %s244 = sphi 0, %s228
    %s250 = sphi 0, %s252
    %s253 = sphi 0, %s250
    %s254 = sphi 0, %s253
    %s270 = sphi 0, %s254
    %s274 = sphi 0, %s274
    %s276 = sphi 0, %s274
    %s277 = sphi 0, %s276
    %s291 = sphi 0, %s277
    %s295 = sphi 0, %s295
    %s297 = sphi 0, %s295
    %s298 = sphi 0, %s297
    %s312 = sphi 0, %s298
    %s318 = sphi 0, %s320
    %s321 = sphi 0, %s318
    %s322 = sphi 0, %s321
    %s338 = sphi 0, %s322
    %s344 = sphi 0, %s346
    %s347 = sphi 0, %s344
    %s348 = sphi 0, %s347
    %s364 = sphi 0, %s348
    %s370 = sphi 0, %s372
    %s373 = sphi 0, %s370
    %s374 = sphi 0, %s373
    %s390 = sphi 0, %s374
  $region4: #{glow_block_forward.1} parent=0 // loop_header_branch
    %23 = sbr.rel (%p21) target = $region8
  $region5: #{glow_block_forward.1} parent=0 // loop_body
    %s25 = ssub.s32 %s20, 1
    %s26 = ssub.s32 %s20, 2
    %s33 = sadd.s32 1, %s28
    %p34 = scmp.ge.s32.totalorder %s33, 2
    %s35 = scalar_select %p34, 0, %s33
    %s36 = sadd.s32 1, %s27
    %s37 = scalar_select %p34, %s36, %s27
    %p38 = scmp.ge.s32.totalorder %s37, 1
    %s39 = scalar_select %p38, 0, %s37
    %s40 = ssub.s32 %s27, %s39
    %p41 = scmp.eq.s32.totalorder %s40, 0
    %s43 = sadd.s32 %s42, 1
    %s44 = scalar_select %p41, %s42, %s43
    %p47 = pneg %p41
    %p48 = scmp.eq.s32.totalorder %s20, 1
    %p49 = por %p47, %p48
    %p50 = scmp.ne.s32.totalorder %s42, %s45
    %p51 = scmp.eq.s32.totalorder %s20, 0
    %p52 = por %p50, %p51
    %p53 = scmp.ne.s32.totalorder %s42, %s45
    %p54 = scmp.eq.s32.totalorder %s25, 1
    %p55 = por %p53, %p54
    %p56 = scmp.ne.s32.totalorder %s45, %s46
    %p57 = scmp.eq.s32.totalorder %s25, 0
    %p58 = por %p56, %p57
    %p59 = scmp.ne.s32.totalorder %s45, %s46
    %p60 = scmp.eq.s32.totalorder %s26, 1
    %p61 = por %p59, %p60
    %p63 = scmp.ne.s32.totalorder %s46, %s62
    %p64 = scmp.eq.s32.totalorder %s26, 0
    %p65 = por %p63, %p64
    %s66 = ssub.s32 %s28, %s35
    %p67 = scmp.eq.s32.totalorder %s66, 0
    %s69 = sadd.s32 %s68, 1
    %s70 = scalar_select %p67, %s68, %s69
    %p73 = pneg %p67
    %p74 = scmp.eq.s32.totalorder %s20, 1
    %p75 = por %p73, %p74
    %p76 = scmp.ne.s32.totalorder %s68, %s71
    %p77 = scmp.eq.s32.totalorder %s20, 0
    %p78 = por %p76, %p77
    %p79 = scmp.ne.s32.totalorder %s68, %s71
    %p80 = scmp.eq.s32.totalorder %s25, 1
    %p81 = por %p79, %p80
    %p82 = scmp.ne.s32.totalorder %s71, %s72
    %p83 = scmp.eq.s32.totalorder %s25, 0
    %p84 = por %p82, %p83
    %p85 = scmp.ne.s32.totalorder %s71, %s72
    %p86 = scmp.eq.s32.totalorder %s26, 1
    %p87 = por %p85, %p86
    %p89 = scmp.ne.s32.totalorder %s72, %s88
    %p90 = scmp.eq.s32.totalorder %s26, 0
    %p91 = por %p89, %p90
    %s92 = ssub.s32 %s28, %s35
    %p93 = scmp.eq.s32.totalorder %s92, 0
    %s95 = sadd.s32 %s94, 1
    %s96 = scalar_select %p93, %s94, %s95
    %p99 = pneg %p93
    %p100 = scmp.eq.s32.totalorder %s20, 1
    %p101 = por %p99, %p100
    %p102 = scmp.ne.s32.totalorder %s94, %s97
    %p103 = scmp.eq.s32.totalorder %s20, 0
    %p104 = por %p102, %p103
    %p105 = scmp.ne.s32.totalorder %s94, %s97
    %p106 = scmp.eq.s32.totalorder %s25, 1
    %p107 = por %p105, %p106
    %p108 = scmp.ne.s32.totalorder %s97, %s98
    %p109 = scmp.eq.s32.totalorder %s25, 0
    %p110 = por %p108, %p109
    %p111 = scmp.ne.s32.totalorder %s97, %s98
    %p112 = scmp.eq.s32.totalorder %s26, 1
    %p113 = por %p111, %p112
    %p115 = scmp.ne.s32.totalorder %s98, %s114
    %p116 = scmp.eq.s32.totalorder %s26, 0
    %p117 = por %p115, %p116
    %s118 = ssub.s32 %s28, %s35
    %p119 = scmp.eq.s32.totalorder %s118, 0
    %s121 = sadd.s32 %s120, 1
    %s122 = scalar_select %p119, %s120, %s121
    %p125 = pneg %p119
    %p126 = scmp.eq.s32.totalorder %s20, 1
    %p127 = por %p125, %p126
    %p128 = scmp.ne.s32.totalorder %s120, %s123
    %p129 = scmp.eq.s32.totalorder %s20, 0
    %p130 = por %p128, %p129
    %p131 = scmp.ne.s32.totalorder %s120, %s123
    %p132 = scmp.eq.s32.totalorder %s25, 1
    %p133 = por %p131, %p132
    %p134 = scmp.ne.s32.totalorder %s123, %s124
    %p135 = scmp.eq.s32.totalorder %s25, 0
    %p136 = por %p134, %p135
    %p137 = scmp.ne.s32.totalorder %s123, %s124
    %p138 = scmp.eq.s32.totalorder %s26, 1
    %p139 = por %p137, %p138
    %p141 = scmp.ne.s32.totalorder %s124, %s140
    %p142 = scmp.eq.s32.totalorder %s26, 0
    %p143 = por %p141, %p142
    %s144 = ssub.s32 %s28, %s35
    %p145 = scmp.eq.s32.totalorder %s144, 0
    %s147 = sadd.s32 %s146, 1
    %s148 = scalar_select %p145, %s146, %s147
    %p151 = pneg %p145
    %p152 = scmp.eq.s32.totalorder %s20, 1
    %p153 = por %p151, %p152
    %p154 = scmp.ne.s32.totalorder %s146, %s149
    %p155 = scmp.eq.s32.totalorder %s20, 0
    %p156 = por %p154, %p155
    %p157 = scmp.ne.s32.totalorder %s146, %s149
    %p158 = scmp.eq.s32.totalorder %s25, 1
    %p159 = por %p157, %p158
    %p160 = scmp.ne.s32.totalorder %s149, %s150
    %p161 = scmp.eq.s32.totalorder %s25, 0
    %p162 = por %p160, %p161
    %p163 = scmp.ne.s32.totalorder %s149, %s150
    %p164 = scmp.eq.s32.totalorder %s26, 1
    %p165 = por %p163, %p164
    %p167 = scmp.ne.s32.totalorder %s150, %s166
    %p168 = scmp.eq.s32.totalorder %s26, 0
    %p169 = por %p167, %p168
    %s170 = ssub.s32 %s28, %s35
    %p171 = scmp.eq.s32.totalorder %s170, 0
    %s173 = sadd.s32 %s172, 1
    %s174 = scalar_select %p171, %s172, %s173
    %p177 = pneg %p171
    %p178 = scmp.eq.s32.totalorder %s20, 1
    %p179 = por %p177, %p178
    %p180 = scmp.ne.s32.totalorder %s172, %s175
    %p181 = scmp.eq.s32.totalorder %s20, 0
    %p182 = por %p180, %p181
    %p183 = scmp.ne.s32.totalorder %s172, %s175
    %p184 = scmp.eq.s32.totalorder %s25, 1
    %p185 = por %p183, %p184
    %p186 = scmp.ne.s32.totalorder %s175, %s176
    %p187 = scmp.eq.s32.totalorder %s25, 0
    %p188 = por %p186, %p187
    %p189 = scmp.ne.s32.totalorder %s175, %s176
    %p190 = scmp.eq.s32.totalorder %s26, 1
    %p191 = por %p189, %p190
    %p193 = scmp.ne.s32.totalorder %s176, %s192
    %p194 = scmp.eq.s32.totalorder %s26, 0
    %p195 = por %p193, %p194
    %s196 = ssub.s32 %s28, %s35
    %p197 = scmp.eq.s32.totalorder %s196, 0
    %s199 = sadd.s32 %s198, 1
    %s200 = scalar_select %p197, %s198, %s199
    %p203 = pneg %p197
    %p204 = scmp.eq.s32.totalorder %s20, 1
    %p205 = por %p203, %p204
    %p206 = scmp.ne.s32.totalorder %s198, %s201
    %p207 = scmp.eq.s32.totalorder %s20, 0
    %p208 = por %p206, %p207
    %p209 = scmp.ne.s32.totalorder %s198, %s201
    %p210 = scmp.eq.s32.totalorder %s25, 1
    %p211 = por %p209, %p210
    %p212 = scmp.ne.s32.totalorder %s201, %s202
    %p213 = scmp.eq.s32.totalorder %s25, 0
    %p214 = por %p212, %p213
    %p215 = scmp.ne.s32.totalorder %s201, %s202
    %p216 = scmp.eq.s32.totalorder %s26, 1
    %p217 = por %p215, %p216
    %p219 = scmp.ne.s32.totalorder %s202, %s218
    %p220 = scmp.eq.s32.totalorder %s26, 0
    %p221 = por %p219, %p220
    %s222 = ssub.s32 %s28, %s35
    %p223 = scmp.eq.s32.totalorder %s222, 0
    %s225 = sadd.s32 %s224, 1
    %s226 = scalar_select %p223, %s224, %s225
    %p229 = pneg %p223
    %p230 = scmp.eq.s32.totalorder %s20, 1
    %p231 = por %p229, %p230
    %p232 = scmp.ne.s32.totalorder %s224, %s227
    %p233 = scmp.eq.s32.totalorder %s20, 0
    %p234 = por %p232, %p233
    %p235 = scmp.ne.s32.totalorder %s224, %s227
    %p236 = scmp.eq.s32.totalorder %s25, 1
    %p237 = por %p235, %p236
    %p238 = scmp.ne.s32.totalorder %s227, %s228
    %p239 = scmp.eq.s32.totalorder %s25, 0
    %p240 = por %p238, %p239
    %p241 = scmp.ne.s32.totalorder %s227, %s228
    %p242 = scmp.eq.s32.totalorder %s26, 1
    %p243 = por %p241, %p242
    %p245 = scmp.ne.s32.totalorder %s228, %s244
    %p246 = scmp.eq.s32.totalorder %s26, 0
    %p247 = por %p245, %p246
    %s248 = ssub.s32 %s28, %s35
    %p249 = scmp.eq.s32.totalorder %s248, 0
    %s251 = sadd.s32 %s250, 1
    %s252 = scalar_select %p249, %s250, %s251
    %p255 = pneg %p249
    %p256 = scmp.eq.s32.totalorder %s20, 1
    %p257 = por %p255, %p256
    %p258 = scmp.ne.s32.totalorder %s250, %s253
    %p259 = scmp.eq.s32.totalorder %s20, 0
    %p260 = por %p258, %p259
    %p261 = scmp.ne.s32.totalorder %s250, %s253
    %p262 = scmp.eq.s32.totalorder %s25, 1
    %p263 = por %p261, %p262
    %p264 = scmp.ne.s32.totalorder %s253, %s254
    %p265 = scmp.eq.s32.totalorder %s25, 0
    %p266 = por %p264, %p265
    %p267 = scmp.ne.s32.totalorder %s253, %s254
    %p268 = scmp.eq.s32.totalorder %s26, 1
    %p269 = por %p267, %p268
    %p271 = scmp.ne.s32.totalorder %s254, %s270
    %p272 = scmp.eq.s32.totalorder %s26, 0
    %p273 = por %p271, %p272
    %s275 = sadd.s32 %s274, 1
    %p278 = scmp.eq.s32.totalorder %s20, 1
    %p279 = scmp.ne.s32.totalorder %s274, %s276
    %p280 = scmp.eq.s32.totalorder %s20, 0
    %p281 = por %p279, %p280
    %p282 = scmp.ne.s32.totalorder %s274, %s276
    %p283 = scmp.eq.s32.totalorder %s25, 1
    %p284 = por %p282, %p283
    %p285 = scmp.ne.s32.totalorder %s276, %s277
    %p286 = scmp.eq.s32.totalorder %s25, 0
    %p287 = por %p285, %p286
    %p288 = scmp.ne.s32.totalorder %s276, %s277
    %p289 = scmp.eq.s32.totalorder %s26, 1
    %p290 = por %p288, %p289
    %p292 = scmp.ne.s32.totalorder %s277, %s291
    %p293 = scmp.eq.s32.totalorder %s26, 0
    %p294 = por %p292, %p293
    %s296 = sadd.s32 %s295, 1
    %p299 = scmp.eq.s32.totalorder %s20, 1
    %p300 = scmp.ne.s32.totalorder %s295, %s297
    %p301 = scmp.eq.s32.totalorder %s20, 0
    %p302 = por %p300, %p301
    %p303 = scmp.ne.s32.totalorder %s295, %s297
    %p304 = scmp.eq.s32.totalorder %s25, 1
    %p305 = por %p303, %p304
    %p306 = scmp.ne.s32.totalorder %s297, %s298
    %p307 = scmp.eq.s32.totalorder %s25, 0
    %p308 = por %p306, %p307
    %p309 = scmp.ne.s32.totalorder %s297, %s298
    %p310 = scmp.eq.s32.totalorder %s26, 1
    %p311 = por %p309, %p310
    %p313 = scmp.ne.s32.totalorder %s298, %s312
    %p314 = scmp.eq.s32.totalorder %s26, 0
    %p315 = por %p313, %p314
    %s316 = ssub.s32 %s27, %s39
    %p317 = scmp.eq.s32.totalorder %s316, 0
    %s319 = sadd.s32 %s318, 1
    %s320 = scalar_select %p317, %s318, %s319
    %p323 = pneg %p317
    %p324 = scmp.eq.s32.totalorder %s20, 1
    %p325 = por %p323, %p324
    %p326 = scmp.ne.s32.totalorder %s318, %s321
    %p327 = scmp.eq.s32.totalorder %s20, 0
    %p328 = por %p326, %p327
    %p329 = scmp.ne.s32.totalorder %s318, %s321
    %p330 = scmp.eq.s32.totalorder %s25, 1
    %p331 = por %p329, %p330
    %p332 = scmp.ne.s32.totalorder %s321, %s322
    %p333 = scmp.eq.s32.totalorder %s25, 0
    %p334 = por %p332, %p333
    %p335 = scmp.ne.s32.totalorder %s321, %s322
    %p336 = scmp.eq.s32.totalorder %s26, 1
    %p337 = por %p335, %p336
    %p339 = scmp.ne.s32.totalorder %s322, %s338
    %p340 = scmp.eq.s32.totalorder %s26, 0
    %p341 = por %p339, %p340
    %s342 = ssub.s32 %s27, %s39
    %p343 = scmp.eq.s32.totalorder %s342, 0
    %s345 = sadd.s32 %s344, 1
    %s346 = scalar_select %p343, %s344, %s345
    %p349 = pneg %p343
    %p350 = scmp.eq.s32.totalorder %s20, 1
    %p351 = por %p349, %p350
    %p352 = scmp.ne.s32.totalorder %s344, %s347
    %p353 = scmp.eq.s32.totalorder %s20, 0
    %p354 = por %p352, %p353
    %p355 = scmp.ne.s32.totalorder %s344, %s347
    %p356 = scmp.eq.s32.totalorder %s25, 1
    %p357 = por %p355, %p356
    %p358 = scmp.ne.s32.totalorder %s347, %s348
    %p359 = scmp.eq.s32.totalorder %s25, 0
    %p360 = por %p358, %p359
    %p361 = scmp.ne.s32.totalorder %s347, %s348
    %p362 = scmp.eq.s32.totalorder %s26, 1
    %p363 = por %p361, %p362
    %p365 = scmp.ne.s32.totalorder %s348, %s364
    %p366 = scmp.eq.s32.totalorder %s26, 0
    %p367 = por %p365, %p366
    %s368 = ssub.s32 %s27, %s39
    %p369 = scmp.eq.s32.totalorder %s368, 0
    %s371 = sadd.s32 %s370, 1
    %s372 = scalar_select %p369, %s370, %s371
    %p375 = pneg %p369
    %p376 = scmp.eq.s32.totalorder %s20, 1
    %p377 = por %p375, %p376
    %p378 = scmp.ne.s32.totalorder %s370, %s373
    %p379 = scmp.eq.s32.totalorder %s20, 0
    %p380 = por %p378, %p379
    %p381 = scmp.ne.s32.totalorder %s370, %s373
    %p382 = scmp.eq.s32.totalorder %s25, 1
    %p383 = por %p381, %p382
    %p384 = scmp.ne.s32.totalorder %s373, %s374
    %p385 = scmp.eq.s32.totalorder %s25, 0
    %p386 = por %p384, %p385
    %p387 = scmp.ne.s32.totalorder %s373, %s374
    %p388 = scmp.eq.s32.totalorder %s26, 1
    %p389 = por %p387, %p388
    %p391 = scmp.ne.s32.totalorder %s374, %s390
    %p392 = scmp.eq.s32.totalorder %s26, 0
    %p393 = por %p391, %p392
    %p394 = scmp.le.s32.totalorder 1, %s20
    %p395 = scmp.lt.s32.totalorder %s20, 3
    %p396 = pnand %p394, %p395
    %p397 = pneg %p396
    // Predicated region
    $region9: #{glow_block_forward.1} parent=5 // pred_check
      _
    $region10: #{glow_block_forward.1} parent=5 // pred_check_branch
      %399 = sbr.rel (%p396) target = $region12
    $region11: #{glow_block_forward.1} parent=5 // pred_region
      %s400 = ssub.s32 %s20, 1
      // Predicated region
      $region13: #{glow_block_forward.1} parent=11 // pred_check
        %p401 = pneg %p58
      $region14: #{glow_block_forward.1} parent=11 // pred_check_branch
        %403 = sbr.rel (%p401) target = $region16
      $region15: #{glow_block_forward.1} parent=11 // pred_region
        %s404 = smul.u32 2, %s29
        %p405 = scmp.lt.s32.totalorder %s404, 1
        %s406 = scalar_select %p405, %s404, 1
        %s407 = smul.addr %s406, 8
        %s408 = smul.addr %s407, 8
        %s409 = scalar_lea.vmem %s0, %s408
        %s410 = smul.u32 2, %s29
      $region16: #{glow_block_forward.1} parent=11 // pred_fallthru
        _
      // Predicated region
      $region17: #{glow_block_forward.1} parent=11 // pred_check
        %p411 = pneg %p287
      $region18: #{glow_block_forward.1} parent=11 // pred_check_branch
        %413 = sbr.rel (%p411) target = $region20
      $region19: #{glow_block_forward.1} parent=11 // pred_region
        _
      $region20: #{glow_block_forward.1} parent=11 // pred_fallthru
        _
      // Predicated region
      $region21: #{glow_block_forward.1} parent=11 // pred_check
        %p414 = pneg %p308
      $region22: #{glow_block_forward.1} parent=11 // pred_check_branch
        %416 = sbr.rel (%p414) target = $region24
      $region23: #{glow_block_forward.1} parent=11 // pred_region
        _
      $region24: #{glow_block_forward.1} parent=11 // pred_fallthru
        _
    $region12: #{glow_block_forward.1} parent=5 // pred_fallthru
      _
    %p417 = scmp.lt.s32.totalorder %s20, 2
    // Predicated region
    $region25: #{glow_block_forward.1} parent=5 // pred_check
      %p418 = pneg %p417
    $region26: #{glow_block_forward.1} parent=5 // pred_check_branch
      %420 = sbr.rel (%p418) target = $region28
    $region27: #{glow_block_forward.1} parent=5 // pred_region
      // Predicated region
      $region29: #{glow_block_forward.1} parent=27 // pred_check
        %p421 = pneg %p78
      $region30: #{glow_block_forward.1} parent=27 // pred_check_branch
        %423 = sbr.rel (%p421) target = $region32
      $region31: #{glow_block_forward.1} parent=27 // pred_region
        %p424 = scmp.lt.s32.totalorder %s28, 1
        %s425 = scalar_select %p424, %s28, 1
        %s426 = smul.addr %s425, 2
        %s427 = smul.addr %s426, 4
        %s428 = scalar_lea.vmem %s1, %s427
      $region32: #{glow_block_forward.1} parent=27 // pred_fallthru
        _
      // Predicated region
      $region33: #{glow_block_forward.1} parent=27 // pred_check
        %p429 = pneg %p104
      $region34: #{glow_block_forward.1} parent=27 // pred_check_branch
        %431 = sbr.rel (%p429) target = $region36
      $region35: #{glow_block_forward.1} parent=27 // pred_region
        %p432 = scmp.lt.s32.totalorder %s28, 1
        %s433 = scalar_select %p432, %s28, 1
        %s434 = scalar_lea.vmem %s2, %s433
      $region36: #{glow_block_forward.1} parent=27 // pred_fallthru
        _
      // Predicated region
      $region37: #{glow_block_forward.1} parent=27 // pred_check
        %p435 = pneg %p130
      $region38: #{glow_block_forward.1} parent=27 // pred_check_branch
        %437 = sbr.rel (%p435) target = $region40
      $region39: #{glow_block_forward.1} parent=27 // pred_region
        %p438 = scmp.lt.s32.totalorder %s28, 1
        %s439 = scalar_select %p438, %s28, 1
        %s440 = smul.addr %s439, 9
        %s441 = smul.addr %s440, 4
        %s442 = scalar_lea.vmem %s3, %s441
      $region40: #{glow_block_forward.1} parent=27 // pred_fallthru
        _
      // Predicated region
      $region41: #{glow_block_forward.1} parent=27 // pred_check
        %p443 = pneg %p156
      $region42: #{glow_block_forward.1} parent=27 // pred_check_branch
        %445 = sbr.rel (%p443) target = $region44
      $region43: #{glow_block_forward.1} parent=27 // pred_region
        %p446 = scmp.lt.s32.totalorder %s28, 1
        %s447 = scalar_select %p446, %s28, 1
        %s448 = scalar_lea.vmem %s4, %s447
      $region44: #{glow_block_forward.1} parent=27 // pred_fallthru
        _
      // Predicated region
      $region45: #{glow_block_forward.1} parent=27 // pred_check
        %p449 = pneg %p182
      $region46: #{glow_block_forward.1} parent=27 // pred_check_branch
        %451 = sbr.rel (%p449) target = $region48
      $region47: #{glow_block_forward.1} parent=27 // pred_region
        %p452 = scmp.lt.s32.totalorder %s28, 1
        %s453 = scalar_select %p452, %s28, 1
        %s454 = smul.addr %s453, 4
        %s455 = smul.addr %s454, 4
        %s456 = scalar_lea.vmem %s5, %s455
      $region48: #{glow_block_forward.1} parent=27 // pred_fallthru
        _
      // Predicated region
      $region49: #{glow_block_forward.1} parent=27 // pred_check
        %p457 = pneg %p208
      $region50: #{glow_block_forward.1} parent=27 // pred_check_branch
        %459 = sbr.rel (%p457) target = $region52
      $region51: #{glow_block_forward.1} parent=27 // pred_region
        %p460 = scmp.lt.s32.totalorder %s28, 1
        %s461 = scalar_select %p460, %s28, 1
        %s462 = scalar_lea.vmem %s6, %s461
      $region52: #{glow_block_forward.1} parent=27 // pred_fallthru
        _
      // Predicated region
      $region53: #{glow_block_forward.1} parent=27 // pred_check
        %p463 = pneg %p234
      $region54: #{glow_block_forward.1} parent=27 // pred_check_branch
        %465 = sbr.rel (%p463) target = $region56
      $region55: #{glow_block_forward.1} parent=27 // pred_region
        %p466 = scmp.lt.s32.totalorder %s28, 1
        %s467 = scalar_select %p466, %s28, 1
        %s468 = smul.addr %s467, 36
        %s469 = smul.addr %s468, 4
        %s470 = scalar_lea.vmem %s7, %s469
      $region56: #{glow_block_forward.1} parent=27 // pred_fallthru
        _
      // Predicated region
      $region57: #{glow_block_forward.1} parent=27 // pred_check
        %p471 = pneg %p260
      $region58: #{glow_block_forward.1} parent=27 // pred_check_branch
        %473 = sbr.rel (%p471) target = $region60
      $region59: #{glow_block_forward.1} parent=27 // pred_region
        %p474 = scmp.lt.s32.totalorder %s28, 1
        %s475 = scalar_select %p474, %s28, 1
        %s476 = scalar_lea.vmem %s8, %s475
      $region60: #{glow_block_forward.1} parent=27 // pred_fallthru
        _
    $region28: #{glow_block_forward.1} parent=5 // pred_fallthru
      _
    %p477 = scmp.le.s32.totalorder 1, %s20
    %p478 = scmp.lt.s32.totalorder %s20, 3
    %p479 = pnand %p477, %p478
    %p480 = pneg %p479
    // Predicated region
    $region61: #{glow_block_forward.1} parent=5 // pred_check
      _
    $region62: #{glow_block_forward.1} parent=5 // pred_check_branch
      %482 = sbr.rel (%p479) target = $region64
    $region63: #{glow_block_forward.1} parent=5 // pred_region
      %s483 = ssub.s32 %s20, 1
      %s484 = smul.u32 2, %s29
      %p485 = scmp.lt.s32.totalorder %s484, 1
      %s486 = scalar_select %p485, %s484, 1
      %s487 = smul.addr %s486, 8
      %s488 = smul.addr %s487, 8
      %s489 = scalar_lea.vmem %s0, %s488
      %p490 = pneg %p58
      %p491 = pneg %p55
      %p492 = scmp.lt.s32.totalorder %s30, 1
      %s493 = scalar_select %p492, %s30, 1
      %s494 = smul.addr %s493, 2
      %s495 = smul.addr %s494, 4
      %s496 = scalar_lea.vmem %s1, %s495
      %p497 = pneg %p84
      %p498 = pneg %p81
      %p499 = scmp.lt.s32.totalorder %s30, 1
      %s500 = scalar_select %p499, %s30, 1
      %s501 = scalar_lea.vmem %s2, %s500
      %p502 = pneg %p110
      %p503 = pneg %p107
      %p504 = scmp.lt.s32.totalorder %s30, 1
      %s505 = scalar_select %p504, %s30, 1
      %s506 = smul.addr %s505, 9
      %s507 = smul.addr %s506, 4
      %s508 = scalar_lea.vmem %s3, %s507
      %p509 = pneg %p136
      %p510 = pneg %p133
      %p511 = scmp.lt.s32.totalorder %s30, 1
      %s512 = scalar_select %p511, %s30, 1
      %s513 = scalar_lea.vmem %s4, %s512
      %p514 = pneg %p162
      %p515 = pneg %p159
      %p516 = scmp.lt.s32.totalorder %s30, 1
      %s517 = scalar_select %p516, %s30, 1
      %s518 = smul.addr %s517, 4
      %s519 = smul.addr %s518, 4
      %s520 = scalar_lea.vmem %s5, %s519
      %p521 = pneg %p188
      %p522 = pneg %p185
      %p523 = scmp.lt.s32.totalorder %s30, 1
      %s524 = scalar_select %p523, %s30, 1
      %s525 = scalar_lea.vmem %s6, %s524
      %p526 = pneg %p214
      %p527 = pneg %p211
      %p528 = scmp.lt.s32.totalorder %s30, 1
      %s529 = scalar_select %p528, %s30, 1
      %s530 = smul.addr %s529, 36
      %s531 = smul.addr %s530, 4
      %s532 = scalar_lea.vmem %s7, %s531
      %p533 = pneg %p240
      %p534 = pneg %p237
      %p535 = scmp.lt.s32.totalorder %s30, 1
      %s536 = scalar_select %p535, %s30, 1
      %s537 = scalar_lea.vmem %s8, %s536
      %p538 = pneg %p266
      %p539 = pneg %p263
      %p540 = pneg %p287
      %p541 = pneg %p284
      %p542 = pneg %p308
      %p543 = pneg %p305
      %p544 = pneg %p334
      %p545 = pneg %p331
      %s546 = smul.u32 2, %s29
      %p547 = scmp.lt.s32.totalorder %s546, 1
      %s548 = scalar_select %p547, %s546, 1
      %s549 = smul.addr %s548, 8
      %s550 = smul.addr %s549, 8
      %s551 = scalar_lea.vmem %s11, %s550
      %p552 = pneg %p360
      %p553 = pneg %p357
      %s554 = smul.u32 2, %s29
      %p555 = scmp.lt.s32.totalorder %s554, 1
      %s556 = scalar_select %p555, %s554, 1
      %s557 = scalar_lea.vmem %s12, %s556
      %p558 = pneg %p386
      %p559 = pneg %p383
      %s560 = smul.u32 2, %s29
      %p561 = scmp.lt.s32.totalorder %s560, 1
      %s562 = scalar_select %p561, %s560, 1
      %s563 = scalar_lea.vmem %s13, %s562
      %s564 = smul.u32 2, %s29
      %p565 = scmp.lt.s32.totalorder %s564, 1
      %s566 = scalar_select %p565, %s564, 1
      %s567 = smul.addr %s566, 8
      %s568 = smul.addr %s567, 8
      %s569 = scalar_lea.vmem %s0, %s568
      %s570 = smul.u32 2, %s29
      %p571 = scmp.lt.s32.totalorder %s30, 1
      %s572 = scalar_select %p571, %s30, 1
      %s573 = smul.addr %s572, 2
      %s574 = smul.addr %s573, 4
      %s575 = scalar_lea.vmem %s1, %s574
      %p576 = scmp.lt.s32.totalorder %s30, 1
      %s577 = scalar_select %p576, %s30, 1
      %s578 = scalar_lea.vmem %s2, %s577
      %p579 = scmp.lt.s32.totalorder %s30, 1
      %s580 = scalar_select %p579, %s30, 1
      %s581 = smul.addr %s580, 9
      %s582 = smul.addr %s581, 4
      %s583 = scalar_lea.vmem %s3, %s582
      %p584 = scmp.lt.s32.totalorder %s30, 1
      %s585 = scalar_select %p584, %s30, 1
      %s586 = scalar_lea.vmem %s4, %s585
      %p587 = scmp.lt.s32.totalorder %s30, 1
      %s588 = scalar_select %p587, %s30, 1
      %s589 = smul.addr %s588, 4
      %s590 = smul.addr %s589, 4
      %s591 = scalar_lea.vmem %s5, %s590
      %p592 = scmp.lt.s32.totalorder %s30, 1
      %s593 = scalar_select %p592, %s30, 1
      %s594 = scalar_lea.vmem %s6, %s593
      %p595 = scmp.lt.s32.totalorder %s30, 1
      %s596 = scalar_select %p595, %s30, 1
      %s597 = smul.addr %s596, 36
      %s598 = smul.addr %s597, 4
      %s599 = scalar_lea.vmem %s7, %s598
      %p600 = scmp.lt.s32.totalorder %s30, 1
      %s601 = scalar_select %p600, %s30, 1
      %s602 = scalar_lea.vmem %s8, %s601
      %s603 = smul.u32 2, %s29
      %p604 = scmp.lt.s32.totalorder %s603, 1
      %s605 = scalar_select %p604, %s603, 1
      %s606 = smul.addr %s605, 8
      %s607 = smul.addr %s606, 8
      %s608 = scalar_lea.vmem %s11, %s607
      %s609 = smul.u32 2, %s29
      %s610 = smul.u32 2, %s29
      %p611 = scmp.lt.s32.totalorder %s610, 1
      %s612 = scalar_select %p611, %s610, 1
      %s613 = scalar_lea.vmem %s12, %s612
      %s614 = smul.u32 2, %s29
      %s615 = smul.u32 2, %s29
      %p616 = scmp.lt.s32.totalorder %s615, 1
      %s617 = scalar_select %p616, %s615, 1
      %s618 = scalar_lea.vmem %s13, %s617
      %s619 = smul.u32 2, %s29
      %p621 = scmp.eq.s32.totalorder %s30, 0
      // Predicated region
      $region65: #{glow_block_forward.1} parent=63 // pred_check
        %p622 = pneg %p621
      $region66: #{glow_block_forward.1} parent=63 // pred_check_branch
        %624 = sbr.rel (%p622) target = $region68
      $region67: #{glow_block_forward.1} parent=63 // pred_region
        %v625 = vld [vmem:[%s569] sm:$0xff]
        %v626 = vld [vmem:[%s569 + $0x8] sm:$0xff]
        %v627 = vld [vmem:[%s569 + $0x10] sm:$0xff]
        %v628 = vld [vmem:[%s569 + $0x18] sm:$0xff]
        %v629 = vld [vmem:[%s569 + $0x20] sm:$0xff]
        %v630 = vld [vmem:[%s569 + $0x28] sm:$0xff]
        %v631 = vld [vmem:[%s569 + $0x30] sm:$0xff]
        %v632 = vld [vmem:[%s569 + $0x38] sm:$0xff]
        %v633 = vld [vmem:[%s569 + $0x40] sm:$0xff]
        %v634 = vld [vmem:[%s569 + $0x48] sm:$0xff]
        %v635 = vld [vmem:[%s569 + $0x50] sm:$0xff]
        %v636 = vld [vmem:[%s569 + $0x58] sm:$0xff]
        %v637 = vld [vmem:[%s569 + $0x60] sm:$0xff]
        %v638 = vld [vmem:[%s569 + $0x68] sm:$0xff]
        %v639 = vld [vmem:[%s569 + $0x70] sm:$0xff]
        %v640 = vld [vmem:[%s569 + $0x78] sm:$0xff]
        %vm641 = vcmask 130048
        %642 = vst.msk [vmem:[%s608] sm:$0xff] %vm641, %v625
        %643 = vst.msk [vmem:[%s608 + $0x8] sm:$0xff] %vm641, %v626
        %644 = vst.msk [vmem:[%s608 + $0x10] sm:$0xff] %vm641, %v627
        %645 = vst.msk [vmem:[%s608 + $0x18] sm:$0xff] %vm641, %v628
        %646 = vst.msk [vmem:[%s608 + $0x20] sm:$0xff] %vm641, %v629
        %647 = vst.msk [vmem:[%s608 + $0x28] sm:$0xff] %vm641, %v630
        %648 = vst.msk [vmem:[%s608 + $0x30] sm:$0xff] %vm641, %v631
        %649 = vst.msk [vmem:[%s608 + $0x38] sm:$0xff] %vm641, %v632
        %650 = vst.msk [vmem:[%s608 + $0x40] sm:$0xff] %vm641, %v633
        %651 = vst.msk [vmem:[%s608 + $0x48] sm:$0xff] %vm641, %v634
        %652 = vst.msk [vmem:[%s608 + $0x50] sm:$0xff] %vm641, %v635
        %653 = vst.msk [vmem:[%s608 + $0x58] sm:$0xff] %vm641, %v636
        %654 = vst.msk [vmem:[%s608 + $0x60] sm:$0xff] %vm641, %v637
        %655 = vst.msk [vmem:[%s608 + $0x68] sm:$0xff] %vm641, %v638
        %656 = vst.msk [vmem:[%s608 + $0x70] sm:$0xff] %vm641, %v639
        %657 = vst.msk [vmem:[%s608 + $0x78] sm:$0xff] %vm641, %v640
        %vm658 = vcmask 0
        %659 = vst.msk [vmem:[#allocation2] sm:$0x1] %vm658, 0.0
        %660 = vst.msk [vmem:[#allocation2 + $0x1] sm:$0x1] %vm658, 0.0
      $region68: #{glow_block_forward.1} parent=63 // pred_fallthru
        _
      %v661 = vld [vmem:[%s608] sm:$0xff]
      %v662 = vld [vmem:[%s608 + $0x8] sm:$0xff]
      %v663 = vld [vmem:[%s608 + $0x10] sm:$0xff]
      %v664 = vld [vmem:[%s608 + $0x18] sm:$0xff]
      %v665 = vld [vmem:[%s608 + $0x20] sm:$0xff]
      %v666 = vld [vmem:[%s608 + $0x28] sm:$0xff]
      %v667 = vld [vmem:[%s608 + $0x30] sm:$0xff]
      %v668 = vld [vmem:[%s608 + $0x38] sm:$0xff]
      %v669 = vld [vmem:[%s608 + $0x40] sm:$0xff]
      %v670 = vld [vmem:[%s608 + $0x48] sm:$0xff]
      %v671 = vld [vmem:[%s608 + $0x50] sm:$0xff]
      %v672 = vld [vmem:[%s608 + $0x58] sm:$0xff]
      %v673 = vld [vmem:[%s608 + $0x60] sm:$0xff]
      %v674 = vld [vmem:[%s608 + $0x68] sm:$0xff]
      %v675 = vld [vmem:[%s608 + $0x70] sm:$0xff]
      %v676 = vld [vmem:[%s608 + $0x78] sm:$0xff]
      %v677 = vpack.c.bf16 %v662, %v661
      %v678 = vpack.c.bf16 %v664, %v663
      %v679 = vpack.c.bf16 %v666, %v665
      %v680 = vpack.c.bf16 %v668, %v667
      %v681 = vpack.c.bf16 %v670, %v669
      %v682 = vpack.c.bf16 %v672, %v671
      %v683 = vpack.c.bf16 %v674, %v673
      %v684 = vpack.c.bf16 %v676, %v675
      %v685 = vld [vmem:[%s575] sm:$0xf]
      %v686 = vld [vmem:[%s575 + $0x4] sm:$0xf]
      %v687 = vld [vmem:[%s578] sm:$0x1]
      %v689 = vperm.slane %v687, 0
      %v693 = vunpack.c.l.b16 %v685
      %v694 = vunpack.c.l.b16 %v686
      %v695 = vpack.c.b16 %v694, %v693
      %vm697 = vcmask 130048
      %v699 = vsel %vm697, %v677, 0
      %v702 = vsel %vm697, %v678, 0
      %v705 = vsel %vm697, %v679, 0
      %v708 = vsel %vm697, %v680, 0
      %v711 = vsel %vm697, %v681, 0
      %v714 = vsel %vm697, %v682, 0
      %v717 = vsel %vm697, %v683, 0
      %v720 = vsel %vm697, %v684, 0
      %722 = vmatpush.bf16.msra.mxu0 0
      %723 = vmatpush.bf16.msra.mxu0 0
      %724 = vmatpush.bf16.msra.mxu0 0
      %725 = vmatpush.bf16.msra.mxu0 0
      %726 = vmatpush.bf16.msra.mxu0 0
      %727 = vmatpush.bf16.msra.mxu0 0
      %728 = vmatpush.bf16.msra.mxu0 0
      %729 = vmatpush.bf16.msra.mxu0 %v695
      %730 = vmatmul.bf16.gmra.mxu0 %v699
      %v731 = vpop.f32.mrf.mxu0
      %v732 = vadd.f32 %v689, %v731
      %v733 = vpop.f32.mrf.mxu0
      %v734 = vadd.f32 %v689, %v733
      %735 = vmatmul.bf16.gmra.mxu0 %v702
      %v736 = vpop.f32.mrf.mxu0
      %v737 = vadd.f32 %v689, %v736
      %v738 = vpop.f32.mrf.mxu0
      %v739 = vadd.f32 %v689, %v738
      %740 = vmatmul.bf16.gmra.mxu0 %v705
      %v741 = vpop.f32.mrf.mxu0
      %v742 = vadd.f32 %v689, %v741
      %v743 = vpop.f32.mrf.mxu0
      %v744 = vadd.f32 %v689, %v743
      %745 = vmatmul.bf16.gmra.mxu0 %v708
      %v746 = vpop.f32.mrf.mxu0
      %v747 = vadd.f32 %v689, %v746
      %v748 = vpop.f32.mrf.mxu0
      %v749 = vadd.f32 %v689, %v748
      %750 = vmatmul.bf16.gmra.mxu0 %v711
      %v751 = vpop.f32.mrf.mxu0
      %v752 = vadd.f32 %v689, %v751
      %v753 = vpop.f32.mrf.mxu0
      %v754 = vadd.f32 %v689, %v753
      %755 = vmatmul.bf16.gmra.mxu0 %v714
      %v756 = vpop.f32.mrf.mxu0
      %v757 = vadd.f32 %v689, %v756
      %v758 = vpop.f32.mrf.mxu0
      %v759 = vadd.f32 %v689, %v758
      %760 = vmatmul.bf16.gmra.mxu0 %v717
      %v761 = vpop.f32.mrf.mxu0
      %v762 = vadd.f32 %v689, %v761
      %v763 = vpop.f32.mrf.mxu0
      %v764 = vadd.f32 %v689, %v763
      %765 = vmatmul.bf16.gmra.mxu0 %v720
      %v766 = vpop.f32.mrf.mxu0
      %v767 = vadd.f32 %v689, %v766
      %v768 = vpop.f32.mrf.mxu0
      %v769 = vadd.f32 %v689, %v768
      %770 = vdwg.mxu0
      %v771 = vlaneseq
      %v772 = vshrl.u32 %v771, 7
      %vm773 = vcmp.ge.s32.totalorder %v772, 1
      %vm774 = vcmp.le.s32.totalorder %v772, 6
      %v775 = vrot.slane %v732, 7
      %v776 = vrot.slane %v734, 7
      %v777 = vrot.slane %v737, 7
      %v778 = vrot.slane %v739, 7
      %v779 = vrot.slane %v742, 7
      %v780 = vrot.slane %v744, 7
      %v781 = vrot.slane %v747, 7
      %v782 = vrot.slane %v752, 7
      %v783 = vrot.slane %v754, 7
      %v784 = vrot.slane %v757, 7
      %v785 = vrot.slane %v759, 7
      %v786 = vrot.slane %v762, 7
      %v787 = vrot.slane %v764, 7
      %v788 = vrot.slane %v767, 7
      %v789 = vsel %vm773, 0.0, 0.0
      %v790 = vsel %vm773, %v775, 0.0
      %v791 = vsel %vm773, %v776, 0.0
      %v792 = vsel %vm773, %v777, 0.0
      %v793 = vsel %vm773, %v778, 0.0
      %v794 = vsel %vm773, %v779, 0.0
      %v795 = vsel %vm773, %v780, 0.0
      %v796 = vsel %vm773, %v781, 0.0
      %v797 = vsel %vm773, %v782, 0.0
      %v798 = vsel %vm773, %v783, 0.0
      %v799 = vsel %vm773, %v784, 0.0
      %v800 = vsel %vm773, %v785, 0.0
      %v801 = vsel %vm773, %v786, 0.0
      %v802 = vsel %vm773, %v787, 0.0
      %v803 = vsel %vm773, %v788, 0.0
      %v804 = vpack.c.bf16 %v789, %v789
      %v805 = vpack.c.bf16 %v790, %v790
      %v806 = vpack.c.bf16 %v791, %v791
      %v807 = vpack.c.bf16 %v792, %v792
      %v808 = vpack.c.bf16 %v793, %v793
      %v809 = vpack.c.bf16 %v794, %v794
      %v810 = vpack.c.bf16 %v795, %v795
      %v811 = vpack.c.bf16 %v796, %v796
      %v812 = vpack.c.bf16 %v797, %v797
      %v813 = vpack.c.bf16 %v798, %v798
      %v814 = vpack.c.bf16 %v799, %v799
      %v815 = vpack.c.bf16 %v800, %v800
      %v816 = vpack.c.bf16 %v801, %v801
      %v817 = vpack.c.bf16 %v802, %v802
      %v818 = vpack.c.bf16 %v803, %v803
      %v819 = vpack.c.bf16 0.0, 0.0
      %v820 = vpack.c.bf16 %v732, %v732
      %v821 = vpack.c.bf16 %v734, %v734
      %v822 = vpack.c.bf16 %v737, %v737
      %v823 = vpack.c.bf16 %v739, %v739
      %v824 = vpack.c.bf16 %v742, %v742
      %v825 = vpack.c.bf16 %v744, %v744
      %v826 = vpack.c.bf16 %v747, %v747
      %v827 = vpack.c.bf16 %v752, %v752
      %v828 = vpack.c.bf16 %v754, %v754
      %v829 = vpack.c.bf16 %v757, %v757
      %v830 = vpack.c.bf16 %v759, %v759
      %v831 = vpack.c.bf16 %v762, %v762
      %v832 = vpack.c.bf16 %v764, %v764
      %v833 = vpack.c.bf16 %v767, %v767
      %v834 = vrot.slane %v732, 1
      %v835 = vrot.slane %v734, 1
      %v836 = vrot.slane %v737, 1
      %v837 = vrot.slane %v739, 1
      %v838 = vrot.slane %v742, 1
      %v839 = vrot.slane %v744, 1
      %v840 = vrot.slane %v747, 1
      %v841 = vrot.slane %v752, 1
      %v842 = vrot.slane %v754, 1
      %v843 = vrot.slane %v757, 1
      %v844 = vrot.slane %v759, 1
      %v845 = vrot.slane %v762, 1
      %v846 = vrot.slane %v764, 1
      %v847 = vrot.slane %v767, 1
      %v848 = vsel %vm774, 0.0, 0.0
      %v849 = vsel %vm774, %v834, 0.0
      %v850 = vsel %vm774, %v835, 0.0
      %v851 = vsel %vm774, %v836, 0.0
      %v852 = vsel %vm774, %v837, 0.0
      %v853 = vsel %vm774, %v838, 0.0
      %v854 = vsel %vm774, %v839, 0.0
      %v855 = vsel %vm774, %v840, 0.0
      %v856 = vsel %vm774, %v841, 0.0
      %v857 = vsel %vm774, %v842, 0.0
      %v858 = vsel %vm774, %v843, 0.0
      %v859 = vsel %vm774, %v844, 0.0
      %v860 = vsel %vm774, %v845, 0.0
      %v861 = vsel %vm774, %v846, 0.0
      %v862 = vsel %vm774, %v847, 0.0
      %v863 = vpack.c.bf16 %v848, %v848
      %v864 = vpack.c.bf16 %v849, %v849
      %v865 = vpack.c.bf16 %v850, %v850
      %v866 = vpack.c.bf16 %v851, %v851
      %v867 = vpack.c.bf16 %v852, %v852
      %v868 = vpack.c.bf16 %v853, %v853
      %v869 = vpack.c.bf16 %v854, %v854
      %v870 = vpack.c.bf16 %v855, %v855
      %v871 = vpack.c.bf16 %v856, %v856
      %v872 = vpack.c.bf16 %v857, %v857
      %v873 = vpack.c.bf16 %v858, %v858
      %v874 = vpack.c.bf16 %v859, %v859
      %v875 = vpack.c.bf16 %v860, %v860
      %v876 = vpack.c.bf16 %v861, %v861
      %v877 = vpack.c.bf16 %v862, %v862
      %v878 = vrot.slane %v749, 7
      %v879 = vrot.slane %v769, 7
      %v880 = vsel %vm773, %v878, 0.0
      %v881 = vsel %vm773, %v879, 0.0
      %v882 = vpack.c.bf16 %v880, %v880
      %v883 = vpack.c.bf16 %v881, %v881
      %v884 = vpack.c.bf16 %v749, %v749
      %v885 = vpack.c.bf16 %v769, %v769
      %v886 = vrot.slane %v749, 1
      %v887 = vrot.slane %v769, 1
      %v888 = vsel %vm774, %v886, 0.0
      %v889 = vsel %vm774, %v887, 0.0
      %v890 = vpack.c.bf16 %v888, %v888
      %v891 = vpack.c.bf16 %v889, %v889
      %v907 = vunpack.c.l.b16 %v819
      %v908 = vunpack.c.l.b16 %v820
      %v909 = vunpack.c.l.b16 %v821
      %v910 = vunpack.c.l.b16 %v822
      %v911 = vunpack.c.l.b16 %v823
      %v912 = vunpack.c.l.b16 %v824
      %v913 = vunpack.c.l.b16 %v825
      %v914 = vunpack.c.l.b16 %v826
      %v915 = vunpack.c.l.b16 %v827
      %v916 = vunpack.c.l.b16 %v828
      %v917 = vunpack.c.l.b16 %v829
      %v918 = vunpack.c.l.b16 %v830
      %v919 = vunpack.c.l.b16 %v831
      %v920 = vunpack.c.l.b16 %v832
      %v921 = vunpack.c.l.b16 %v833
      %v922 = vpack.c.b16 %v907, %v907
      %v923 = vpack.c.b16 %v908, %v908
      %v924 = vpack.c.b16 %v909, %v909
      %v925 = vpack.c.b16 %v910, %v910
      %v926 = vpack.c.b16 %v911, %v911
      %v927 = vpack.c.b16 %v912, %v912
      %v928 = vpack.c.b16 %v913, %v913
      %v929 = vpack.c.b16 %v914, %v914
      %v930 = vpack.c.b16 %v915, %v915
      %v931 = vpack.c.b16 %v916, %v916
      %v932 = vpack.c.b16 %v917, %v917
      %v933 = vpack.c.b16 %v918, %v918
      %v934 = vpack.c.b16 %v919, %v919
      %v935 = vpack.c.b16 %v920, %v920
      %v936 = vpack.c.b16 %v921, %v921
      %937 = vrot.lane.b32.xlu0 %v922, 8
      %v938 = vpop.permute.xlu0 %937
      %939 = vrot.lane.b32.xlu0 %v923, 8
      %v940 = vpop.permute.xlu0 %939
      %941 = vrot.lane.b32.xlu0 %v924, 8
      %v942 = vpop.permute.xlu0 %941
      %943 = vrot.lane.b32.xlu0 %v925, 8
      %v944 = vpop.permute.xlu0 %943
      %945 = vrot.lane.b32.xlu0 %v926, 8
      %v946 = vpop.permute.xlu0 %945
      %947 = vrot.lane.b32.xlu0 %v927, 8
      %v948 = vpop.permute.xlu0 %947
      %949 = vrot.lane.b32.xlu0 %v928, 8
      %v950 = vpop.permute.xlu0 %949
      %951 = vrot.lane.b32.xlu0 %v929, 8
      %v952 = vpop.permute.xlu0 %951
      %953 = vrot.lane.b32.xlu0 %v930, 8
      %v954 = vpop.permute.xlu0 %953
      %955 = vrot.lane.b32.xlu0 %v931, 8
      %v956 = vpop.permute.xlu0 %955
      %957 = vrot.lane.b32.xlu0 %v932, 8
      %v958 = vpop.permute.xlu0 %957
      %959 = vrot.lane.b32.xlu0 %v933, 8
      %v960 = vpop.permute.xlu0 %959
      %961 = vrot.lane.b32.xlu0 %v934, 8
      %v962 = vpop.permute.xlu0 %961
      %963 = vrot.lane.b32.xlu0 %v935, 8
      %v964 = vpop.permute.xlu0 %963
      %965 = vrot.lane.b32.xlu0 %v936, 8
      %v966 = vpop.permute.xlu0 %965
      %v982 = vunpack.c.l.b16 %v863
      %v983 = vunpack.c.l.b16 %v864
      %v984 = vunpack.c.l.b16 %v865
      %v985 = vunpack.c.l.b16 %v866
      %v986 = vunpack.c.l.b16 %v867
      %v987 = vunpack.c.l.b16 %v868
      %v988 = vunpack.c.l.b16 %v869
      %v989 = vunpack.c.l.b16 %v870
      %v990 = vunpack.c.l.b16 %v871
      %v991 = vunpack.c.l.b16 %v872
      %v992 = vunpack.c.l.b16 %v873
      %v993 = vunpack.c.l.b16 %v874
      %v994 = vunpack.c.l.b16 %v875
      %v995 = vunpack.c.l.b16 %v876
      %v996 = vunpack.c.l.b16 %v877
      %v997 = vpack.c.b16 %v982, %v982
      %v998 = vpack.c.b16 %v983, %v983
      %v999 = vpack.c.b16 %v984, %v984
      %v1000 = vpack.c.b16 %v985, %v985
      %v1001 = vpack.c.b16 %v986, %v986
      %v1002 = vpack.c.b16 %v987, %v987
      %v1003 = vpack.c.b16 %v988, %v988
      %v1004 = vpack.c.b16 %v989, %v989
      %v1005 = vpack.c.b16 %v990, %v990
      %v1006 = vpack.c.b16 %v991, %v991
      %v1007 = vpack.c.b16 %v992, %v992
      %v1008 = vpack.c.b16 %v993, %v993
      %v1009 = vpack.c.b16 %v994, %v994
      %v1010 = vpack.c.b16 %v995, %v995
      %v1011 = vpack.c.b16 %v996, %v996
      %1012 = vrot.lane.b32.xlu0 %v997, 16
      %v1013 = vpop.permute.xlu0 %1012
      %1014 = vrot.lane.b32.xlu0 %v998, 16
      %v1015 = vpop.permute.xlu0 %1014
      %1016 = vrot.lane.b32.xlu0 %v999, 16
      %v1017 = vpop.permute.xlu0 %1016
      %1018 = vrot.lane.b32.xlu0 %v1000, 16
      %v1019 = vpop.permute.xlu0 %1018
      %1020 = vrot.lane.b32.xlu0 %v1001, 16
      %v1021 = vpop.permute.xlu0 %1020
      %1022 = vrot.lane.b32.xlu0 %v1002, 16
      %v1023 = vpop.permute.xlu0 %1022
      %1024 = vrot.lane.b32.xlu0 %v1003, 16
      %v1025 = vpop.permute.xlu0 %1024
      %1026 = vrot.lane.b32.xlu0 %v1004, 16
      %v1027 = vpop.permute.xlu0 %1026
      %1028 = vrot.lane.b32.xlu0 %v1005, 16
      %v1029 = vpop.permute.xlu0 %1028
      %1030 = vrot.lane.b32.xlu0 %v1006, 16
      %v1031 = vpop.permute.xlu0 %1030
      %1032 = vrot.lane.b32.xlu0 %v1007, 16
      %v1033 = vpop.permute.xlu0 %1032
      %1034 = vrot.lane.b32.xlu0 %v1008, 16
      %v1035 = vpop.permute.xlu0 %1034
      %1036 = vrot.lane.b32.xlu0 %v1009, 16
      %v1037 = vpop.permute.xlu0 %1036
      %1038 = vrot.lane.b32.xlu0 %v1010, 16
      %v1039 = vpop.permute.xlu0 %1038
      %1040 = vrot.lane.b32.xlu0 %v1011, 16
      %v1041 = vpop.permute.xlu0 %1040
      %v1058 = vunpack.c.l.b16 %v805
      %v1059 = vunpack.c.l.b16 %v806
      %v1060 = vunpack.c.l.b16 %v807
      %v1061 = vunpack.c.l.b16 %v808
      %v1062 = vunpack.c.l.b16 %v809
      %v1063 = vunpack.c.l.b16 %v810
      %v1064 = vunpack.c.l.b16 %v811
      %v1065 = vunpack.c.l.b16 %v882
      %v1066 = vunpack.c.l.b16 %v812
      %v1067 = vunpack.c.l.b16 %v813
      %v1068 = vunpack.c.l.b16 %v814
      %v1069 = vunpack.c.l.b16 %v815
      %v1070 = vunpack.c.l.b16 %v816
      %v1071 = vunpack.c.l.b16 %v817
      %v1072 = vunpack.c.l.b16 %v818
      %v1073 = vunpack.c.l.b16 %v883
      %v1074 = vpack.c.b16 %v1058, %v1058
      %v1075 = vpack.c.b16 %v1059, %v1059
      %v1076 = vpack.c.b16 %v1060, %v1060
      %v1077 = vpack.c.b16 %v1061, %v1061
      %v1078 = vpack.c.b16 %v1062, %v1062
      %v1079 = vpack.c.b16 %v1063, %v1063
      %v1080 = vpack.c.b16 %v1064, %v1064
      %v1081 = vpack.c.b16 %v1065, %v1065
      %v1082 = vpack.c.b16 %v1066, %v1066
      %v1083 = vpack.c.b16 %v1067, %v1067
      %v1084 = vpack.c.b16 %v1068, %v1068
      %v1085 = vpack.c.b16 %v1069, %v1069
      %v1086 = vpack.c.b16 %v1070, %v1070
      %v1087 = vpack.c.b16 %v1071, %v1071
      %v1088 = vpack.c.b16 %v1072, %v1072
      %v1089 = vpack.c.b16 %v1073, %v1073
      %1090 = vrot.lane.b32.xlu0 %v1074, 24
      %v1091 = vpop.permute.xlu0 %1090
      %1092 = vrot.lane.b32.xlu0 %v1075, 24
      %v1093 = vpop.permute.xlu0 %1092
      %1094 = vrot.lane.b32.xlu0 %v1076, 24
      %v1095 = vpop.permute.xlu0 %1094
      %1096 = vrot.lane.b32.xlu0 %v1077, 24
      %v1097 = vpop.permute.xlu0 %1096
      %1098 = vrot.lane.b32.xlu0 %v1078, 24
      %v1099 = vpop.permute.xlu0 %1098
      %1100 = vrot.lane.b32.xlu0 %v1079, 24
      %v1101 = vpop.permute.xlu0 %1100
      %1102 = vrot.lane.b32.xlu0 %v1080, 24
      %v1103 = vpop.permute.xlu0 %1102
      %1104 = vrot.lane.b32.xlu0 %v1081, 24
      %v1105 = vpop.permute.xlu0 %1104
      %1106 = vrot.lane.b32.xlu0 %v1082, 24
      %v1107 = vpop.permute.xlu0 %1106
      %1108 = vrot.lane.b32.xlu0 %v1083, 24
      %v1109 = vpop.permute.xlu0 %1108
      %1110 = vrot.lane.b32.xlu0 %v1084, 24
      %v1111 = vpop.permute.xlu0 %1110
      %1112 = vrot.lane.b32.xlu0 %v1085, 24
      %v1113 = vpop.permute.xlu0 %1112
      %1114 = vrot.lane.b32.xlu0 %v1086, 24
      %v1115 = vpop.permute.xlu0 %1114
      %1116 = vrot.lane.b32.xlu0 %v1087, 24
      %v1117 = vpop.permute.xlu0 %1116
      %1118 = vrot.lane.b32.xlu0 %v1088, 24
      %v1119 = vpop.permute.xlu0 %1118
      %1120 = vrot.lane.b32.xlu0 %v1089, 24
      %v1121 = vpop.permute.xlu0 %1120
      %v1124 = vunpack.c.l.b16 %v884
      %v1125 = vunpack.c.l.b16 %v885
      %v1126 = vpack.c.b16 %v1124, %v1124
      %v1127 = vpack.c.b16 %v1125, %v1125
      %1128 = vrot.lane.b32.xlu0 %v923, 32
      %v1129 = vpop.permute.xlu0 %1128
      %1130 = vrot.lane.b32.xlu0 %v924, 32
      %v1131 = vpop.permute.xlu0 %1130
      %1132 = vrot.lane.b32.xlu0 %v925, 32
      %v1133 = vpop.permute.xlu0 %1132
      %1134 = vrot.lane.b32.xlu0 %v926, 32
      %v1135 = vpop.permute.xlu0 %1134
      %1136 = vrot.lane.b32.xlu0 %v927, 32
      %v1137 = vpop.permute.xlu0 %1136
      %1138 = vrot.lane.b32.xlu0 %v928, 32
      %v1139 = vpop.permute.xlu0 %1138
      %1140 = vrot.lane.b32.xlu0 %v929, 32
      %v1141 = vpop.permute.xlu0 %1140
      %1142 = vrot.lane.b32.xlu0 %v1126, 32
      %v1143 = vpop.permute.xlu0 %1142
      %1144 = vrot.lane.b32.xlu0 %v930, 32
      %v1145 = vpop.permute.xlu0 %1144
      %1146 = vrot.lane.b32.xlu0 %v931, 32
      %v1147 = vpop.permute.xlu0 %1146
      %1148 = vrot.lane.b32.xlu0 %v932, 32
      %v1149 = vpop.permute.xlu0 %1148
      %1150 = vrot.lane.b32.xlu0 %v933, 32
      %v1151 = vpop.permute.xlu0 %1150
      %1152 = vrot.lane.b32.xlu0 %v934, 32
      %v1153 = vpop.permute.xlu0 %1152
      %1154 = vrot.lane.b32.xlu0 %v935, 32
      %v1155 = vpop.permute.xlu0 %1154
      %1156 = vrot.lane.b32.xlu0 %v936, 32
      %v1157 = vpop.permute.xlu0 %1156
      %1158 = vrot.lane.b32.xlu0 %v1127, 32
      %v1159 = vpop.permute.xlu0 %1158
      %v1162 = vunpack.c.l.b16 %v890
      %v1163 = vunpack.c.l.b16 %v891
      %v1164 = vpack.c.b16 %v1162, %v1162
      %v1165 = vpack.c.b16 %v1163, %v1163
      %1166 = vrot.lane.b32.xlu0 %v998, 40
      %v1167 = vpop.permute.xlu0 %1166
      %1168 = vrot.lane.b32.xlu0 %v999, 40
      %v1169 = vpop.permute.xlu0 %1168
      %1170 = vrot.lane.b32.xlu0 %v1000, 40
      %v1171 = vpop.permute.xlu0 %1170
      %1172 = vrot.lane.b32.xlu0 %v1001, 40
      %v1173 = vpop.permute.xlu0 %1172
      %1174 = vrot.lane.b32.xlu0 %v1002, 40
      %v1175 = vpop.permute.xlu0 %1174
      %1176 = vrot.lane.b32.xlu0 %v1003, 40
      %v1177 = vpop.permute.xlu0 %1176
      %1178 = vrot.lane.b32.xlu0 %v1004, 40
      %v1179 = vpop.permute.xlu0 %1178
      %1180 = vrot.lane.b32.xlu0 %v1164, 40
      %v1181 = vpop.permute.xlu0 %1180
      %1182 = vrot.lane.b32.xlu0 %v1005, 40
      %v1183 = vpop.permute.xlu0 %1182
      %1184 = vrot.lane.b32.xlu0 %v1006, 40
      %v1185 = vpop.permute.xlu0 %1184
      %1186 = vrot.lane.b32.xlu0 %v1007, 40
      %v1187 = vpop.permute.xlu0 %1186
      %1188 = vrot.lane.b32.xlu0 %v1008, 40
      %v1189 = vpop.permute.xlu0 %1188
      %1190 = vrot.lane.b32.xlu0 %v1009, 40
      %v1191 = vpop.permute.xlu0 %1190
      %1192 = vrot.lane.b32.xlu0 %v1010, 40
      %v1193 = vpop.permute.xlu0 %1192
      %1194 = vrot.lane.b32.xlu0 %v1011, 40
      %v1195 = vpop.permute.xlu0 %1194
      %1196 = vrot.lane.b32.xlu0 %v1165, 40
      %v1197 = vpop.permute.xlu0 %1196
      %v1199 = vunpack.c.l.b16 %v804
      %v1200 = vpack.c.b16 %v1199, %v1199
      %1201 = vrot.lane.b32.xlu0 %v1075, 48
      %v1202 = vpop.permute.xlu0 %1201
      %1203 = vrot.lane.b32.xlu0 %v1076, 48
      %v1204 = vpop.permute.xlu0 %1203
      %1205 = vrot.lane.b32.xlu0 %v1077, 48
      %v1206 = vpop.permute.xlu0 %1205
      %1207 = vrot.lane.b32.xlu0 %v1078, 48
      %v1208 = vpop.permute.xlu0 %1207
      %1209 = vrot.lane.b32.xlu0 %v1079, 48
      %v1210 = vpop.permute.xlu0 %1209
      %1211 = vrot.lane.b32.xlu0 %v1080, 48
      %v1212 = vpop.permute.xlu0 %1211
      %1213 = vrot.lane.b32.xlu0 %v1081, 48
      %v1214 = vpop.permute.xlu0 %1213
      %1215 = vrot.lane.b32.xlu0 %v1200, 48
      %v1216 = vpop.permute.xlu0 %1215
      %1217 = vrot.lane.b32.xlu0 %v1083, 48
      %v1218 = vpop.permute.xlu0 %1217
      %1219 = vrot.lane.b32.xlu0 %v1084, 48
      %v1220 = vpop.permute.xlu0 %1219
      %1221 = vrot.lane.b32.xlu0 %v1085, 48
      %v1222 = vpop.permute.xlu0 %1221
      %1223 = vrot.lane.b32.xlu0 %v1086, 48
      %v1224 = vpop.permute.xlu0 %1223
      %1225 = vrot.lane.b32.xlu0 %v1087, 48
      %v1226 = vpop.permute.xlu0 %1225
      %1227 = vrot.lane.b32.xlu0 %v1088, 48
      %v1228 = vpop.permute.xlu0 %1227
      %1229 = vrot.lane.b32.xlu0 %v1089, 48
      %v1230 = vpop.permute.xlu0 %1229
      %1231 = vrot.lane.b32.xlu0 %v924, 56
      %v1232 = vpop.permute.xlu0 %1231
      %1233 = vrot.lane.b32.xlu0 %v925, 56
      %v1234 = vpop.permute.xlu0 %1233
      %1235 = vrot.lane.b32.xlu0 %v926, 56
      %v1236 = vpop.permute.xlu0 %1235
      %1237 = vrot.lane.b32.xlu0 %v927, 56
      %v1238 = vpop.permute.xlu0 %1237
      %1239 = vrot.lane.b32.xlu0 %v928, 56
      %v1240 = vpop.permute.xlu0 %1239
      %1241 = vrot.lane.b32.xlu0 %v929, 56
      %v1242 = vpop.permute.xlu0 %1241
      %1243 = vrot.lane.b32.xlu0 %v1126, 56
      %v1244 = vpop.permute.xlu0 %1243
      %1245 = vrot.lane.b32.xlu0 %v922, 56
      %v1246 = vpop.permute.xlu0 %1245
      %1247 = vrot.lane.b32.xlu0 %v931, 56
      %v1248 = vpop.permute.xlu0 %1247
      %1249 = vrot.lane.b32.xlu0 %v932, 56
      %v1250 = vpop.permute.xlu0 %1249
      %1251 = vrot.lane.b32.xlu0 %v933, 56
      %v1252 = vpop.permute.xlu0 %1251
      %1253 = vrot.lane.b32.xlu0 %v934, 56
      %v1254 = vpop.permute.xlu0 %1253
      %1255 = vrot.lane.b32.xlu0 %v935, 56
      %v1256 = vpop.permute.xlu0 %1255
      %1257 = vrot.lane.b32.xlu0 %v936, 56
      %v1258 = vpop.permute.xlu0 %1257
      %1259 = vrot.lane.b32.xlu0 %v1127, 56
      %v1260 = vpop.permute.xlu0 %1259
      %1261 = vrot.lane.b32.xlu0 %v999, 64
      %v1262 = vpop.permute.xlu0 %1261
      %1263 = vrot.lane.b32.xlu0 %v1000, 64
      %v1264 = vpop.permute.xlu0 %1263
      %1265 = vrot.lane.b32.xlu0 %v1001, 64
      %v1266 = vpop.permute.xlu0 %1265
      %1267 = vrot.lane.b32.xlu0 %v1002, 64
      %v1268 = vpop.permute.xlu0 %1267
      %1269 = vrot.lane.b32.xlu0 %v1003, 64
      %v1270 = vpop.permute.xlu0 %1269
      %1271 = vrot.lane.b32.xlu0 %v1004, 64
      %v1272 = vpop.permute.xlu0 %1271
      %1273 = vrot.lane.b32.xlu0 %v1164, 64
      %v1274 = vpop.permute.xlu0 %1273
      %1275 = vrot.lane.b32.xlu0 %v997, 64
      %v1276 = vpop.permute.xlu0 %1275
      %1277 = vrot.lane.b32.xlu0 %v1006, 64
      %v1278 = vpop.permute.xlu0 %1277
      %1279 = vrot.lane.b32.xlu0 %v1007, 64
      %v1280 = vpop.permute.xlu0 %1279
      %1281 = vrot.lane.b32.xlu0 %v1008, 64
      %v1282 = vpop.permute.xlu0 %1281
      %1283 = vrot.lane.b32.xlu0 %v1009, 64
      %v1284 = vpop.permute.xlu0 %1283
      %1285 = vrot.lane.b32.xlu0 %v1010, 64
      %v1286 = vpop.permute.xlu0 %1285
      %1287 = vrot.lane.b32.xlu0 %v1011, 64
      %v1288 = vpop.permute.xlu0 %1287
      %1289 = vrot.lane.b32.xlu0 %v1165, 64
      %v1290 = vpop.permute.xlu0 %1289
      %vm1291 = vcmask 64512
      %v1294 = vsel %vm1291, %v804, %v938
      %v1297 = vsel %vm1291, %v805, %v940
      %v1300 = vsel %vm1291, %v806, %v942
      %v1303 = vsel %vm1291, %v807, %v944
      %v1306 = vsel %vm1291, %v808, %v946
      %v1309 = vsel %vm1291, %v809, %v948
      %v1312 = vsel %vm1291, %v810, %v950
      %v1315 = vsel %vm1291, %v811, %v952
      %v1318 = vsel %vm1291, %v812, %v954
      %v1321 = vsel %vm1291, %v813, %v956
      %v1324 = vsel %vm1291, %v814, %v958
      %v1327 = vsel %vm1291, %v815, %v960
      %v1330 = vsel %vm1291, %v816, %v962
      %v1333 = vsel %vm1291, %v817, %v964
      %v1336 = vsel %vm1291, %v818, %v966
      %v1338 = vsel %vm697, %v1294, %v1013
      %v1340 = vsel %vm697, %v1297, %v1015
      %v1342 = vsel %vm697, %v1300, %v1017
      %v1344 = vsel %vm697, %v1303, %v1019
      %v1346 = vsel %vm697, %v1306, %v1021
      %v1348 = vsel %vm697, %v1309, %v1023
      %v1350 = vsel %vm697, %v1312, %v1025
      %v1352 = vsel %vm697, %v1315, %v1027
      %v1354 = vsel %vm697, %v1318, %v1029
      %v1356 = vsel %vm697, %v1321, %v1031
      %v1358 = vsel %vm697, %v1324, %v1033
      %v1360 = vsel %vm697, %v1327, %v1035
      %v1362 = vsel %vm697, %v1330, %v1037
      %v1364 = vsel %vm697, %v1333, %v1039
      %v1366 = vsel %vm697, %v1336, %v1041
      %vm1367 = vcmask 195584
      %v1369 = vsel %vm1367, %v1338, %v1091
      %v1371 = vsel %vm1367, %v1340, %v1093
      %v1373 = vsel %vm1367, %v1342, %v1095
      %v1375 = vsel %vm1367, %v1344, %v1097
      %v1377 = vsel %vm1367, %v1346, %v1099
      %v1379 = vsel %vm1367, %v1348, %v1101
      %v1381 = vsel %vm1367, %v1350, %v1103
      %v1383 = vsel %vm1367, %v1352, %v1105
      %v1385 = vsel %vm1367, %v1338, %v1107
      %v1387 = vsel %vm1367, %v1354, %v1109
      %v1389 = vsel %vm1367, %v1356, %v1111
      %v1391 = vsel %vm1367, %v1358, %v1113
      %v1393 = vsel %vm1367, %v1360, %v1115
      %v1395 = vsel %vm1367, %v1362, %v1117
      %v1397 = vsel %vm1367, %v1364, %v1119
      %v1399 = vsel %vm1367, %v1366, %v1121
      %vm1400 = vcmask 261120
      %v1402 = vsel %vm1400, %v1369, %v1129
      %v1404 = vsel %vm1400, %v1371, %v1131
      %v1406 = vsel %vm1400, %v1373, %v1133
      %v1408 = vsel %vm1400, %v1375, %v1135
      %v1410 = vsel %vm1400, %v1377, %v1137
      %v1412 = vsel %vm1400, %v1379, %v1139
      %v1414 = vsel %vm1400, %v1381, %v1141
      %v1416 = vsel %vm1400, %v1383, %v1143
      %v1418 = vsel %vm1400, %v1385, %v1145
      %v1420 = vsel %vm1400, %v1387, %v1147
      %v1422 = vsel %vm1400, %v1389, %v1149
      %v1424 = vsel %vm1400, %v1391, %v1151
      %v1426 = vsel %vm1400, %v1393, %v1153
      %v1428 = vsel %vm1400, %v1395, %v1155
      %v1430 = vsel %vm1400, %v1397, %v1157
      %v1432 = vsel %vm1400, %v1399, %v1159
      %vm1433 = vcmask 326656
      %v1435 = vsel %vm1433, %v1402, %v1167
      %v1437 = vsel %vm1433, %v1404, %v1169
      %v1439 = vsel %vm1433, %v1406, %v1171
      %v1441 = vsel %vm1433, %v1408, %v1173
      %v1443 = vsel %vm1433, %v1410, %v1175
      %v1445 = vsel %vm1433, %v1412, %v1177
      %v1447 = vsel %vm1433, %v1414, %v1179
      %v1449 = vsel %vm1433, %v1416, %v1181
      %v1451 = vsel %vm1433, %v1418, %v1183
      %v1453 = vsel %vm1433, %v1420, %v1185
      %v1455 = vsel %vm1433, %v1422, %v1187
      %v1457 = vsel %vm1433, %v1424, %v1189
      %v1459 = vsel %vm1433, %v1426, %v1191
      %v1461 = vsel %vm1433, %v1428, %v1193
      %v1463 = vsel %vm1433, %v1430, %v1195
      %v1465 = vsel %vm1433, %v1432, %v1197
      %vm1466 = vcmask 392192
      %v1468 = vsel %vm1466, %v1435, %v1202
      %v1470 = vsel %vm1466, %v1437, %v1204
      %v1472 = vsel %vm1466, %v1439, %v1206
      %v1474 = vsel %vm1466, %v1441, %v1208
      %v1476 = vsel %vm1466, %v1443, %v1210
      %v1478 = vsel %vm1466, %v1445, %v1212
      %v1480 = vsel %vm1466, %v1447, %v1214
      %v1482 = vsel %vm1466, %v1449, %v1216
      %v1484 = vsel %vm1466, %v1451, %v1218
      %v1486 = vsel %vm1466, %v1453, %v1220
      %v1488 = vsel %vm1466, %v1455, %v1222
      %v1490 = vsel %vm1466, %v1457, %v1224
      %v1492 = vsel %vm1466, %v1459, %v1226
      %v1494 = vsel %vm1466, %v1461, %v1228
      %v1496 = vsel %vm1466, %v1463, %v1230
      %v1497 = vsel %vm1466, %v1465, %v1216
      %vm1498 = vcmask 457728
      %v1500 = vsel %vm1498, %v1468, %v1232
      %v1502 = vsel %vm1498, %v1470, %v1234
      %v1504 = vsel %vm1498, %v1472, %v1236
      %v1506 = vsel %vm1498, %v1474, %v1238
      %v1508 = vsel %vm1498, %v1476, %v1240
      %v1510 = vsel %vm1498, %v1478, %v1242
      %v1512 = vsel %vm1498, %v1480, %v1244
      %v1514 = vsel %vm1498, %v1482, %v1246
      %v1516 = vsel %vm1498, %v1484, %v1248
      %v1518 = vsel %vm1498, %v1486, %v1250
      %v1520 = vsel %vm1498, %v1488, %v1252
      %v1522 = vsel %vm1498, %v1490, %v1254
      %v1524 = vsel %vm1498, %v1492, %v1256
      %v1526 = vsel %vm1498, %v1494, %v1258
      %v1528 = vsel %vm1498, %v1496, %v1260
      %v1529 = vsel %vm1498, %v1497, %v1246
      %vm1530 = vcmask 523264
      %v1532 = vsel %vm1530, %v1500, %v1262
      %v1534 = vsel %vm1530, %v1502, %v1264
      %v1536 = vsel %vm1530, %v1504, %v1266
      %v1538 = vsel %vm1530, %v1506, %v1268
      %v1540 = vsel %vm1530, %v1508, %v1270
      %v1542 = vsel %vm1530, %v1510, %v1272
      %v1544 = vsel %vm1530, %v1512, %v1274
      %v1546 = vsel %vm1530, %v1514, %v1276
      %v1548 = vsel %vm1530, %v1516, %v1278
      %v1550 = vsel %vm1530, %v1518, %v1280
      %v1552 = vsel %vm1530, %v1520, %v1282
      %v1554 = vsel %vm1530, %v1522, %v1284
      %v1556 = vsel %vm1530, %v1524, %v1286
      %v1558 = vsel %vm1530, %v1526, %v1288
      %v1560 = vsel %vm1530, %v1528, %v1290
      %v1561 = vsel %vm1530, %v1529, %v1276
      %v1562 = vld [vmem:[%s583] sm:$0xf]
      %v1563 = vld [vmem:[%s583 + $0x4] sm:$0xf]
      %v1564 = vld [vmem:[%s583 + $0x8] sm:$0xf]
      %v1565 = vld [vmem:[%s583 + $0xc] sm:$0xf]
      %v1566 = vld [vmem:[%s583 + $0x10] sm:$0xf]
      %v1567 = vld [vmem:[%s583 + $0x14] sm:$0xf]
      %v1568 = vld [vmem:[%s583 + $0x18] sm:$0xf]
      %v1569 = vld [vmem:[%s583 + $0x1c] sm:$0xf]
      %v1570 = vld [vmem:[%s583 + $0x20] sm:$0xf]
      %v1571 = vld [vmem:[%s586] sm:$0x1]
      %v1573 = vperm.slane %v1571, 0
      %v1591 = vunpack.c.l.b16 %v1532
      %v1592 = vunpack.c.l.b16 %v1534
      %v1593 = vunpack.c.l.b16 %v1536
      %v1594 = vunpack.c.l.b16 %v1538
      %v1595 = vunpack.c.l.b16 %v1540
      %v1596 = vunpack.c.l.b16 %v1542
      %v1597 = vunpack.c.l.b16 %v1544
      %v1598 = vunpack.c.l.b16 %v1546
      %v1599 = vunpack.c.l.b16 %v1548
      %v1600 = vunpack.c.l.b16 %v1550
      %v1601 = vunpack.c.l.b16 %v1552
      %v1602 = vunpack.c.l.b16 %v1554
      %v1603 = vunpack.c.l.b16 %v1556
      %v1604 = vunpack.c.l.b16 %v1558
      %v1605 = vunpack.c.l.b16 %v1560
      %v1606 = vunpack.c.l.b16 %v1561
      %v1607 = vpack.c.b16 %v1592, %v1591
      %v1608 = vpack.c.b16 %v1594, %v1593
      %v1609 = vpack.c.b16 %v1596, %v1595
      %v1610 = vpack.c.b16 %v1598, %v1597
      %v1611 = vpack.c.b16 %v1600, %v1599
      %v1612 = vpack.c.b16 %v1602, %v1601
      %v1613 = vpack.c.b16 %v1604, %v1603
      %v1614 = vpack.c.b16 %v1606, %v1605
      %v1624 = vunpack.c.l.b16 %v1562
      %v1625 = vunpack.c.l.b16 %v1563
      %v1626 = vunpack.c.l.b16 %v1564
      %v1627 = vunpack.c.l.b16 %v1565
      %v1628 = vunpack.c.l.b16 %v1566
      %v1629 = vunpack.c.l.b16 %v1567
      %v1630 = vunpack.c.l.b16 %v1568
      %v1631 = vunpack.c.l.b16 %v1569
      %v1632 = vunpack.c.l.b16 %v1570
      %v1633 = vpack.c.b16 %v1625, %v1624
      %v1634 = vpack.c.b16 %v1627, %v1626
      %v1635 = vpack.c.b16 %v1629, %v1628
      %v1636 = vpack.c.b16 %v1631, %v1630
      %v1637 = vpack.c.b16 %v1632, %v1632
      %vm1642 = vcmask 588800
      %v1644 = vsel %vm1642, %v1607, 0
      %v1647 = vsel %vm1642, %v1608, 0
      %v1650 = vsel %vm1642, %v1609, 0
      %v1653 = vsel %vm1642, %v1610, 0
      %v1656 = vsel %vm1642, %v1611, 0
      %v1659 = vsel %vm1642, %v1612, 0
      %v1662 = vsel %vm1642, %v1613, 0
      %v1665 = vsel %vm1642, %v1614, 0
      %vm1667 = vcmask 1043456
      %v1669 = vsel %vm1667, %v1637, 0
      %1671 = vmatpush.bf16.msra.mxu0 0
      %1672 = vmatpush.bf16.msra.mxu0 0
      %1673 = vmatpush.bf16.msra.mxu0 0
      %1674 = vmatpush.bf16.msra.mxu0 %v1669
      %1675 = vmatpush.bf16.msra.mxu0 %v1636
      %1676 = vmatpush.bf16.msra.mxu0 %v1635
      %1677 = vmatpush.bf16.msra.mxu0 %v1634
      %1678 = vmatpush.bf16.msra.mxu0 %v1633
      %1679 = vmatmul.bf16.gmra.mxu0 %v1644
      %v1680 = vpop.f32.mrf.mxu0
      %v1681 = vadd.f32 %v1573, %v1680
      %v1682 = vpop.f32.mrf.mxu0
      %v1683 = vadd.f32 %v1573, %v1682
      %1684 = vmatmul.bf16.gmra.mxu0 %v1647
      %v1685 = vpop.f32.mrf.mxu0
      %v1686 = vadd.f32 %v1573, %v1685
      %v1687 = vpop.f32.mrf.mxu0
      %v1688 = vadd.f32 %v1573, %v1687
      %1689 = vmatmul.bf16.gmra.mxu0 %v1650
      %v1690 = vpop.f32.mrf.mxu0
      %v1691 = vadd.f32 %v1573, %v1690
      %v1692 = vpop.f32.mrf.mxu0
      %v1693 = vadd.f32 %v1573, %v1692
      %1694 = vmatmul.bf16.gmra.mxu0 %v1653
      %v1695 = vpop.f32.mrf.mxu0
      %v1696 = vadd.f32 %v1573, %v1695
      %v1697 = vpop.f32.mrf.mxu0
      %v1698 = vadd.f32 %v1573, %v1697
      %1699 = vmatmul.bf16.gmra.mxu0 %v1656
      %v1700 = vpop.f32.mrf.mxu0
      %v1701 = vadd.f32 %v1573, %v1700
      %v1702 = vpop.f32.mrf.mxu0
      %v1703 = vadd.f32 %v1573, %v1702
      %1704 = vmatmul.bf16.gmra.mxu0 %v1659
      %v1705 = vpop.f32.mrf.mxu0
      %v1706 = vadd.f32 %v1573, %v1705
      %v1707 = vpop.f32.mrf.mxu0
      %v1708 = vadd.f32 %v1573, %v1707
      %1709 = vmatmul.bf16.gmra.mxu0 %v1662
      %v1710 = vpop.f32.mrf.mxu0
      %v1711 = vadd.f32 %v1573, %v1710
      %v1712 = vpop.f32.mrf.mxu0
      %v1713 = vadd.f32 %v1573, %v1712
      %1714 = vmatmul.bf16.gmra.mxu0 %v1665
      %v1715 = vpop.f32.mrf.mxu0
      %v1716 = vadd.f32 %v1573, %v1715
      %v1717 = vpop.f32.mrf.mxu0
      %v1718 = vadd.f32 %v1573, %v1717
      %1719 = vdwg.mxu0
      %v1720 = vmax.f32 %v1681, 0.0
      %v1721 = vmax.f32 %v1683, 0.0
      %v1722 = vmax.f32 %v1686, 0.0
      %v1723 = vmax.f32 %v1688, 0.0
      %v1724 = vmax.f32 %v1691, 0.0
      %v1725 = vmax.f32 %v1693, 0.0
      %v1726 = vmax.f32 %v1696, 0.0
      %v1727 = vmax.f32 %v1698, 0.0
      %v1728 = vmax.f32 %v1701, 0.0
      %v1729 = vmax.f32 %v1703, 0.0
      %v1730 = vmax.f32 %v1706, 0.0
      %v1731 = vmax.f32 %v1708, 0.0
      %v1732 = vmax.f32 %v1711, 0.0
      %v1733 = vmax.f32 %v1713, 0.0
      %v1734 = vmax.f32 %v1716, 0.0
      %v1735 = vmax.f32 %v1718, 0.0
      %v1736 = vpack.c.bf16 %v1721, %v1720
      %v1737 = vpack.c.bf16 %v1723, %v1722
      %v1738 = vpack.c.bf16 %v1725, %v1724
      %v1739 = vpack.c.bf16 %v1727, %v1726
      %v1740 = vpack.c.bf16 %v1729, %v1728
      %v1741 = vpack.c.bf16 %v1731, %v1730
      %v1742 = vpack.c.bf16 %v1733, %v1732
      %v1743 = vpack.c.bf16 %v1735, %v1734
      %v1744 = vld [vmem:[%s591] sm:$0xf]
      %v1745 = vld [vmem:[%s591 + $0x4] sm:$0xf]
      %v1746 = vld [vmem:[%s591 + $0x8] sm:$0xf]
      %v1747 = vld [vmem:[%s591 + $0xc] sm:$0xf]
      %v1748 = vld [vmem:[%s594] sm:$0x1]
      %v1750 = vperm.slane %v1748, 0
      %v1756 = vunpack.c.l.b16 %v1744
      %v1757 = vunpack.c.l.b16 %v1745
      %v1758 = vunpack.c.l.b16 %v1746
      %v1759 = vunpack.c.l.b16 %v1747
      %v1760 = vpack.c.b16 %v1757, %v1756
      %v1761 = vpack.c.b16 %v1759, %v1758
      %v1765 = vsel %vm1400, %v1736, 0
      %v1768 = vsel %vm1400, %v1737, 0
      %v1771 = vsel %vm1400, %v1738, 0
      %v1774 = vsel %vm1400, %v1739, 0
      %v1777 = vsel %vm1400, %v1740, 0
      %v1780 = vsel %vm1400, %v1741, 0
      %v1783 = vsel %vm1400, %v1742, 0
      %v1786 = vsel %vm1400, %v1743, 0
      %1788 = vmatpush.bf16.msra.mxu0 0
      %1789 = vmatpush.bf16.msra.mxu0 0
      %1790 = vmatpush.bf16.msra.mxu0 0
      %1791 = vmatpush.bf16.msra.mxu0 0
      %1792 = vmatpush.bf16.msra.mxu0 0
      %1793 = vmatpush.bf16.msra.mxu0 0
      %1794 = vmatpush.bf16.msra.mxu0 %v1761
      %1795 = vmatpush.bf16.msra.mxu0 %v1760
      %1796 = vmatmul.bf16.gmra.mxu0 %v1765
      %v1797 = vpop.f32.mrf.mxu0
      %v1798 = vadd.f32 %v1750, %v1797
      %v1799 = vpop.f32.mrf.mxu0
      %v1800 = vadd.f32 %v1750, %v1799
      %1801 = vmatmul.bf16.gmra.mxu0 %v1768
      %v1802 = vpop.f32.mrf.mxu0
      %v1803 = vadd.f32 %v1750, %v1802
      %v1804 = vpop.f32.mrf.mxu0
      %v1805 = vadd.f32 %v1750, %v1804
      %1806 = vmatmul.bf16.gmra.mxu0 %v1771
      %v1807 = vpop.f32.mrf.mxu0
      %v1808 = vadd.f32 %v1750, %v1807
      %v1809 = vpop.f32.mrf.mxu0
      %v1810 = vadd.f32 %v1750, %v1809
      %1811 = vmatmul.bf16.gmra.mxu0 %v1774
      %v1812 = vpop.f32.mrf.mxu0
      %v1813 = vadd.f32 %v1750, %v1812
      %v1814 = vpop.f32.mrf.mxu0
      %v1815 = vadd.f32 %v1750, %v1814
      %1816 = vmatmul.bf16.gmra.mxu0 %v1777
      %v1817 = vpop.f32.mrf.mxu0
      %v1818 = vadd.f32 %v1750, %v1817
      %v1819 = vpop.f32.mrf.mxu0
      %v1820 = vadd.f32 %v1750, %v1819
      %1821 = vmatmul.bf16.gmra.mxu0 %v1780
      %v1822 = vpop.f32.mrf.mxu0
      %v1823 = vadd.f32 %v1750, %v1822
      %v1824 = vpop.f32.mrf.mxu0
      %v1825 = vadd.f32 %v1750, %v1824
      %1826 = vmatmul.bf16.gmra.mxu0 %v1783
      %v1827 = vpop.f32.mrf.mxu0
      %v1828 = vadd.f32 %v1750, %v1827
      %v1829 = vpop.f32.mrf.mxu0
      %v1830 = vadd.f32 %v1750, %v1829
      %1831 = vmatmul.bf16.gmra.mxu0 %v1786
      %v1832 = vpop.f32.mrf.mxu0
      %v1833 = vadd.f32 %v1750, %v1832
      %v1834 = vpop.f32.mrf.mxu0
      %v1835 = vadd.f32 %v1750, %v1834
      %1836 = vdwg.mxu0
      %v1837 = vmax.f32 %v1798, 0.0
      %v1838 = vmax.f32 %v1800, 0.0
      %v1839 = vmax.f32 %v1803, 0.0
      %v1840 = vmax.f32 %v1805, 0.0
      %v1841 = vmax.f32 %v1808, 0.0
      %v1842 = vmax.f32 %v1810, 0.0
      %v1843 = vmax.f32 %v1813, 0.0
      %v1844 = vmax.f32 %v1815, 0.0
      %v1845 = vmax.f32 %v1818, 0.0
      %v1846 = vmax.f32 %v1820, 0.0
      %v1847 = vmax.f32 %v1823, 0.0
      %v1848 = vmax.f32 %v1825, 0.0
      %v1849 = vmax.f32 %v1828, 0.0
      %v1850 = vmax.f32 %v1830, 0.0
      %v1851 = vmax.f32 %v1833, 0.0
      %v1852 = vmax.f32 %v1835, 0.0
      %v1853 = vrot.slane %v1837, 7
      %v1854 = vrot.slane %v1838, 7
      %v1855 = vrot.slane %v1839, 7
      %v1856 = vrot.slane %v1840, 7
      %v1857 = vrot.slane %v1841, 7
      %v1858 = vrot.slane %v1842, 7
      %v1859 = vrot.slane %v1843, 7
      %v1860 = vrot.slane %v1845, 7
      %v1861 = vrot.slane %v1846, 7
      %v1862 = vrot.slane %v1847, 7
      %v1863 = vrot.slane %v1848, 7
      %v1864 = vrot.slane %v1849, 7
      %v1865 = vrot.slane %v1850, 7
      %v1866 = vrot.slane %v1851, 7
      %v1867 = vsel %vm773, 1.0, 1.0
      %v1868 = vsel %vm773, %v1853, 1.0
      %v1869 = vsel %vm773, %v1854, 1.0
      %v1870 = vsel %vm773, %v1855, 1.0
      %v1871 = vsel %vm773, %v1856, 1.0
      %v1872 = vsel %vm773, %v1857, 1.0
      %v1873 = vsel %vm773, %v1858, 1.0
      %v1874 = vsel %vm773, %v1859, 1.0
      %v1875 = vsel %vm773, %v1860, 1.0
      %v1876 = vsel %vm773, %v1861, 1.0
      %v1877 = vsel %vm773, %v1862, 1.0
      %v1878 = vsel %vm773, %v1863, 1.0
      %v1879 = vsel %vm773, %v1864, 1.0
      %v1880 = vsel %vm773, %v1865, 1.0
      %v1881 = vsel %vm773, %v1866, 1.0
      %v1882 = vpack.c.bf16 %v1867, %v1867
      %v1883 = vpack.c.bf16 %v1868, %v1868
      %v1884 = vpack.c.bf16 %v1869, %v1869
      %v1885 = vpack.c.bf16 %v1870, %v1870
      %v1886 = vpack.c.bf16 %v1871, %v1871
      %v1887 = vpack.c.bf16 %v1872, %v1872
      %v1888 = vpack.c.bf16 %v1873, %v1873
      %v1889 = vpack.c.bf16 %v1874, %v1874
      %v1890 = vpack.c.bf16 %v1875, %v1875
      %v1891 = vpack.c.bf16 %v1876, %v1876
      %v1892 = vpack.c.bf16 %v1877, %v1877
      %v1893 = vpack.c.bf16 %v1878, %v1878
      %v1894 = vpack.c.bf16 %v1879, %v1879
      %v1895 = vpack.c.bf16 %v1880, %v1880
      %v1896 = vpack.c.bf16 %v1881, %v1881
      %v1897 = vpack.c.bf16 1.0, 1.0
      %v1898 = vpack.c.bf16 %v1837, %v1837
      %v1899 = vpack.c.bf16 %v1838, %v1838
      %v1900 = vpack.c.bf16 %v1839, %v1839
      %v1901 = vpack.c.bf16 %v1840, %v1840
      %v1902 = vpack.c.bf16 %v1841, %v1841
      %v1903 = vpack.c.bf16 %v1842, %v1842
      %v1904 = vpack.c.bf16 %v1843, %v1843
      %v1905 = vpack.c.bf16 %v1845, %v1845
      %v1906 = vpack.c.bf16 %v1846, %v1846
      %v1907 = vpack.c.bf16 %v1847, %v1847
      %v1908 = vpack.c.bf16 %v1848, %v1848
      %v1909 = vpack.c.bf16 %v1849, %v1849
      %v1910 = vpack.c.bf16 %v1850, %v1850
      %v1911 = vpack.c.bf16 %v1851, %v1851
      %v1912 = vrot.slane %v1837, 1
      %v1913 = vrot.slane %v1838, 1
      %v1914 = vrot.slane %v1839, 1
      %v1915 = vrot.slane %v1840, 1
      %v1916 = vrot.slane %v1841, 1
      %v1917 = vrot.slane %v1842, 1
      %v1918 = vrot.slane %v1843, 1
      %v1919 = vrot.slane %v1845, 1
      %v1920 = vrot.slane %v1846, 1
      %v1921 = vrot.slane %v1847, 1
      %v1922 = vrot.slane %v1848, 1
      %v1923 = vrot.slane %v1849, 1
      %v1924 = vrot.slane %v1850, 1
      %v1925 = vrot.slane %v1851, 1
      %v1926 = vsel %vm774, 1.0, 1.0
      %v1927 = vsel %vm774, %v1912, 1.0
      %v1928 = vsel %vm774, %v1913, 1.0
      %v1929 = vsel %vm774, %v1914, 1.0
      %v1930 = vsel %vm774, %v1915, 1.0
      %v1931 = vsel %vm774, %v1916, 1.0
      %v1932 = vsel %vm774, %v1917, 1.0
      %v1933 = vsel %vm774, %v1918, 1.0
      %v1934 = vsel %vm774, %v1919, 1.0
      %v1935 = vsel %vm774, %v1920, 1.0
      %v1936 = vsel %vm774, %v1921, 1.0
      %v1937 = vsel %vm774, %v1922, 1.0
      %v1938 = vsel %vm774, %v1923, 1.0
      %v1939 = vsel %vm774, %v1924, 1.0
      %v1940 = vsel %vm774, %v1925, 1.0
      %v1941 = vpack.c.bf16 %v1926, %v1926
      %v1942 = vpack.c.bf16 %v1927, %v1927
      %v1943 = vpack.c.bf16 %v1928, %v1928
      %v1944 = vpack.c.bf16 %v1929, %v1929
      %v1945 = vpack.c.bf16 %v1930, %v1930
      %v1946 = vpack.c.bf16 %v1931, %v1931
      %v1947 = vpack.c.bf16 %v1932, %v1932
      %v1948 = vpack.c.bf16 %v1933, %v1933
      %v1949 = vpack.c.bf16 %v1934, %v1934
      %v1950 = vpack.c.bf16 %v1935, %v1935
      %v1951 = vpack.c.bf16 %v1936, %v1936
      %v1952 = vpack.c.bf16 %v1937, %v1937
      %v1953 = vpack.c.bf16 %v1938, %v1938
      %v1954 = vpack.c.bf16 %v1939, %v1939
      %v1955 = vpack.c.bf16 %v1940, %v1940
      %v1956 = vrot.slane %v1844, 7
      %v1957 = vrot.slane %v1852, 7
      %v1958 = vsel %vm773, %v1956, 1.0
      %v1959 = vsel %vm773, %v1957, 1.0
      %v1960 = vpack.c.bf16 %v1958, %v1958
      %v1961 = vpack.c.bf16 %v1959, %v1959
      %v1962 = vpack.c.bf16 %v1844, %v1844
      %v1963 = vpack.c.bf16 %v1852, %v1852
      %v1964 = vrot.slane %v1844, 1
      %v1965 = vrot.slane %v1852, 1
      %v1966 = vsel %vm774, %v1964, 1.0
      %v1967 = vsel %vm774, %v1965, 1.0
      %v1968 = vpack.c.bf16 %v1966, %v1966
      %v1969 = vpack.c.bf16 %v1967, %v1967
      %v1985 = vunpack.c.l.b16 %v1897
      %v1986 = vunpack.c.l.b16 %v1898
      %v1987 = vunpack.c.l.b16 %v1899
      %v1988 = vunpack.c.l.b16 %v1900
      %v1989 = vunpack.c.l.b16 %v1901
      %v1990 = vunpack.c.l.b16 %v1902
      %v1991 = vunpack.c.l.b16 %v1903
      %v1992 = vunpack.c.l.b16 %v1904
      %v1993 = vunpack.c.l.b16 %v1905
      %v1994 = vunpack.c.l.b16 %v1906
      %v1995 = vunpack.c.l.b16 %v1907
      %v1996 = vunpack.c.l.b16 %v1908
      %v1997 = vunpack.c.l.b16 %v1909
      %v1998 = vunpack.c.l.b16 %v1910
      %v1999 = vunpack.c.l.b16 %v1911
      %v2000 = vpack.c.b16 %v1985, %v1985
      %v2001 = vpack.c.b16 %v1986, %v1986
      %v2002 = vpack.c.b16 %v1987, %v1987
      %v2003 = vpack.c.b16 %v1988, %v1988
      %v2004 = vpack.c.b16 %v1989, %v1989
      %v2005 = vpack.c.b16 %v1990, %v1990
      %v2006 = vpack.c.b16 %v1991, %v1991
      %v2007 = vpack.c.b16 %v1992, %v1992
      %v2008 = vpack.c.b16 %v1993, %v1993
      %v2009 = vpack.c.b16 %v1994, %v1994
      %v2010 = vpack.c.b16 %v1995, %v1995
      %v2011 = vpack.c.b16 %v1996, %v1996
      %v2012 = vpack.c.b16 %v1997, %v1997
      %v2013 = vpack.c.b16 %v1998, %v1998
      %v2014 = vpack.c.b16 %v1999, %v1999
      %2015 = vrot.lane.b32.xlu0 %v2000, 32
      %v2016 = vpop.permute.xlu0 %2015
      %2017 = vrot.lane.b32.xlu0 %v2001, 32
      %v2018 = vpop.permute.xlu0 %2017
      %2019 = vrot.lane.b32.xlu0 %v2002, 32
      %v2020 = vpop.permute.xlu0 %2019
      %2021 = vrot.lane.b32.xlu0 %v2003, 32
      %v2022 = vpop.permute.xlu0 %2021
      %2023 = vrot.lane.b32.xlu0 %v2004, 32
      %v2024 = vpop.permute.xlu0 %2023
      %2025 = vrot.lane.b32.xlu0 %v2005, 32
      %v2026 = vpop.permute.xlu0 %2025
      %2027 = vrot.lane.b32.xlu0 %v2006, 32
      %v2028 = vpop.permute.xlu0 %2027
      %2029 = vrot.lane.b32.xlu0 %v2007, 32
      %v2030 = vpop.permute.xlu0 %2029
      %2031 = vrot.lane.b32.xlu0 %v2008, 32
      %v2032 = vpop.permute.xlu0 %2031
      %2033 = vrot.lane.b32.xlu0 %v2009, 32
      %v2034 = vpop.permute.xlu0 %2033
      %2035 = vrot.lane.b32.xlu0 %v2010, 32
      %v2036 = vpop.permute.xlu0 %2035
      %2037 = vrot.lane.b32.xlu0 %v2011, 32
      %v2038 = vpop.permute.xlu0 %2037
      %2039 = vrot.lane.b32.xlu0 %v2012, 32
      %v2040 = vpop.permute.xlu0 %2039
      %2041 = vrot.lane.b32.xlu0 %v2013, 32
      %v2042 = vpop.permute.xlu0 %2041
      %2043 = vrot.lane.b32.xlu0 %v2014, 32
      %v2044 = vpop.permute.xlu0 %2043
      %v2060 = vunpack.c.l.b16 %v1941
      %v2061 = vunpack.c.l.b16 %v1942
      %v2062 = vunpack.c.l.b16 %v1943
      %v2063 = vunpack.c.l.b16 %v1944
      %v2064 = vunpack.c.l.b16 %v1945
      %v2065 = vunpack.c.l.b16 %v1946
      %v2066 = vunpack.c.l.b16 %v1947
      %v2067 = vunpack.c.l.b16 %v1948
      %v2068 = vunpack.c.l.b16 %v1949
      %v2069 = vunpack.c.l.b16 %v1950
      %v2070 = vunpack.c.l.b16 %v1951
      %v2071 = vunpack.c.l.b16 %v1952
      %v2072 = vunpack.c.l.b16 %v1953
      %v2073 = vunpack.c.l.b16 %v1954
      %v2074 = vunpack.c.l.b16 %v1955
      %v2075 = vpack.c.b16 %v2060, %v2060
      %v2076 = vpack.c.b16 %v2061, %v2061
      %v2077 = vpack.c.b16 %v2062, %v2062
      %v2078 = vpack.c.b16 %v2063, %v2063
      %v2079 = vpack.c.b16 %v2064, %v2064
      %v2080 = vpack.c.b16 %v2065, %v2065
      %v2081 = vpack.c.b16 %v2066, %v2066
      %v2082 = vpack.c.b16 %v2067, %v2067
      %v2083 = vpack.c.b16 %v2068, %v2068
      %v2084 = vpack.c.b16 %v2069, %v2069
      %v2085 = vpack.c.b16 %v2070, %v2070
      %v2086 = vpack.c.b16 %v2071, %v2071
      %v2087 = vpack.c.b16 %v2072, %v2072
      %v2088 = vpack.c.b16 %v2073, %v2073
      %v2089 = vpack.c.b16 %v2074, %v2074
      %2090 = vrot.lane.b32.xlu0 %v2075, 64
      %v2091 = vpop.permute.xlu0 %2090
      %2092 = vrot.lane.b32.xlu0 %v2076, 64
      %v2093 = vpop.permute.xlu0 %2092
      %2094 = vrot.lane.b32.xlu0 %v2077, 64
      %v2095 = vpop.permute.xlu0 %2094
      %2096 = vrot.lane.b32.xlu0 %v2078, 64
      %v2097 = vpop.permute.xlu0 %2096
      %2098 = vrot.lane.b32.xlu0 %v2079, 64
      %v2099 = vpop.permute.xlu0 %2098
      %2100 = vrot.lane.b32.xlu0 %v2080, 64
      %v2101 = vpop.permute.xlu0 %2100
      %2102 = vrot.lane.b32.xlu0 %v2081, 64
      %v2103 = vpop.permute.xlu0 %2102
      %2104 = vrot.lane.b32.xlu0 %v2082, 64
      %v2105 = vpop.permute.xlu0 %2104
      %2106 = vrot.lane.b32.xlu0 %v2083, 64
      %v2107 = vpop.permute.xlu0 %2106
      %2108 = vrot.lane.b32.xlu0 %v2084, 64
      %v2109 = vpop.permute.xlu0 %2108
      %2110 = vrot.lane.b32.xlu0 %v2085, 64
      %v2111 = vpop.permute.xlu0 %2110
      %2112 = vrot.lane.b32.xlu0 %v2086, 64
      %v2113 = vpop.permute.xlu0 %2112
      %2114 = vrot.lane.b32.xlu0 %v2087, 64
      %v2115 = vpop.permute.xlu0 %2114
      %2116 = vrot.lane.b32.xlu0 %v2088, 64
      %v2117 = vpop.permute.xlu0 %2116
      %2118 = vrot.lane.b32.xlu0 %v2089, 64
      %v2119 = vpop.permute.xlu0 %2118
      %v2136 = vunpack.c.l.b16 %v1883
      %v2137 = vunpack.c.l.b16 %v1884
      %v2138 = vunpack.c.l.b16 %v1885
      %v2139 = vunpack.c.l.b16 %v1886
      %v2140 = vunpack.c.l.b16 %v1887
      %v2141 = vunpack.c.l.b16 %v1888
      %v2142 = vunpack.c.l.b16 %v1889
      %v2143 = vunpack.c.l.b16 %v1960
      %v2144 = vunpack.c.l.b16 %v1890
      %v2145 = vunpack.c.l.b16 %v1891
      %v2146 = vunpack.c.l.b16 %v1892
      %v2147 = vunpack.c.l.b16 %v1893
      %v2148 = vunpack.c.l.b16 %v1894
      %v2149 = vunpack.c.l.b16 %v1895
      %v2150 = vunpack.c.l.b16 %v1896
      %v2151 = vunpack.c.l.b16 %v1961
      %v2152 = vpack.c.b16 %v2136, %v2136
      %v2153 = vpack.c.b16 %v2137, %v2137
      %v2154 = vpack.c.b16 %v2138, %v2138
      %v2155 = vpack.c.b16 %v2139, %v2139
      %v2156 = vpack.c.b16 %v2140, %v2140
      %v2157 = vpack.c.b16 %v2141, %v2141
      %v2158 = vpack.c.b16 %v2142, %v2142
      %v2159 = vpack.c.b16 %v2143, %v2143
      %v2160 = vpack.c.b16 %v2144, %v2144
      %v2161 = vpack.c.b16 %v2145, %v2145
      %v2162 = vpack.c.b16 %v2146, %v2146
      %v2163 = vpack.c.b16 %v2147, %v2147
      %v2164 = vpack.c.b16 %v2148, %v2148
      %v2165 = vpack.c.b16 %v2149, %v2149
      %v2166 = vpack.c.b16 %v2150, %v2150
      %v2167 = vpack.c.b16 %v2151, %v2151
      %2168 = vrot.lane.b32.xlu0 %v2152, 96
      %v2169 = vpop.permute.xlu0 %2168
      %2170 = vrot.lane.b32.xlu0 %v2153, 96
      %v2171 = vpop.permute.xlu0 %2170
      %2172 = vrot.lane.b32.xlu0 %v2154, 96
      %v2173 = vpop.permute.xlu0 %2172
      %2174 = vrot.lane.b32.xlu0 %v2155, 96
      %v2175 = vpop.permute.xlu0 %2174
      %2176 = vrot.lane.b32.xlu0 %v2156, 96
      %v2177 = vpop.permute.xlu0 %2176
      %2178 = vrot.lane.b32.xlu0 %v2157, 96
      %v2179 = vpop.permute.xlu0 %2178
      %2180 = vrot.lane.b32.xlu0 %v2158, 96
      %v2181 = vpop.permute.xlu0 %2180
      %2182 = vrot.lane.b32.xlu0 %v2159, 96
      %v2183 = vpop.permute.xlu0 %2182
      %2184 = vrot.lane.b32.xlu0 %v2160, 96
      %v2185 = vpop.permute.xlu0 %2184
      %2186 = vrot.lane.b32.xlu0 %v2161, 96
      %v2187 = vpop.permute.xlu0 %2186
      %2188 = vrot.lane.b32.xlu0 %v2162, 96
      %v2189 = vpop.permute.xlu0 %2188
      %2190 = vrot.lane.b32.xlu0 %v2163, 96
      %v2191 = vpop.permute.xlu0 %2190
      %2192 = vrot.lane.b32.xlu0 %v2164, 96
      %v2193 = vpop.permute.xlu0 %2192
      %2194 = vrot.lane.b32.xlu0 %v2165, 96
      %v2195 = vpop.permute.xlu0 %2194
      %2196 = vrot.lane.b32.xlu0 %v2166, 96
      %v2197 = vpop.permute.xlu0 %2196
      %2198 = vrot.lane.b32.xlu0 %v2167, 96
      %v2199 = vpop.permute.xlu0 %2198
      %v2202 = vunpack.c.l.b16 %v1968
      %v2203 = vunpack.c.l.b16 %v1969
      %v2204 = vpack.c.b16 %v2202, %v2202
      %v2205 = vpack.c.b16 %v2203, %v2203
      %2206 = vrot.lane.b32.xlu0 %v2076, 32
      %v2207 = vpop.permute.xlu0 %2206
      %2208 = vrot.lane.b32.xlu0 %v2077, 32
      %v2209 = vpop.permute.xlu0 %2208
      %2210 = vrot.lane.b32.xlu0 %v2078, 32
      %v2211 = vpop.permute.xlu0 %2210
      %2212 = vrot.lane.b32.xlu0 %v2079, 32
      %v2213 = vpop.permute.xlu0 %2212
      %2214 = vrot.lane.b32.xlu0 %v2080, 32
      %v2215 = vpop.permute.xlu0 %2214
      %2216 = vrot.lane.b32.xlu0 %v2081, 32
      %v2217 = vpop.permute.xlu0 %2216
      %2218 = vrot.lane.b32.xlu0 %v2082, 32
      %v2219 = vpop.permute.xlu0 %2218
      %2220 = vrot.lane.b32.xlu0 %v2204, 32
      %v2221 = vpop.permute.xlu0 %2220
      %2222 = vrot.lane.b32.xlu0 %v2083, 32
      %v2223 = vpop.permute.xlu0 %2222
      %2224 = vrot.lane.b32.xlu0 %v2084, 32
      %v2225 = vpop.permute.xlu0 %2224
      %2226 = vrot.lane.b32.xlu0 %v2085, 32
      %v2227 = vpop.permute.xlu0 %2226
      %2228 = vrot.lane.b32.xlu0 %v2086, 32
      %v2229 = vpop.permute.xlu0 %2228
      %2230 = vrot.lane.b32.xlu0 %v2087, 32
      %v2231 = vpop.permute.xlu0 %2230
      %2232 = vrot.lane.b32.xlu0 %v2088, 32
      %v2233 = vpop.permute.xlu0 %2232
      %2234 = vrot.lane.b32.xlu0 %v2089, 32
      %v2235 = vpop.permute.xlu0 %2234
      %2236 = vrot.lane.b32.xlu0 %v2205, 32
      %v2237 = vpop.permute.xlu0 %2236
      %v2239 = vunpack.c.l.b16 %v1882
      %v2240 = vpack.c.b16 %v2239, %v2239
      %2241 = vrot.lane.b32.xlu0 %v2153, 64
      %v2242 = vpop.permute.xlu0 %2241
      %2243 = vrot.lane.b32.xlu0 %v2154, 64
      %v2244 = vpop.permute.xlu0 %2243
      %2245 = vrot.lane.b32.xlu0 %v2155, 64
      %v2246 = vpop.permute.xlu0 %2245
      %2247 = vrot.lane.b32.xlu0 %v2156, 64
      %v2248 = vpop.permute.xlu0 %2247
      %2249 = vrot.lane.b32.xlu0 %v2157, 64
      %v2250 = vpop.permute.xlu0 %2249
      %2251 = vrot.lane.b32.xlu0 %v2158, 64
      %v2252 = vpop.permute.xlu0 %2251
      %2253 = vrot.lane.b32.xlu0 %v2159, 64
      %v2254 = vpop.permute.xlu0 %2253
      %2255 = vrot.lane.b32.xlu0 %v2240, 64
      %v2256 = vpop.permute.xlu0 %2255
      %2257 = vrot.lane.b32.xlu0 %v2161, 64
      %v2258 = vpop.permute.xlu0 %2257
      %2259 = vrot.lane.b32.xlu0 %v2162, 64
      %v2260 = vpop.permute.xlu0 %2259
      %2261 = vrot.lane.b32.xlu0 %v2163, 64
      %v2262 = vpop.permute.xlu0 %2261
      %2263 = vrot.lane.b32.xlu0 %v2164, 64
      %v2264 = vpop.permute.xlu0 %2263
      %2265 = vrot.lane.b32.xlu0 %v2165, 64
      %v2266 = vpop.permute.xlu0 %2265
      %2267 = vrot.lane.b32.xlu0 %v2166, 64
      %v2268 = vpop.permute.xlu0 %2267
      %2269 = vrot.lane.b32.xlu0 %v2167, 64
      %v2270 = vpop.permute.xlu0 %2269
      %v2273 = vunpack.c.l.b16 %v1962
      %v2274 = vunpack.c.l.b16 %v1963
      %v2275 = vpack.c.b16 %v2273, %v2273
      %v2276 = vpack.c.b16 %v2274, %v2274
      %2277 = vrot.lane.b32.xlu0 %v2002, 96
      %v2278 = vpop.permute.xlu0 %2277
      %2279 = vrot.lane.b32.xlu0 %v2003, 96
      %v2280 = vpop.permute.xlu0 %2279
      %2281 = vrot.lane.b32.xlu0 %v2004, 96
      %v2282 = vpop.permute.xlu0 %2281
      %2283 = vrot.lane.b32.xlu0 %v2005, 96
      %v2284 = vpop.permute.xlu0 %2283
      %2285 = vrot.lane.b32.xlu0 %v2006, 96
      %v2286 = vpop.permute.xlu0 %2285
      %2287 = vrot.lane.b32.xlu0 %v2007, 96
      %v2288 = vpop.permute.xlu0 %2287
      %2289 = vrot.lane.b32.xlu0 %v2275, 96
      %v2290 = vpop.permute.xlu0 %2289
      %2291 = vrot.lane.b32.xlu0 %v2000, 96
      %v2292 = vpop.permute.xlu0 %2291
      %2293 = vrot.lane.b32.xlu0 %v2009, 96
      %v2294 = vpop.permute.xlu0 %2293
      %2295 = vrot.lane.b32.xlu0 %v2010, 96
      %v2296 = vpop.permute.xlu0 %2295
      %2297 = vrot.lane.b32.xlu0 %v2011, 96
      %v2298 = vpop.permute.xlu0 %2297
      %2299 = vrot.lane.b32.xlu0 %v2012, 96
      %v2300 = vpop.permute.xlu0 %2299
      %2301 = vrot.lane.b32.xlu0 %v2013, 96
      %v2302 = vpop.permute.xlu0 %2301
      %2303 = vrot.lane.b32.xlu0 %v2014, 96
      %v2304 = vpop.permute.xlu0 %2303
      %2305 = vrot.lane.b32.xlu0 %v2276, 96
      %v2306 = vpop.permute.xlu0 %2305
      %v2309 = vsel %vm1400, %v1882, %v2016
      %v2312 = vsel %vm1400, %v1883, %v2018
      %v2315 = vsel %vm1400, %v1884, %v2020
      %v2318 = vsel %vm1400, %v1885, %v2022
      %v2321 = vsel %vm1400, %v1886, %v2024
      %v2324 = vsel %vm1400, %v1887, %v2026
      %v2327 = vsel %vm1400, %v1888, %v2028
      %v2330 = vsel %vm1400, %v1889, %v2030
      %v2333 = vsel %vm1400, %v1890, %v2032
      %v2336 = vsel %vm1400, %v1891, %v2034
      %v2339 = vsel %vm1400, %v1892, %v2036
      %v2342 = vsel %vm1400, %v1893, %v2038
      %v2345 = vsel %vm1400, %v1894, %v2040
      %v2348 = vsel %vm1400, %v1895, %v2042
      %v2351 = vsel %vm1400, %v1896, %v2044
      %v2353 = vsel %vm1530, %v2309, %v2091
      %v2355 = vsel %vm1530, %v2312, %v2093
      %v2357 = vsel %vm1530, %v2315, %v2095
      %v2359 = vsel %vm1530, %v2318, %v2097
      %v2361 = vsel %vm1530, %v2321, %v2099
      %v2363 = vsel %vm1530, %v2324, %v2101
      %v2365 = vsel %vm1530, %v2327, %v2103
      %v2367 = vsel %vm1530, %v2330, %v2105
      %v2369 = vsel %vm1530, %v2333, %v2107
      %v2371 = vsel %vm1530, %v2336, %v2109
      %v2373 = vsel %vm1530, %v2339, %v2111
      %v2375 = vsel %vm1530, %v2342, %v2113
      %v2377 = vsel %vm1530, %v2345, %v2115
      %v2379 = vsel %vm1530, %v2348, %v2117
      %v2381 = vsel %vm1530, %v2351, %v2119
      %vm2382 = vcmask 785408
      %v2384 = vsel %vm2382, %v2353, %v2169
      %v2386 = vsel %vm2382, %v2355, %v2171
      %v2388 = vsel %vm2382, %v2357, %v2173
      %v2390 = vsel %vm2382, %v2359, %v2175
      %v2392 = vsel %vm2382, %v2361, %v2177
      %v2394 = vsel %vm2382, %v2363, %v2179
      %v2396 = vsel %vm2382, %v2365, %v2181
      %v2398 = vsel %vm2382, %v2367, %v2183
      %v2400 = vsel %vm2382, %v2353, %v2185
      %v2402 = vsel %vm2382, %v2369, %v2187
      %v2404 = vsel %vm2382, %v2371, %v2189
      %v2406 = vsel %vm2382, %v2373, %v2191
      %v2408 = vsel %vm2382, %v2375, %v2193
      %v2410 = vsel %vm2382, %v2377, %v2195
      %v2412 = vsel %vm2382, %v2379, %v2197
      %v2414 = vsel %vm2382, %v2381, %v2199
      %v2417 = vsel %vm1400, %v1898, %v2207
      %v2420 = vsel %vm1400, %v1899, %v2209
      %v2423 = vsel %vm1400, %v1900, %v2211
      %v2426 = vsel %vm1400, %v1901, %v2213
      %v2429 = vsel %vm1400, %v1902, %v2215
      %v2432 = vsel %vm1400, %v1903, %v2217
      %v2435 = vsel %vm1400, %v1904, %v2219
      %v2438 = vsel %vm1400, %v1962, %v2221
      %v2441 = vsel %vm1400, %v1905, %v2223
      %v2444 = vsel %vm1400, %v1906, %v2225
      %v2447 = vsel %vm1400, %v1907, %v2227
      %v2450 = vsel %vm1400, %v1908, %v2229
      %v2453 = vsel %vm1400, %v1909, %v2231
      %v2456 = vsel %vm1400, %v1910, %v2233
      %v2459 = vsel %vm1400, %v1911, %v2235
      %v2462 = vsel %vm1400, %v1963, %v2237
      %v2464 = vsel %vm1530, %v2417, %v2242
      %v2466 = vsel %vm1530, %v2420, %v2244
      %v2468 = vsel %vm1530, %v2423, %v2246
      %v2470 = vsel %vm1530, %v2426, %v2248
      %v2472 = vsel %vm1530, %v2429, %v2250
      %v2474 = vsel %vm1530, %v2432, %v2252
      %v2476 = vsel %vm1530, %v2435, %v2254
      %v2478 = vsel %vm1530, %v2438, %v2256
      %v2480 = vsel %vm1530, %v2441, %v2258
      %v2482 = vsel %vm1530, %v2444, %v2260
      %v2484 = vsel %vm1530, %v2447, %v2262
      %v2486 = vsel %vm1530, %v2450, %v2264
      %v2488 = vsel %vm1530, %v2453, %v2266
      %v2490 = vsel %vm1530, %v2456, %v2268
      %v2492 = vsel %vm1530, %v2459, %v2270
      %v2493 = vsel %vm1530, %v2462, %v2256
      %v2495 = vsel %vm2382, %v2464, %v2278
      %v2497 = vsel %vm2382, %v2466, %v2280
      %v2499 = vsel %vm2382, %v2468, %v2282
      %v2501 = vsel %vm2382, %v2470, %v2284
      %v2503 = vsel %vm2382, %v2472, %v2286
      %v2505 = vsel %vm2382, %v2474, %v2288
      %v2507 = vsel %vm2382, %v2476, %v2290
      %v2509 = vsel %vm2382, %v2478, %v2292
      %v2511 = vsel %vm2382, %v2480, %v2294
      %v2513 = vsel %vm2382, %v2482, %v2296
      %v2515 = vsel %vm2382, %v2484, %v2298
      %v2517 = vsel %vm2382, %v2486, %v2300
      %v2519 = vsel %vm2382, %v2488, %v2302
      %v2521 = vsel %vm2382, %v2490, %v2304
      %v2523 = vsel %vm2382, %v2492, %v2306
      %v2524 = vsel %vm2382, %v2493, %v2292
      %v2557 = vunpack.c.l.b16 %v2384
      %v2558 = vunpack.c.l.b16 %v2495
      %v2559 = vunpack.c.l.b16 %v2386
      %v2560 = vunpack.c.l.b16 %v2497
      %v2561 = vunpack.c.l.b16 %v2388
      %v2562 = vunpack.c.l.b16 %v2499
      %v2563 = vunpack.c.l.b16 %v2390
      %v2564 = vunpack.c.l.b16 %v2501
      %v2565 = vunpack.c.l.b16 %v2392
      %v2566 = vunpack.c.l.b16 %v2503
      %v2567 = vunpack.c.l.b16 %v2394
      %v2568 = vunpack.c.l.b16 %v2505
      %v2569 = vunpack.c.l.b16 %v2396
      %v2570 = vunpack.c.l.b16 %v2507
      %v2571 = vunpack.c.l.b16 %v2398
      %v2572 = vunpack.c.l.b16 %v2509
      %v2573 = vunpack.c.l.b16 %v2400
      %v2574 = vunpack.c.l.b16 %v2511
      %v2575 = vunpack.c.l.b16 %v2402
      %v2576 = vunpack.c.l.b16 %v2513
      %v2577 = vunpack.c.l.b16 %v2404
      %v2578 = vunpack.c.l.b16 %v2515
      %v2579 = vunpack.c.l.b16 %v2406
      %v2580 = vunpack.c.l.b16 %v2517
      %v2581 = vunpack.c.l.b16 %v2408
      %v2582 = vunpack.c.l.b16 %v2519
      %v2583 = vunpack.c.l.b16 %v2410
      %v2584 = vunpack.c.l.b16 %v2521
      %v2585 = vunpack.c.l.b16 %v2412
      %v2586 = vunpack.c.l.b16 %v2523
      %v2587 = vunpack.c.l.b16 %v2414
      %v2588 = vunpack.c.l.b16 %v2524
      %v2589 = vld [vmem:[%s599] sm:$0xf]
      %v2590 = vld [vmem:[%s599 + $0x4] sm:$0xf]
      %v2591 = vld [vmem:[%s599 + $0x8] sm:$0xf]
      %v2592 = vld [vmem:[%s599 + $0xc] sm:$0xf]
      %v2593 = vld [vmem:[%s599 + $0x10] sm:$0xf]
      %v2594 = vld [vmem:[%s599 + $0x14] sm:$0xf]
      %v2595 = vld [vmem:[%s599 + $0x18] sm:$0xf]
      %v2596 = vld [vmem:[%s599 + $0x1c] sm:$0xf]
      %v2597 = vld [vmem:[%s599 + $0x20] sm:$0xf]
      %v2598 = vld [vmem:[%s599 + $0x24] sm:$0xf]
      %v2599 = vld [vmem:[%s599 + $0x28] sm:$0xf]
      %v2600 = vld [vmem:[%s599 + $0x2c] sm:$0xf]
      %v2601 = vld [vmem:[%s599 + $0x30] sm:$0xf]
      %v2602 = vld [vmem:[%s599 + $0x34] sm:$0xf]
      %v2603 = vld [vmem:[%s599 + $0x38] sm:$0xf]
      %v2604 = vld [vmem:[%s599 + $0x3c] sm:$0xf]
      %v2605 = vld [vmem:[%s599 + $0x40] sm:$0xf]
      %v2606 = vld [vmem:[%s599 + $0x44] sm:$0xf]
      %v2607 = vld [vmem:[%s599 + $0x48] sm:$0xf]
      %v2608 = vld [vmem:[%s599 + $0x4c] sm:$0xf]
      %v2609 = vld [vmem:[%s599 + $0x50] sm:$0xf]
      %v2610 = vld [vmem:[%s599 + $0x54] sm:$0xf]
      %v2611 = vld [vmem:[%s599 + $0x58] sm:$0xf]
      %v2612 = vld [vmem:[%s599 + $0x5c] sm:$0xf]
      %v2613 = vld [vmem:[%s599 + $0x60] sm:$0xf]
      %v2614 = vld [vmem:[%s599 + $0x64] sm:$0xf]
      %v2615 = vld [vmem:[%s599 + $0x68] sm:$0xf]
      %v2616 = vld [vmem:[%s599 + $0x6c] sm:$0xf]
      %v2617 = vld [vmem:[%s599 + $0x70] sm:$0xf]
      %v2618 = vld [vmem:[%s599 + $0x74] sm:$0xf]
      %v2619 = vld [vmem:[%s599 + $0x78] sm:$0xf]
      %v2620 = vld [vmem:[%s599 + $0x7c] sm:$0xf]
      %v2621 = vld [vmem:[%s599 + $0x80] sm:$0xf]
      %v2622 = vld [vmem:[%s599 + $0x84] sm:$0xf]
      %v2623 = vld [vmem:[%s599 + $0x88] sm:$0xf]
      %v2624 = vld [vmem:[%s599 + $0x8c] sm:$0xf]
      %v2625 = vld [vmem:[%s602] sm:$0x1]
      %v2627 = vperm.slane %v2625, 0
      %v2629 = vpack.c.b16 %v2559, %v2557
      %v2630 = vpack.c.b16 %v2560, %v2558
      %v2631 = vpack.c.b16 %v2063, %v2062
      %v2632 = vpack.c.b16 %v2563, %v2561
      %v2633 = vpack.c.b16 %v2564, %v2562
      %v2634 = vpack.c.b16 %v2065, %v2064
      %v2635 = vpack.c.b16 %v2567, %v2565
      %v2636 = vpack.c.b16 %v2568, %v2566
      %v2637 = vpack.c.b16 %v2067, %v2066
      %v2638 = vpack.c.b16 %v2571, %v2569
      %v2639 = vpack.c.b16 %v2572, %v2570
      %v2640 = vpack.c.b16 %v2060, %v2202
      %v2641 = vpack.c.b16 %v2575, %v2573
      %v2642 = vpack.c.b16 %v2576, %v2574
      %v2643 = vpack.c.b16 %v2070, %v2069
      %v2644 = vpack.c.b16 %v2579, %v2577
      %v2645 = vpack.c.b16 %v2580, %v2578
      %v2646 = vpack.c.b16 %v2072, %v2071
      %v2647 = vpack.c.b16 %v2583, %v2581
      %v2648 = vpack.c.b16 %v2584, %v2582
      %v2649 = vpack.c.b16 %v2074, %v2073
      %v2650 = vpack.c.b16 %v2587, %v2585
      %v2651 = vpack.c.b16 %v2588, %v2586
      %v2652 = vpack.c.b16 %v2060, %v2203
      %v2705 = vunpack.c.l.b16 %v2589
      %v2706 = vunpack.c.l.b16 %v2590
      %v2707 = vunpack.c.l.b16 %v2591
      %v2708 = vunpack.c.l.b16 %v2592
      %v2709 = vunpack.c.l.b16 %v2593
      %v2710 = vunpack.c.l.b16 %v2594
      %v2711 = vunpack.c.l.b16 %v2595
      %v2712 = vunpack.c.l.b16 %v2596
      %v2713 = vunpack.c.l.b16 %v2597
      %v2714 = vunpack.c.l.b16 %v2598
      %v2715 = vunpack.c.l.b16 %v2599
      %v2716 = vunpack.c.l.b16 %v2600
      %v2717 = vunpack.c.l.b16 %v2601
      %v2718 = vunpack.c.l.b16 %v2602
      %v2719 = vunpack.c.l.b16 %v2603
      %v2720 = vunpack.c.l.b16 %v2604
      %v2721 = vunpack.c.l.b16 %v2605
      %v2722 = vunpack.c.l.b16 %v2606
      %v2723 = vunpack.c.l.b16 %v2607
      %v2724 = vunpack.c.l.b16 %v2608
      %v2725 = vunpack.c.l.b16 %v2609
      %v2726 = vunpack.c.l.b16 %v2610
      %v2727 = vunpack.c.l.b16 %v2611
      %v2728 = vunpack.c.l.b16 %v2612
      %v2729 = vunpack.c.l.b16 %v2613
      %v2730 = vunpack.c.l.b16 %v2614
      %v2731 = vunpack.c.l.b16 %v2615
      %v2732 = vunpack.c.l.b16 %v2616
      %v2733 = vunpack.c.l.b16 %v2617
      %v2734 = vunpack.c.l.b16 %v2618
      %v2735 = vunpack.c.l.b16 %v2619
      %v2736 = vunpack.c.l.b16 %v2620
      %v2737 = vunpack.c.l.b16 %v2621
      %v2738 = vunpack.c.l.b16 %v2622
      %v2739 = vunpack.c.l.b16 %v2623
      %v2740 = vunpack.c.l.b16 %v2624
      %v2741 = vpack.c.b16 %v2706, %v2705
      %v2742 = vpack.c.b16 %v2708, %v2707
      %v2743 = vpack.c.b16 %v2710, %v2709
      %v2744 = vpack.c.b16 %v2712, %v2711
      %v2745 = vpack.c.b16 %v2714, %v2713
      %v2746 = vpack.c.b16 %v2716, %v2715
      %v2747 = vpack.c.b16 %v2718, %v2717
      %v2748 = vpack.c.b16 %v2720, %v2719
      %v2749 = vpack.c.b16 %v2722, %v2721
      %v2750 = vpack.c.b16 %v2724, %v2723
      %v2751 = vpack.c.b16 %v2726, %v2725
      %v2752 = vpack.c.b16 %v2728, %v2727
      %v2753 = vpack.c.b16 %v2730, %v2729
      %v2754 = vpack.c.b16 %v2732, %v2731
      %v2755 = vpack.c.b16 %v2734, %v2733
      %v2756 = vpack.c.b16 %v2736, %v2735
      %v2757 = vpack.c.b16 %v2738, %v2737
      %v2758 = vpack.c.b16 %v2740, %v2739
      %v2778 = vsel %vm1400, %v2631, 0
      %v2781 = vsel %vm1400, %v2634, 0
      %v2784 = vsel %vm1400, %v2637, 0
      %v2787 = vsel %vm1400, %v2640, 0
      %v2790 = vsel %vm1400, %v2643, 0
      %v2793 = vsel %vm1400, %v2646, 0
      %v2796 = vsel %vm1400, %v2649, 0
      %v2799 = vsel %vm1400, %v2652, 0
      %2801 = vmatpush.bf16.msra.mxu0 %v2748
      %2802 = vmatpush.bf16.msra.mxu0 %v2747
      %2803 = vmatpush.bf16.msra.mxu0 %v2746
      %2804 = vmatpush.bf16.msra.mxu0 %v2745
      %2805 = vmatpush.bf16.msra.mxu0 %v2744
      %2806 = vmatpush.bf16.msra.mxu0 %v2743
      %2807 = vmatpush.bf16.msra.mxu0 %v2742
      %2808 = vmatpush.bf16.msra.mxu0 %v2741
      %2809 = vmatmul.bf16.gmra.mxu0 %v2629
      %v2810 = vpop.f32.mrf.mxu0
      %v2811 = vadd.f32 %v2627, %v2810
      %v2812 = vpop.f32.mrf.mxu0
      %v2813 = vadd.f32 %v2627, %v2812
      %2814 = vmatmul.bf16.gmra.mxu0 %v2632
      %v2815 = vpop.f32.mrf.mxu0
      %v2816 = vadd.f32 %v2627, %v2815
      %v2817 = vpop.f32.mrf.mxu0
      %v2818 = vadd.f32 %v2627, %v2817
      %2819 = vmatmul.bf16.gmra.mxu0 %v2635
      %v2820 = vpop.f32.mrf.mxu0
      %v2821 = vadd.f32 %v2627, %v2820
      %v2822 = vpop.f32.mrf.mxu0
      %v2823 = vadd.f32 %v2627, %v2822
      %2824 = vmatmul.bf16.gmra.mxu0 %v2638
      %v2825 = vpop.f32.mrf.mxu0
      %v2826 = vadd.f32 %v2627, %v2825
      %v2827 = vpop.f32.mrf.mxu0
      %v2828 = vadd.f32 %v2627, %v2827
      %2829 = vmatmul.bf16.gmra.mxu0 %v2641
      %v2830 = vpop.f32.mrf.mxu0
      %v2831 = vadd.f32 %v2627, %v2830
      %v2832 = vpop.f32.mrf.mxu0
      %v2833 = vadd.f32 %v2627, %v2832
      %2834 = vmatmul.bf16.gmra.mxu0 %v2644
      %v2835 = vpop.f32.mrf.mxu0
      %v2836 = vadd.f32 %v2627, %v2835
      %v2837 = vpop.f32.mrf.mxu0
      %v2838 = vadd.f32 %v2627, %v2837
      %2839 = vmatmul.bf16.gmra.mxu0 %v2647
      %v2840 = vpop.f32.mrf.mxu0
      %v2841 = vadd.f32 %v2627, %v2840
      %v2842 = vpop.f32.mrf.mxu0
      %v2843 = vadd.f32 %v2627, %v2842
      %2844 = vmatmul.bf16.gmra.mxu0 %v2650
      %v2845 = vpop.f32.mrf.mxu0
      %v2846 = vadd.f32 %v2627, %v2845
      %v2847 = vpop.f32.mrf.mxu0
      %v2848 = vadd.f32 %v2627, %v2847
      %2849 = vdwg.mxu0
      %2850 = vmatpush.bf16.msra.mxu0 %v2756
      %2851 = vmatpush.bf16.msra.mxu0 %v2755
      %2852 = vmatpush.bf16.msra.mxu0 %v2754
      %2853 = vmatpush.bf16.msra.mxu0 %v2753
      %2854 = vmatpush.bf16.msra.mxu0 %v2752
      %2855 = vmatpush.bf16.msra.mxu0 %v2751
      %2856 = vmatpush.bf16.msra.mxu0 %v2750
      %2857 = vmatpush.bf16.msra.mxu0 %v2749
      %2858 = vmatmul.bf16.gmra.mxu0 %v2630
      %v2859 = vpop.f32.mrf.mxu0
      %v2860 = vadd.f32 %v2811, %v2859
      %v2861 = vpop.f32.mrf.mxu0
      %v2862 = vadd.f32 %v2813, %v2861
      %2863 = vmatmul.bf16.gmra.mxu0 %v2633
      %v2864 = vpop.f32.mrf.mxu0
      %v2865 = vadd.f32 %v2816, %v2864
      %v2866 = vpop.f32.mrf.mxu0
      %v2867 = vadd.f32 %v2818, %v2866
      %2868 = vmatmul.bf16.gmra.mxu0 %v2636
      %v2869 = vpop.f32.mrf.mxu0
      %v2870 = vadd.f32 %v2821, %v2869
      %v2871 = vpop.f32.mrf.mxu0
      %v2872 = vadd.f32 %v2823, %v2871
      %2873 = vmatmul.bf16.gmra.mxu0 %v2639
      %v2874 = vpop.f32.mrf.mxu0
      %v2875 = vadd.f32 %v2826, %v2874
      %v2876 = vpop.f32.mrf.mxu0
      %v2877 = vadd.f32 %v2828, %v2876
      %2878 = vmatmul.bf16.gmra.mxu0 %v2642
      %v2879 = vpop.f32.mrf.mxu0
      %v2880 = vadd.f32 %v2831, %v2879
      %v2881 = vpop.f32.mrf.mxu0
      %v2882 = vadd.f32 %v2833, %v2881
      %2883 = vmatmul.bf16.gmra.mxu0 %v2645
      %v2884 = vpop.f32.mrf.mxu0
      %v2885 = vadd.f32 %v2836, %v2884
      %v2886 = vpop.f32.mrf.mxu0
      %v2887 = vadd.f32 %v2838, %v2886
      %2888 = vmatmul.bf16.gmra.mxu0 %v2648
      %v2889 = vpop.f32.mrf.mxu0
      %v2890 = vadd.f32 %v2841, %v2889
      %v2891 = vpop.f32.mrf.mxu0
      %v2892 = vadd.f32 %v2843, %v2891
      %2893 = vmatmul.bf16.gmra.mxu0 %v2651
      %v2894 = vpop.f32.mrf.mxu0
      %v2895 = vadd.f32 %v2846, %v2894
      %v2896 = vpop.f32.mrf.mxu0
      %v2897 = vadd.f32 %v2848, %v2896
      %2898 = vdwg.mxu0
      %2899 = vmatpush.bf16.msra.mxu0 0
      %2900 = vmatpush.bf16.msra.mxu0 0
      %2901 = vmatpush.bf16.msra.mxu0 0
      %2902 = vmatpush.bf16.msra.mxu0 0
      %2903 = vmatpush.bf16.msra.mxu0 0
      %2904 = vmatpush.bf16.msra.mxu0 0
      %2905 = vmatpush.bf16.msra.mxu0 %v2758
      %2906 = vmatpush.bf16.msra.mxu0 %v2757
      %2907 = vmatmul.bf16.gmra.mxu0 %v2778
      %v2908 = vpop.f32.mrf.mxu0
      %v2909 = vadd.f32 %v2860, %v2908
      %v2910 = vpop.f32.mrf.mxu0
      %v2911 = vadd.f32 %v2862, %v2910
      %2912 = vmatmul.bf16.gmra.mxu0 %v2781
      %v2913 = vpop.f32.mrf.mxu0
      %v2914 = vadd.f32 %v2865, %v2913
      %v2915 = vpop.f32.mrf.mxu0
      %v2916 = vadd.f32 %v2867, %v2915
      %2917 = vmatmul.bf16.gmra.mxu0 %v2784
      %v2918 = vpop.f32.mrf.mxu0
      %v2919 = vadd.f32 %v2870, %v2918
      %v2920 = vpop.f32.mrf.mxu0
      %v2921 = vadd.f32 %v2872, %v2920
      %2922 = vmatmul.bf16.gmra.mxu0 %v2787
      %v2923 = vpop.f32.mrf.mxu0
      %v2924 = vadd.f32 %v2875, %v2923
      %v2925 = vpop.f32.mrf.mxu0
      %v2926 = vadd.f32 %v2877, %v2925
      %2927 = vmatmul.bf16.gmra.mxu0 %v2790
      %v2928 = vpop.f32.mrf.mxu0
      %v2929 = vadd.f32 %v2880, %v2928
      %v2930 = vpop.f32.mrf.mxu0
      %v2931 = vadd.f32 %v2882, %v2930
      %2932 = vmatmul.bf16.gmra.mxu0 %v2793
      %v2933 = vpop.f32.mrf.mxu0
      %v2934 = vadd.f32 %v2885, %v2933
      %v2935 = vpop.f32.mrf.mxu0
      %v2936 = vadd.f32 %v2887, %v2935
      %2937 = vmatmul.bf16.gmra.mxu0 %v2796
      %v2938 = vpop.f32.mrf.mxu0
      %v2939 = vadd.f32 %v2890, %v2938
      %v2940 = vpop.f32.mrf.mxu0
      %v2941 = vadd.f32 %v2892, %v2940
      %2942 = vmatmul.bf16.gmra.mxu0 %v2799
      %v2943 = vpop.f32.mrf.mxu0
      %v2944 = vadd.f32 %v2895, %v2943
      %v2945 = vpop.f32.mrf.mxu0
      %v2946 = vadd.f32 %v2897, %v2945
      %2947 = vdwg.mxu0
      %v2948 = vadd.f32 %v2909, 2.0
      %v2949 = vadd.f32 %v2911, 2.0
      %v2950 = vadd.f32 %v2914, 2.0
      %v2951 = vadd.f32 %v2916, 2.0
      %v2952 = vadd.f32 %v2919, 2.0
      %v2953 = vadd.f32 %v2921, 2.0
      %v2954 = vadd.f32 %v2924, 2.0
      %v2955 = vadd.f32 %v2926, 2.0
      %v2956 = vadd.f32 %v2929, 2.0
      %v2957 = vadd.f32 %v2931, 2.0
      %v2958 = vadd.f32 %v2934, 2.0
      %v2959 = vadd.f32 %v2936, 2.0
      %v2960 = vadd.f32 %v2939, 2.0
      %v2961 = vadd.f32 %v2941, 2.0
      %v2962 = vadd.f32 %v2944, 2.0
      %v2963 = vadd.f32 %v2946, 2.0
      %v2964 = vxor.u32 %v2948, 2147483648
      %v2965 = vxor.u32 %v2949, 2147483648
      %v2966 = vxor.u32 %v2950, 2147483648
      %v2967 = vxor.u32 %v2951, 2147483648
      %v2968 = vxor.u32 %v2952, 2147483648
      %v2969 = vxor.u32 %v2953, 2147483648
      %v2970 = vxor.u32 %v2954, 2147483648
      %v2971 = vxor.u32 %v2955, 2147483648
      %v2972 = vxor.u32 %v2956, 2147483648
      %v2973 = vxor.u32 %v2957, 2147483648
      %v2974 = vxor.u32 %v2958, 2147483648
      %v2975 = vxor.u32 %v2959, 2147483648
      %v2976 = vxor.u32 %v2960, 2147483648
      %v2977 = vxor.u32 %v2961, 2147483648
      %v2978 = vxor.u32 %v2962, 2147483648
      %v2979 = vxor.u32 %v2963, 2147483648
      %v2980 = vmul.f32 %v2964, 1.442695
      %v2981 = vpow.pop %v2980
      %v2982 = vmul.f32 %v2965, 1.442695
      %v2983 = vpow.pop %v2982
      %v2984 = vmul.f32 %v2966, 1.442695
      %v2985 = vpow.pop %v2984
      %v2986 = vmul.f32 %v2967, 1.442695
      %v2987 = vpow.pop %v2986
      %v2988 = vmul.f32 %v2968, 1.442695
      %v2989 = vpow.pop %v2988
      %v2990 = vmul.f32 %v2969, 1.442695
      %v2991 = vpow.pop %v2990
      %v2992 = vmul.f32 %v2970, 1.442695
      %v2993 = vpow.pop %v2992
      %v2994 = vmul.f32 %v2971, 1.442695
      %v2995 = vpow.pop %v2994
      %v2996 = vmul.f32 %v2972, 1.442695
      %v2997 = vpow.pop %v2996
      %v2998 = vmul.f32 %v2973, 1.442695
      %v2999 = vpow.pop %v2998
      %v3000 = vmul.f32 %v2974, 1.442695
      %v3001 = vpow.pop %v3000
      %v3002 = vmul.f32 %v2975, 1.442695
      %v3003 = vpow.pop %v3002
      %v3004 = vmul.f32 %v2976, 1.442695
      %v3005 = vpow.pop %v3004
      %v3006 = vmul.f32 %v2977, 1.442695
      %v3007 = vpow.pop %v3006
      %v3008 = vmul.f32 %v2978, 1.442695
      %v3009 = vpow.pop %v3008
      %v3010 = vmul.f32 %v2979, 1.442695
      %v3011 = vpow.pop %v3010
      %v3012 = vadd.f32 %v2981, 1.0
      %v3013 = vadd.f32 %v2983, 1.0
      %v3014 = vadd.f32 %v2985, 1.0
      %v3015 = vadd.f32 %v2987, 1.0
      %v3016 = vadd.f32 %v2989, 1.0
      %v3017 = vadd.f32 %v2991, 1.0
      %v3018 = vadd.f32 %v2993, 1.0
      %v3019 = vadd.f32 %v2995, 1.0
      %v3020 = vadd.f32 %v2997, 1.0
      %v3021 = vadd.f32 %v2999, 1.0
      %v3022 = vadd.f32 %v3001, 1.0
      %v3023 = vadd.f32 %v3003, 1.0
      %v3024 = vadd.f32 %v3005, 1.0
      %v3025 = vadd.f32 %v3007, 1.0
      %v3026 = vadd.f32 %v3009, 1.0
      %v3027 = vadd.f32 %v3011, 1.0
      %v3028 = vrcp.pop %v3012
      %v3029 = vmul.f32 %v3012, %v3028
      %v3030 = vsub.f32 1.0, %v3029
      %v3031 = vmul.f32 %v3028, %v3030
      %v3032 = vadd.f32 %v3028, %v3031
      %vm3033 = vweird.f32 %v3012
      %vm3034 = vweird.f32 %v3028
      %vm3035 = vmor %vm3033, %vm3034
      %v3036 = vsel %vm3035, %v3028, %v3032
      %v3037 = vand.u32 2147483647, %v3012
      %vm3038 = vcmp.eq.f32.partialorder %v3037, 8.507059e+37
      %v3039 = vand.u32 %v3012, 2147483648
      %v3040 = vor.u32 1.1754944e-38, %v3039
      %v3041 = vsel %vm3038, %v3040, %v3036
      %v3042 = vmul.f32 1.0, %v3041
      %v3043 = vrcp.pop %v3013
      %v3044 = vmul.f32 %v3013, %v3043
      %v3045 = vsub.f32 1.0, %v3044
      %v3046 = vmul.f32 %v3043, %v3045
      %v3047 = vadd.f32 %v3043, %v3046
      %vm3048 = vweird.f32 %v3013
      %vm3049 = vweird.f32 %v3043
      %vm3050 = vmor %vm3048, %vm3049
      %v3051 = vsel %vm3050, %v3043, %v3047
      %v3052 = vand.u32 2147483647, %v3013
      %vm3053 = vcmp.eq.f32.partialorder %v3052, 8.507059e+37
      %v3054 = vand.u32 %v3013, 2147483648
      %v3055 = vor.u32 1.1754944e-38, %v3054
      %v3056 = vsel %vm3053, %v3055, %v3051
      %v3057 = vmul.f32 1.0, %v3056
      %v3058 = vrcp.pop %v3014
      %v3059 = vmul.f32 %v3014, %v3058
      %v3060 = vsub.f32 1.0, %v3059
      %v3061 = vmul.f32 %v3058, %v3060
      %v3062 = vadd.f32 %v3058, %v3061
      %vm3063 = vweird.f32 %v3014
      %vm3064 = vweird.f32 %v3058
      %vm3065 = vmor %vm3063, %vm3064
      %v3066 = vsel %vm3065, %v3058, %v3062
      %v3067 = vand.u32 2147483647, %v3014
      %vm3068 = vcmp.eq.f32.partialorder %v3067, 8.507059e+37
      %v3069 = vand.u32 %v3014, 2147483648
      %v3070 = vor.u32 1.1754944e-38, %v3069
      %v3071 = vsel %vm3068, %v3070, %v3066
      %v3072 = vmul.f32 1.0, %v3071
      %v3073 = vrcp.pop %v3015
      %v3074 = vmul.f32 %v3015, %v3073
      %v3075 = vsub.f32 1.0, %v3074
      %v3076 = vmul.f32 %v3073, %v3075
      %v3077 = vadd.f32 %v3073, %v3076
      %vm3078 = vweird.f32 %v3015
      %vm3079 = vweird.f32 %v3073
      %vm3080 = vmor %vm3078, %vm3079
      %v3081 = vsel %vm3080, %v3073, %v3077
      %v3082 = vand.u32 2147483647, %v3015
      %vm3083 = vcmp.eq.f32.partialorder %v3082, 8.507059e+37
      %v3084 = vand.u32 %v3015, 2147483648
      %v3085 = vor.u32 1.1754944e-38, %v3084
      %v3086 = vsel %vm3083, %v3085, %v3081
      %v3087 = vmul.f32 1.0, %v3086
      %v3088 = vrcp.pop %v3016
      %v3089 = vmul.f32 %v3016, %v3088
      %v3090 = vsub.f32 1.0, %v3089
      %v3091 = vmul.f32 %v3088, %v3090
      %v3092 = vadd.f32 %v3088, %v3091
      %vm3093 = vweird.f32 %v3016
      %vm3094 = vweird.f32 %v3088
      %vm3095 = vmor %vm3093, %vm3094
      %v3096 = vsel %vm3095, %v3088, %v3092
      %v3097 = vand.u32 2147483647, %v3016
      %vm3098 = vcmp.eq.f32.partialorder %v3097, 8.507059e+37
      %v3099 = vand.u32 %v3016, 2147483648
      %v3100 = vor.u32 1.1754944e-38, %v3099
      %v3101 = vsel %vm3098, %v3100, %v3096
      %v3102 = vmul.f32 1.0, %v3101
      %v3103 = vrcp.pop %v3017
      %v3104 = vmul.f32 %v3017, %v3103
      %v3105 = vsub.f32 1.0, %v3104
      %v3106 = vmul.f32 %v3103, %v3105
      %v3107 = vadd.f32 %v3103, %v3106
      %vm3108 = vweird.f32 %v3017
      %vm3109 = vweird.f32 %v3103
      %vm3110 = vmor %vm3108, %vm3109
      %v3111 = vsel %vm3110, %v3103, %v3107
      %v3112 = vand.u32 2147483647, %v3017
      %vm3113 = vcmp.eq.f32.partialorder %v3112, 8.507059e+37
      %v3114 = vand.u32 %v3017, 2147483648
      %v3115 = vor.u32 1.1754944e-38, %v3114
      %v3116 = vsel %vm3113, %v3115, %v3111
      %v3117 = vmul.f32 1.0, %v3116
      %v3118 = vrcp.pop %v3018
      %v3119 = vmul.f32 %v3018, %v3118
      %v3120 = vsub.f32 1.0, %v3119
      %v3121 = vmul.f32 %v3118, %v3120
      %v3122 = vadd.f32 %v3118, %v3121
      %vm3123 = vweird.f32 %v3018
      %vm3124 = vweird.f32 %v3118
      %vm3125 = vmor %vm3123, %vm3124
      %v3126 = vsel %vm3125, %v3118, %v3122
      %v3127 = vand.u32 2147483647, %v3018
      %vm3128 = vcmp.eq.f32.partialorder %v3127, 8.507059e+37
      %v3129 = vand.u32 %v3018, 2147483648
      %v3130 = vor.u32 1.1754944e-38, %v3129
      %v3131 = vsel %vm3128, %v3130, %v3126
      %v3132 = vmul.f32 1.0, %v3131
      %v3133 = vrcp.pop %v3019
      %v3134 = vmul.f32 %v3019, %v3133
      %v3135 = vsub.f32 1.0, %v3134
      %v3136 = vmul.f32 %v3133, %v3135
      %v3137 = vadd.f32 %v3133, %v3136
      %vm3138 = vweird.f32 %v3019
      %vm3139 = vweird.f32 %v3133
      %vm3140 = vmor %vm3138, %vm3139
      %v3141 = vsel %vm3140, %v3133, %v3137
      %v3142 = vand.u32 2147483647, %v3019
      %vm3143 = vcmp.eq.f32.partialorder %v3142, 8.507059e+37
      %v3144 = vand.u32 %v3019, 2147483648
      %v3145 = vor.u32 1.1754944e-38, %v3144
      %v3146 = vsel %vm3143, %v3145, %v3141
      %v3147 = vmul.f32 1.0, %v3146
      %v3148 = vrcp.pop %v3020
      %v3149 = vmul.f32 %v3020, %v3148
      %v3150 = vsub.f32 1.0, %v3149
      %v3151 = vmul.f32 %v3148, %v3150
      %v3152 = vadd.f32 %v3148, %v3151
      %vm3153 = vweird.f32 %v3020
      %vm3154 = vweird.f32 %v3148
      %vm3155 = vmor %vm3153, %vm3154
      %v3156 = vsel %vm3155, %v3148, %v3152
      %v3157 = vand.u32 2147483647, %v3020
      %vm3158 = vcmp.eq.f32.partialorder %v3157, 8.507059e+37
      %v3159 = vand.u32 %v3020, 2147483648
      %v3160 = vor.u32 1.1754944e-38, %v3159
      %v3161 = vsel %vm3158, %v3160, %v3156
      %v3162 = vmul.f32 1.0, %v3161
      %v3163 = vrcp.pop %v3021
      %v3164 = vmul.f32 %v3021, %v3163
      %v3165 = vsub.f32 1.0, %v3164
      %v3166 = vmul.f32 %v3163, %v3165
      %v3167 = vadd.f32 %v3163, %v3166
      %vm3168 = vweird.f32 %v3021
      %vm3169 = vweird.f32 %v3163
      %vm3170 = vmor %vm3168, %vm3169
      %v3171 = vsel %vm3170, %v3163, %v3167
      %v3172 = vand.u32 2147483647, %v3021
      %vm3173 = vcmp.eq.f32.partialorder %v3172, 8.507059e+37
      %v3174 = vand.u32 %v3021, 2147483648
      %v3175 = vor.u32 1.1754944e-38, %v3174
      %v3176 = vsel %vm3173, %v3175, %v3171
      %v3177 = vmul.f32 1.0, %v3176
      %v3178 = vrcp.pop %v3022
      %v3179 = vmul.f32 %v3022, %v3178
      %v3180 = vsub.f32 1.0, %v3179
      %v3181 = vmul.f32 %v3178, %v3180
      %v3182 = vadd.f32 %v3178, %v3181
      %vm3183 = vweird.f32 %v3022
      %vm3184 = vweird.f32 %v3178
      %vm3185 = vmor %vm3183, %vm3184
      %v3186 = vsel %vm3185, %v3178, %v3182
      %v3187 = vand.u32 2147483647, %v3022
      %vm3188 = vcmp.eq.f32.partialorder %v3187, 8.507059e+37
      %v3189 = vand.u32 %v3022, 2147483648
      %v3190 = vor.u32 1.1754944e-38, %v3189
      %v3191 = vsel %vm3188, %v3190, %v3186
      %v3192 = vmul.f32 1.0, %v3191
      %v3193 = vrcp.pop %v3023
      %v3194 = vmul.f32 %v3023, %v3193
      %v3195 = vsub.f32 1.0, %v3194
      %v3196 = vmul.f32 %v3193, %v3195
      %v3197 = vadd.f32 %v3193, %v3196
      %vm3198 = vweird.f32 %v3023
      %vm3199 = vweird.f32 %v3193
      %vm3200 = vmor %vm3198, %vm3199
      %v3201 = vsel %vm3200, %v3193, %v3197
      %v3202 = vand.u32 2147483647, %v3023
      %vm3203 = vcmp.eq.f32.partialorder %v3202, 8.507059e+37
      %v3204 = vand.u32 %v3023, 2147483648
      %v3205 = vor.u32 1.1754944e-38, %v3204
      %v3206 = vsel %vm3203, %v3205, %v3201
      %v3207 = vmul.f32 1.0, %v3206
      %v3208 = vrcp.pop %v3024
      %v3209 = vmul.f32 %v3024, %v3208
      %v3210 = vsub.f32 1.0, %v3209
      %v3211 = vmul.f32 %v3208, %v3210
      %v3212 = vadd.f32 %v3208, %v3211
      %vm3213 = vweird.f32 %v3024
      %vm3214 = vweird.f32 %v3208
      %vm3215 = vmor %vm3213, %vm3214
      %v3216 = vsel %vm3215, %v3208, %v3212
      %v3217 = vand.u32 2147483647, %v3024
      %vm3218 = vcmp.eq.f32.partialorder %v3217, 8.507059e+37
      %v3219 = vand.u32 %v3024, 2147483648
      %v3220 = vor.u32 1.1754944e-38, %v3219
      %v3221 = vsel %vm3218, %v3220, %v3216
      %v3222 = vmul.f32 1.0, %v3221
      %v3223 = vrcp.pop %v3025
      %v3224 = vmul.f32 %v3025, %v3223
      %v3225 = vsub.f32 1.0, %v3224
      %v3226 = vmul.f32 %v3223, %v3225
      %v3227 = vadd.f32 %v3223, %v3226
      %vm3228 = vweird.f32 %v3025
      %vm3229 = vweird.f32 %v3223
      %vm3230 = vmor %vm3228, %vm3229
      %v3231 = vsel %vm3230, %v3223, %v3227
      %v3232 = vand.u32 2147483647, %v3025
      %vm3233 = vcmp.eq.f32.partialorder %v3232, 8.507059e+37
      %v3234 = vand.u32 %v3025, 2147483648
      %v3235 = vor.u32 1.1754944e-38, %v3234
      %v3236 = vsel %vm3233, %v3235, %v3231
      %v3237 = vmul.f32 1.0, %v3236
      %v3238 = vrcp.pop %v3026
      %v3239 = vmul.f32 %v3026, %v3238
      %v3240 = vsub.f32 1.0, %v3239
      %v3241 = vmul.f32 %v3238, %v3240
      %v3242 = vadd.f32 %v3238, %v3241
      %vm3243 = vweird.f32 %v3026
      %vm3244 = vweird.f32 %v3238
      %vm3245 = vmor %vm3243, %vm3244
      %v3246 = vsel %vm3245, %v3238, %v3242
      %v3247 = vand.u32 2147483647, %v3026
      %vm3248 = vcmp.eq.f32.partialorder %v3247, 8.507059e+37
      %v3249 = vand.u32 %v3026, 2147483648
      %v3250 = vor.u32 1.1754944e-38, %v3249
      %v3251 = vsel %vm3248, %v3250, %v3246
      %v3252 = vmul.f32 1.0, %v3251
      %v3253 = vrcp.pop %v3027
      %v3254 = vmul.f32 %v3027, %v3253
      %v3255 = vsub.f32 1.0, %v3254
      %v3256 = vmul.f32 %v3253, %v3255
      %v3257 = vadd.f32 %v3253, %v3256
      %vm3258 = vweird.f32 %v3027
      %vm3259 = vweird.f32 %v3253
      %vm3260 = vmor %vm3258, %vm3259
      %v3261 = vsel %vm3260, %v3253, %v3257
      %v3262 = vand.u32 2147483647, %v3027
      %vm3263 = vcmp.eq.f32.partialorder %v3262, 8.507059e+37
      %v3264 = vand.u32 %v3027, 2147483648
      %v3265 = vor.u32 1.1754944e-38, %v3264
      %v3266 = vsel %vm3263, %v3265, %v3261
      %v3267 = vmul.f32 1.0, %v3266
      %v3268 = vadd.f32 %v732, %v2909
      %v3269 = vadd.f32 %v734, %v2911
      %v3270 = vadd.f32 %v737, %v2914
      %v3271 = vadd.f32 %v739, %v2916
      %v3272 = vadd.f32 %v742, %v2919
      %v3273 = vadd.f32 %v744, %v2921
      %v3274 = vadd.f32 %v747, %v2924
      %v3275 = vadd.f32 %v749, %v2926
      %v3276 = vadd.f32 %v752, %v2929
      %v3277 = vadd.f32 %v754, %v2931
      %v3278 = vadd.f32 %v757, %v2934
      %v3279 = vadd.f32 %v759, %v2936
      %v3280 = vadd.f32 %v762, %v2939
      %v3281 = vadd.f32 %v764, %v2941
      %v3282 = vadd.f32 %v767, %v2944
      %v3283 = vadd.f32 %v769, %v2946
      %3300 = vrot.lane.b32.xlu0 %v3042, 8
      %v3301 = vpop.permute.xlu0 %3300
      %3302 = vrot.lane.b32.xlu0 %v3057, 8
      %v3303 = vpop.permute.xlu0 %3302
      %3304 = vrot.lane.b32.xlu0 %v3072, 8
      %v3305 = vpop.permute.xlu0 %3304
      %3306 = vrot.lane.b32.xlu0 %v3087, 8
      %v3307 = vpop.permute.xlu0 %3306
      %3308 = vrot.lane.b32.xlu0 %v3102, 8
      %v3309 = vpop.permute.xlu0 %3308
      %3310 = vrot.lane.b32.xlu0 %v3117, 8
      %v3311 = vpop.permute.xlu0 %3310
      %3312 = vrot.lane.b32.xlu0 %v3132, 8
      %v3313 = vpop.permute.xlu0 %3312
      %3314 = vrot.lane.b32.xlu0 %v3147, 8
      %v3315 = vpop.permute.xlu0 %3314
      %3316 = vrot.lane.b32.xlu0 %v3162, 8
      %v3317 = vpop.permute.xlu0 %3316
      %3318 = vrot.lane.b32.xlu0 %v3177, 8
      %v3319 = vpop.permute.xlu0 %3318
      %3320 = vrot.lane.b32.xlu0 %v3192, 8
      %v3321 = vpop.permute.xlu0 %3320
      %3322 = vrot.lane.b32.xlu0 %v3207, 8
      %v3323 = vpop.permute.xlu0 %3322
      %3324 = vrot.lane.b32.xlu0 %v3222, 8
      %v3325 = vpop.permute.xlu0 %3324
      %3326 = vrot.lane.b32.xlu0 %v3237, 8
      %v3327 = vpop.permute.xlu0 %3326
      %3328 = vrot.lane.b32.xlu0 %v3252, 8
      %v3329 = vpop.permute.xlu0 %3328
      %3330 = vrot.lane.b32.xlu0 %v3267, 8
      %v3331 = vpop.permute.xlu0 %3330
      %v3348 = vmul.f32 %v3268, %v3301
      %v3349 = vmul.f32 %v3269, %v3303
      %v3350 = vmul.f32 %v3270, %v3305
      %v3351 = vmul.f32 %v3271, %v3307
      %v3352 = vmul.f32 %v3272, %v3309
      %v3353 = vmul.f32 %v3273, %v3311
      %v3354 = vmul.f32 %v3274, %v3313
      %v3355 = vmul.f32 %v3275, %v3315
      %v3356 = vmul.f32 %v3276, %v3317
      %v3357 = vmul.f32 %v3277, %v3319
      %v3358 = vmul.f32 %v3278, %v3321
      %v3359 = vmul.f32 %v3279, %v3323
      %v3360 = vmul.f32 %v3280, %v3325
      %v3361 = vmul.f32 %v3281, %v3327
      %v3362 = vmul.f32 %v3282, %v3329
      %v3363 = vmul.f32 %v3283, %v3331
      %v3364 = vsel %vm1291, %v732, %v3348
      %v3365 = vsel %vm1291, %v734, %v3349
      %v3366 = vsel %vm1291, %v737, %v3350
      %v3367 = vsel %vm1291, %v739, %v3351
      %v3368 = vsel %vm1291, %v742, %v3352
      %v3369 = vsel %vm1291, %v744, %v3353
      %v3370 = vsel %vm1291, %v747, %v3354
      %v3371 = vsel %vm1291, %v749, %v3355
      %v3372 = vsel %vm1291, %v752, %v3356
      %v3373 = vsel %vm1291, %v754, %v3357
      %v3374 = vsel %vm1291, %v757, %v3358
      %v3375 = vsel %vm1291, %v759, %v3359
      %v3376 = vsel %vm1291, %v762, %v3360
      %v3377 = vsel %vm1291, %v764, %v3361
      %v3378 = vsel %vm1291, %v767, %v3362
      %v3379 = vsel %vm1291, %v769, %v3363
      %3380 = vst.msk [vmem:[%s608] sm:$0xff] %vm697, %v3364
      %3381 = vst.msk [vmem:[%s608 + $0x8] sm:$0xff] %vm697, %v3365
      %3382 = vst.msk [vmem:[%s608 + $0x10] sm:$0xff] %vm697, %v3366
      %3383 = vst.msk [vmem:[%s608 + $0x18] sm:$0xff] %vm697, %v3367
      %3384 = vst.msk [vmem:[%s608 + $0x20] sm:$0xff] %vm697, %v3368
      %3385 = vst.msk [vmem:[%s608 + $0x28] sm:$0xff] %vm697, %v3369
      %3386 = vst.msk [vmem:[%s608 + $0x30] sm:$0xff] %vm697, %v3370
      %3387 = vst.msk [vmem:[%s608 + $0x38] sm:$0xff] %vm697, %v3371
      %3388 = vst.msk [vmem:[%s608 + $0x40] sm:$0xff] %vm697, %v3372
      %3389 = vst.msk [vmem:[%s608 + $0x48] sm:$0xff] %vm697, %v3373
      %3390 = vst.msk [vmem:[%s608 + $0x50] sm:$0xff] %vm697, %v3374
      %3391 = vst.msk [vmem:[%s608 + $0x58] sm:$0xff] %vm697, %v3375
      %3392 = vst.msk [vmem:[%s608 + $0x60] sm:$0xff] %vm697, %v3376
      %3393 = vst.msk [vmem:[%s608 + $0x68] sm:$0xff] %vm697, %v3377
      %3394 = vst.msk [vmem:[%s608 + $0x70] sm:$0xff] %vm697, %v3378
      %3395 = vst.msk [vmem:[%s608 + $0x78] sm:$0xff] %vm697, %v3379
      %v3396 = vlog2.pop %v3042
      %v3397 = vmul.f32 %v3396, 0.6931472
      %v3398 = vlog2.pop %v3057
      %v3399 = vmul.f32 %v3398, 0.6931472
      %v3400 = vlog2.pop %v3072
      %v3401 = vmul.f32 %v3400, 0.6931472
      %v3402 = vlog2.pop %v3087
      %v3403 = vmul.f32 %v3402, 0.6931472
      %v3404 = vlog2.pop %v3102
      %v3405 = vmul.f32 %v3404, 0.6931472
      %v3406 = vlog2.pop %v3117
      %v3407 = vmul.f32 %v3406, 0.6931472
      %v3408 = vlog2.pop %v3132
      %v3409 = vmul.f32 %v3408, 0.6931472
      %v3410 = vlog2.pop %v3147
      %v3411 = vmul.f32 %v3410, 0.6931472
      %v3412 = vlog2.pop %v3162
      %v3413 = vmul.f32 %v3412, 0.6931472
      %v3414 = vlog2.pop %v3177
      %v3415 = vmul.f32 %v3414, 0.6931472
      %v3416 = vlog2.pop %v3192
      %v3417 = vmul.f32 %v3416, 0.6931472
      %v3418 = vlog2.pop %v3207
      %v3419 = vmul.f32 %v3418, 0.6931472
      %v3420 = vlog2.pop %v3222
      %v3421 = vmul.f32 %v3420, 0.6931472
      %v3422 = vlog2.pop %v3237
      %v3423 = vmul.f32 %v3422, 0.6931472
      %v3424 = vlog2.pop %v3252
      %v3425 = vmul.f32 %v3424, 0.6931472
      %v3426 = vlog2.pop %v3267
      %v3427 = vmul.f32 %v3426, 0.6931472
      %v3428 = vld [vmem:[#allocation2] sm:$0x1]
      %v3429 = vld [vmem:[#allocation2 + $0x1] sm:$0x1]
      %v3430 = vsel %vm1291, %v3397, 0.0
      %3431 = vadd.xlane.f32.xlu0 %v3430
      %v3432 = vpop.xlane.xlu0 %3431
      %v3433 = vsel %vm1291, %v3399, 0.0
      %3434 = vadd.xlane.f32.xlu0 %v3433
      %v3435 = vpop.xlane.xlu0 %3434
      %v3436 = vsel %vm1291, %v3401, 0.0
      %3437 = vadd.xlane.f32.xlu0 %v3436
      %v3438 = vpop.xlane.xlu0 %3437
      %v3439 = vsel %vm1291, %v3403, 0.0
      %3440 = vadd.xlane.f32.xlu0 %v3439
      %v3441 = vpop.xlane.xlu0 %3440
      %v3442 = vsel %vm1291, %v3405, 0.0
      %3443 = vadd.xlane.f32.xlu0 %v3442
      %v3444 = vpop.xlane.xlu0 %3443
      %v3445 = vsel %vm1291, %v3407, 0.0
      %3446 = vadd.xlane.f32.xlu0 %v3445
      %v3447 = vpop.xlane.xlu0 %3446
      %v3448 = vsel %vm1291, %v3409, 0.0
      %3449 = vadd.xlane.f32.xlu0 %v3448
      %v3450 = vpop.xlane.xlu0 %3449
      %v3451 = vsel %vm1291, %v3411, 0.0
      %3452 = vadd.xlane.f32.xlu0 %v3451
      %v3453 = vpop.xlane.xlu0 %3452
      %v3454 = vsel %vm1291, %v3413, 0.0
      %3455 = vadd.xlane.f32.xlu0 %v3454
      %v3456 = vpop.xlane.xlu0 %3455
      %v3457 = vsel %vm1291, %v3415, 0.0
      %3458 = vadd.xlane.f32.xlu0 %v3457
      %v3459 = vpop.xlane.xlu0 %3458
      %v3460 = vsel %vm1291, %v3417, 0.0
      %3461 = vadd.xlane.f32.xlu0 %v3460
      %v3462 = vpop.xlane.xlu0 %3461
      %v3463 = vsel %vm1291, %v3419, 0.0
      %3464 = vadd.xlane.f32.xlu0 %v3463
      %v3465 = vpop.xlane.xlu0 %3464
      %v3466 = vsel %vm1291, %v3421, 0.0
      %3467 = vadd.xlane.f32.xlu0 %v3466
      %v3468 = vpop.xlane.xlu0 %3467
      %v3469 = vsel %vm1291, %v3423, 0.0
      %3470 = vadd.xlane.f32.xlu0 %v3469
      %v3471 = vpop.xlane.xlu0 %3470
      %v3472 = vsel %vm1291, %v3425, 0.0
      %3473 = vadd.xlane.f32.xlu0 %v3472
      %v3474 = vpop.xlane.xlu0 %3473
      %v3475 = vsel %vm1291, %v3427, 0.0
      %3476 = vadd.xlane.f32.xlu0 %v3475
      %v3477 = vpop.xlane.xlu0 %3476
      %v3478 = vadd.f32 %v3432, %v3435
      %v3479 = vadd.f32 %v3478, %v3438
      %v3480 = vadd.f32 %v3479, %v3441
      %v3481 = vadd.f32 %v3480, %v3444
      %v3482 = vadd.f32 %v3481, %v3447
      %v3483 = vadd.f32 %v3482, %v3450
      %v3484 = vadd.f32 %v3483, %v3453
      %v3485 = vrot.slane %v3484, 4
      %v3486 = vadd.f32 %v3484, %v3485
      %v3487 = vrot.slane %v3486, 2
      %v3488 = vadd.f32 %v3486, %v3487
      %v3489 = vrot.slane %v3488, 1
      %v3490 = vadd.f32 %v3488, %v3489
      %v3491 = vadd.f32 %v3456, %v3459
      %v3492 = vadd.f32 %v3491, %v3462
      %v3493 = vadd.f32 %v3492, %v3465
      %v3494 = vadd.f32 %v3493, %v3468
      %v3495 = vadd.f32 %v3494, %v3471
      %v3496 = vadd.f32 %v3495, %v3474
      %v3497 = vadd.f32 %v3496, %v3477
      %v3498 = vrot.slane %v3497, 4
      %v3499 = vadd.f32 %v3497, %v3498
      %v3500 = vrot.slane %v3499, 2
      %v3501 = vadd.f32 %v3499, %v3500
      %v3502 = vrot.slane %v3501, 1
      %v3503 = vadd.f32 %v3501, %v3502
      %v3504 = vadd.f32 %v3428, %v3490
      %v3505 = vadd.f32 %v3429, %v3503
      %vm3506 = vcmask 0
      %3507 = vst.msk [vmem:[#allocation2] sm:$0x1] %vm3506, %v3504
      %3508 = vst.msk [vmem:[#allocation2 + $0x1] sm:$0x1] %vm3506, %v3505
      %p3509 = scmp.eq.s32.totalorder %s30, 1
      // Predicated region
      $region69: #{glow_block_forward.1} parent=63 // pred_check
        %p3510 = pneg %p3509
      $region70: #{glow_block_forward.1} parent=63 // pred_check_branch
        %3512 = sbr.rel (%p3510) target = $region72
      $region71: #{glow_block_forward.1} parent=63 // pred_region
        %v3513 = vld [vmem:[#allocation2] sm:$0x1]
        %v3514 = vld [vmem:[#allocation2 + $0x1] sm:$0x1]
        %3515 = vst.msk [vmem:[%s613] sm:$0x1] %vm3506, %v3513
        %3516 = vst.msk [vmem:[%s613 + $0x1] sm:$0x1] %vm3506, %v3514
        %v3517 = vsel %vm773, %v775, 1.0
        %v3518 = vsel %vm773, %v776, 1.0
        %v3519 = vsel %vm773, %v777, 1.0
        %v3520 = vsel %vm773, %v778, 1.0
        %v3521 = vsel %vm773, %v779, 1.0
        %v3522 = vsel %vm773, %v780, 1.0
        %v3523 = vsel %vm773, %v781, 1.0
        %v3524 = vsel %vm773, %v782, 1.0
        %v3525 = vsel %vm773, %v783, 1.0
        %v3526 = vsel %vm773, %v784, 1.0
        %v3527 = vsel %vm773, %v785, 1.0
        %v3528 = vsel %vm773, %v786, 1.0
        %v3529 = vsel %vm773, %v787, 1.0
        %v3530 = vsel %vm773, %v788, 1.0
        %v3531 = vpack.c.bf16 %v3517, %v3517
        %v3532 = vpack.c.bf16 %v3518, %v3518
        %v3533 = vpack.c.bf16 %v3519, %v3519
        %v3534 = vpack.c.bf16 %v3520, %v3520
        %v3535 = vpack.c.bf16 %v3521, %v3521
        %v3536 = vpack.c.bf16 %v3522, %v3522
        %v3537 = vpack.c.bf16 %v3523, %v3523
        %v3538 = vpack.c.bf16 %v3524, %v3524
        %v3539 = vpack.c.bf16 %v3525, %v3525
        %v3540 = vpack.c.bf16 %v3526, %v3526
        %v3541 = vpack.c.bf16 %v3527, %v3527
        %v3542 = vpack.c.bf16 %v3528, %v3528
        %v3543 = vpack.c.bf16 %v3529, %v3529
        %v3544 = vpack.c.bf16 %v3530, %v3530
        %v3545 = vsel %vm774, %v834, 1.0
        %v3546 = vsel %vm774, %v835, 1.0
        %v3547 = vsel %vm774, %v836, 1.0
        %v3548 = vsel %vm774, %v837, 1.0
        %v3549 = vsel %vm774, %v838, 1.0
        %v3550 = vsel %vm774, %v839, 1.0
        %v3551 = vsel %vm774, %v840, 1.0
        %v3552 = vsel %vm774, %v841, 1.0
        %v3553 = vsel %vm774, %v842, 1.0
        %v3554 = vsel %vm774, %v843, 1.0
        %v3555 = vsel %vm774, %v844, 1.0
        %v3556 = vsel %vm774, %v845, 1.0
        %v3557 = vsel %vm774, %v846, 1.0
        %v3558 = vsel %vm774, %v847, 1.0
        %v3559 = vpack.c.bf16 %v3545, %v3545
        %v3560 = vpack.c.bf16 %v3546, %v3546
        %v3561 = vpack.c.bf16 %v3547, %v3547
        %v3562 = vpack.c.bf16 %v3548, %v3548
        %v3563 = vpack.c.bf16 %v3549, %v3549
        %v3564 = vpack.c.bf16 %v3550, %v3550
        %v3565 = vpack.c.bf16 %v3551, %v3551
        %v3566 = vpack.c.bf16 %v3552, %v3552
        %v3567 = vpack.c.bf16 %v3553, %v3553
        %v3568 = vpack.c.bf16 %v3554, %v3554
        %v3569 = vpack.c.bf16 %v3555, %v3555
        %v3570 = vpack.c.bf16 %v3556, %v3556
        %v3571 = vpack.c.bf16 %v3557, %v3557
        %v3572 = vpack.c.bf16 %v3558, %v3558
        %v3573 = vsel %vm773, %v878, 1.0
        %v3574 = vsel %vm773, %v879, 1.0
        %v3575 = vpack.c.bf16 %v3573, %v3573
        %v3576 = vpack.c.bf16 %v3574, %v3574
        %v3577 = vsel %vm774, %v886, 1.0
        %v3578 = vsel %vm774, %v887, 1.0
        %v3579 = vpack.c.bf16 %v3577, %v3577
        %v3580 = vpack.c.bf16 %v3578, %v3578
        %3581 = vrot.lane.b32.xlu0 %v2000, 8
        %v3582 = vpop.permute.xlu0 %3581
        %v3597 = vunpack.c.l.b16 %v3559
        %v3598 = vunpack.c.l.b16 %v3560
        %v3599 = vunpack.c.l.b16 %v3561
        %v3600 = vunpack.c.l.b16 %v3562
        %v3601 = vunpack.c.l.b16 %v3563
        %v3602 = vunpack.c.l.b16 %v3564
        %v3603 = vunpack.c.l.b16 %v3565
        %v3604 = vunpack.c.l.b16 %v3566
        %v3605 = vunpack.c.l.b16 %v3567
        %v3606 = vunpack.c.l.b16 %v3568
        %v3607 = vunpack.c.l.b16 %v3569
        %v3608 = vunpack.c.l.b16 %v3570
        %v3609 = vunpack.c.l.b16 %v3571
        %v3610 = vunpack.c.l.b16 %v3572
        %v3611 = vpack.c.b16 %v3597, %v3597
        %v3612 = vpack.c.b16 %v3598, %v3598
        %v3613 = vpack.c.b16 %v3599, %v3599
        %v3614 = vpack.c.b16 %v3600, %v3600
        %v3615 = vpack.c.b16 %v3601, %v3601
        %v3616 = vpack.c.b16 %v3602, %v3602
        %v3617 = vpack.c.b16 %v3603, %v3603
        %v3618 = vpack.c.b16 %v3604, %v3604
        %v3619 = vpack.c.b16 %v3605, %v3605
        %v3620 = vpack.c.b16 %v3606, %v3606
        %v3621 = vpack.c.b16 %v3607, %v3607
        %v3622 = vpack.c.b16 %v3608, %v3608
        %v3623 = vpack.c.b16 %v3609, %v3609
        %v3624 = vpack.c.b16 %v3610, %v3610
        %3625 = vrot.lane.b32.xlu0 %v2075, 16
        %v3626 = vpop.permute.xlu0 %3625
        %3627 = vrot.lane.b32.xlu0 %v3611, 16
        %v3628 = vpop.permute.xlu0 %3627
        %3629 = vrot.lane.b32.xlu0 %v3612, 16
        %v3630 = vpop.permute.xlu0 %3629
        %3631 = vrot.lane.b32.xlu0 %v3613, 16
        %v3632 = vpop.permute.xlu0 %3631
        %3633 = vrot.lane.b32.xlu0 %v3614, 16
        %v3634 = vpop.permute.xlu0 %3633
        %3635 = vrot.lane.b32.xlu0 %v3615, 16
        %v3636 = vpop.permute.xlu0 %3635
        %3637 = vrot.lane.b32.xlu0 %v3616, 16
        %v3638 = vpop.permute.xlu0 %3637
        %3639 = vrot.lane.b32.xlu0 %v3617, 16
        %v3640 = vpop.permute.xlu0 %3639
        %3641 = vrot.lane.b32.xlu0 %v3618, 16
        %v3642 = vpop.permute.xlu0 %3641
        %3643 = vrot.lane.b32.xlu0 %v3619, 16
        %v3644 = vpop.permute.xlu0 %3643
        %3645 = vrot.lane.b32.xlu0 %v3620, 16
        %v3646 = vpop.permute.xlu0 %3645
        %3647 = vrot.lane.b32.xlu0 %v3621, 16
        %v3648 = vpop.permute.xlu0 %3647
        %3649 = vrot.lane.b32.xlu0 %v3622, 16
        %v3650 = vpop.permute.xlu0 %3649
        %3651 = vrot.lane.b32.xlu0 %v3623, 16
        %v3652 = vpop.permute.xlu0 %3651
        %3653 = vrot.lane.b32.xlu0 %v3624, 16
        %v3654 = vpop.permute.xlu0 %3653
        %v3671 = vunpack.c.l.b16 %v3531
        %v3672 = vunpack.c.l.b16 %v3532
        %v3673 = vunpack.c.l.b16 %v3533
        %v3674 = vunpack.c.l.b16 %v3534
        %v3675 = vunpack.c.l.b16 %v3535
        %v3676 = vunpack.c.l.b16 %v3536
        %v3677 = vunpack.c.l.b16 %v3537
        %v3678 = vunpack.c.l.b16 %v3575
        %v3679 = vunpack.c.l.b16 %v3538
        %v3680 = vunpack.c.l.b16 %v3539
        %v3681 = vunpack.c.l.b16 %v3540
        %v3682 = vunpack.c.l.b16 %v3541
        %v3683 = vunpack.c.l.b16 %v3542
        %v3684 = vunpack.c.l.b16 %v3543
        %v3685 = vunpack.c.l.b16 %v3544
        %v3686 = vunpack.c.l.b16 %v3576
        %v3687 = vpack.c.b16 %v3671, %v3671
        %v3688 = vpack.c.b16 %v3672, %v3672
        %v3689 = vpack.c.b16 %v3673, %v3673
        %v3690 = vpack.c.b16 %v3674, %v3674
        %v3691 = vpack.c.b16 %v3675, %v3675
        %v3692 = vpack.c.b16 %v3676, %v3676
        %v3693 = vpack.c.b16 %v3677, %v3677
        %v3694 = vpack.c.b16 %v3678, %v3678
        %v3695 = vpack.c.b16 %v3679, %v3679
        %v3696 = vpack.c.b16 %v3680, %v3680
        %v3697 = vpack.c.b16 %v3681, %v3681
        %v3698 = vpack.c.b16 %v3682, %v3682
        %v3699 = vpack.c.b16 %v3683, %v3683
        %v3700 = vpack.c.b16 %v3684, %v3684
        %v3701 = vpack.c.b16 %v3685, %v3685
        %v3702 = vpack.c.b16 %v3686, %v3686
        %3703 = vrot.lane.b32.xlu0 %v3687, 24
        %v3704 = vpop.permute.xlu0 %3703
        %3705 = vrot.lane.b32.xlu0 %v3688, 24
        %v3706 = vpop.permute.xlu0 %3705
        %3707 = vrot.lane.b32.xlu0 %v3689, 24
        %v3708 = vpop.permute.xlu0 %3707
        %3709 = vrot.lane.b32.xlu0 %v3690, 24
        %v3710 = vpop.permute.xlu0 %3709
        %3711 = vrot.lane.b32.xlu0 %v3691, 24
        %v3712 = vpop.permute.xlu0 %3711
        %3713 = vrot.lane.b32.xlu0 %v3692, 24
        %v3714 = vpop.permute.xlu0 %3713
        %3715 = vrot.lane.b32.xlu0 %v3693, 24
        %v3716 = vpop.permute.xlu0 %3715
        %3717 = vrot.lane.b32.xlu0 %v3694, 24
        %v3718 = vpop.permute.xlu0 %3717
        %3719 = vrot.lane.b32.xlu0 %v3695, 24
        %v3720 = vpop.permute.xlu0 %3719
        %3721 = vrot.lane.b32.xlu0 %v3696, 24
        %v3722 = vpop.permute.xlu0 %3721
        %3723 = vrot.lane.b32.xlu0 %v3697, 24
        %v3724 = vpop.permute.xlu0 %3723
        %3725 = vrot.lane.b32.xlu0 %v3698, 24
        %v3726 = vpop.permute.xlu0 %3725
        %3727 = vrot.lane.b32.xlu0 %v3699, 24
        %v3728 = vpop.permute.xlu0 %3727
        %3729 = vrot.lane.b32.xlu0 %v3700, 24
        %v3730 = vpop.permute.xlu0 %3729
        %3731 = vrot.lane.b32.xlu0 %v3701, 24
        %v3732 = vpop.permute.xlu0 %3731
        %3733 = vrot.lane.b32.xlu0 %v3702, 24
        %v3734 = vpop.permute.xlu0 %3733
        %v3737 = vunpack.c.l.b16 %v3579
        %v3738 = vunpack.c.l.b16 %v3580
        %v3739 = vpack.c.b16 %v3737, %v3737
        %v3740 = vpack.c.b16 %v3738, %v3738
        %3741 = vrot.lane.b32.xlu0 %v3611, 40
        %v3742 = vpop.permute.xlu0 %3741
        %3743 = vrot.lane.b32.xlu0 %v3612, 40
        %v3744 = vpop.permute.xlu0 %3743
        %3745 = vrot.lane.b32.xlu0 %v3613, 40
        %v3746 = vpop.permute.xlu0 %3745
        %3747 = vrot.lane.b32.xlu0 %v3614, 40
        %v3748 = vpop.permute.xlu0 %3747
        %3749 = vrot.lane.b32.xlu0 %v3615, 40
        %v3750 = vpop.permute.xlu0 %3749
        %3751 = vrot.lane.b32.xlu0 %v3616, 40
        %v3752 = vpop.permute.xlu0 %3751
        %3753 = vrot.lane.b32.xlu0 %v3617, 40
        %v3754 = vpop.permute.xlu0 %3753
        %3755 = vrot.lane.b32.xlu0 %v3739, 40
        %v3756 = vpop.permute.xlu0 %3755
        %3757 = vrot.lane.b32.xlu0 %v3618, 40
        %v3758 = vpop.permute.xlu0 %3757
        %3759 = vrot.lane.b32.xlu0 %v3619, 40
        %v3760 = vpop.permute.xlu0 %3759
        %3761 = vrot.lane.b32.xlu0 %v3620, 40
        %v3762 = vpop.permute.xlu0 %3761
        %3763 = vrot.lane.b32.xlu0 %v3621, 40
        %v3764 = vpop.permute.xlu0 %3763
        %3765 = vrot.lane.b32.xlu0 %v3622, 40
        %v3766 = vpop.permute.xlu0 %3765
        %3767 = vrot.lane.b32.xlu0 %v3623, 40
        %v3768 = vpop.permute.xlu0 %3767
        %3769 = vrot.lane.b32.xlu0 %v3624, 40
        %v3770 = vpop.permute.xlu0 %3769
        %3771 = vrot.lane.b32.xlu0 %v3740, 40
        %v3772 = vpop.permute.xlu0 %3771
        %3773 = vrot.lane.b32.xlu0 %v3688, 48
        %v3774 = vpop.permute.xlu0 %3773
        %3775 = vrot.lane.b32.xlu0 %v3689, 48
        %v3776 = vpop.permute.xlu0 %3775
        %3777 = vrot.lane.b32.xlu0 %v3690, 48
        %v3778 = vpop.permute.xlu0 %3777
        %3779 = vrot.lane.b32.xlu0 %v3691, 48
        %v3780 = vpop.permute.xlu0 %3779
        %3781 = vrot.lane.b32.xlu0 %v3692, 48
        %v3782 = vpop.permute.xlu0 %3781
        %3783 = vrot.lane.b32.xlu0 %v3693, 48
        %v3784 = vpop.permute.xlu0 %3783
        %3785 = vrot.lane.b32.xlu0 %v3694, 48
        %v3786 = vpop.permute.xlu0 %3785
        %3787 = vrot.lane.b32.xlu0 %v2240, 48
        %v3788 = vpop.permute.xlu0 %3787
        %3789 = vrot.lane.b32.xlu0 %v3696, 48
        %v3790 = vpop.permute.xlu0 %3789
        %3791 = vrot.lane.b32.xlu0 %v3697, 48
        %v3792 = vpop.permute.xlu0 %3791
        %3793 = vrot.lane.b32.xlu0 %v3698, 48
        %v3794 = vpop.permute.xlu0 %3793
        %3795 = vrot.lane.b32.xlu0 %v3699, 48
        %v3796 = vpop.permute.xlu0 %3795
        %3797 = vrot.lane.b32.xlu0 %v3700, 48
        %v3798 = vpop.permute.xlu0 %3797
        %3799 = vrot.lane.b32.xlu0 %v3701, 48
        %v3800 = vpop.permute.xlu0 %3799
        %3801 = vrot.lane.b32.xlu0 %v3702, 48
        %v3802 = vpop.permute.xlu0 %3801
        %3803 = vrot.lane.b32.xlu0 %v2000, 56
        %v3804 = vpop.permute.xlu0 %3803
        %3805 = vrot.lane.b32.xlu0 %v3612, 64
        %v3806 = vpop.permute.xlu0 %3805
        %3807 = vrot.lane.b32.xlu0 %v3613, 64
        %v3808 = vpop.permute.xlu0 %3807
        %3809 = vrot.lane.b32.xlu0 %v3614, 64
        %v3810 = vpop.permute.xlu0 %3809
        %3811 = vrot.lane.b32.xlu0 %v3615, 64
        %v3812 = vpop.permute.xlu0 %3811
        %3813 = vrot.lane.b32.xlu0 %v3616, 64
        %v3814 = vpop.permute.xlu0 %3813
        %3815 = vrot.lane.b32.xlu0 %v3617, 64
        %v3816 = vpop.permute.xlu0 %3815
        %3817 = vrot.lane.b32.xlu0 %v3739, 64
        %v3818 = vpop.permute.xlu0 %3817
        %3819 = vrot.lane.b32.xlu0 %v3619, 64
        %v3820 = vpop.permute.xlu0 %3819
        %3821 = vrot.lane.b32.xlu0 %v3620, 64
        %v3822 = vpop.permute.xlu0 %3821
        %3823 = vrot.lane.b32.xlu0 %v3621, 64
        %v3824 = vpop.permute.xlu0 %3823
        %3825 = vrot.lane.b32.xlu0 %v3622, 64
        %v3826 = vpop.permute.xlu0 %3825
        %3827 = vrot.lane.b32.xlu0 %v3623, 64
        %v3828 = vpop.permute.xlu0 %3827
        %3829 = vrot.lane.b32.xlu0 %v3624, 64
        %v3830 = vpop.permute.xlu0 %3829
        %3831 = vrot.lane.b32.xlu0 %v3740, 64
        %v3832 = vpop.permute.xlu0 %3831
        %v3834 = vsel %vm1291, %v1882, %v3582
        %v3836 = vsel %vm1291, %v3531, %v940
        %v3838 = vsel %vm1291, %v3532, %v942
        %v3840 = vsel %vm1291, %v3533, %v944
        %v3842 = vsel %vm1291, %v3534, %v946
        %v3844 = vsel %vm1291, %v3535, %v948
        %v3846 = vsel %vm1291, %v3536, %v950
        %v3848 = vsel %vm1291, %v3537, %v952
        %v3850 = vsel %vm1291, %v3538, %v954
        %v3852 = vsel %vm1291, %v3539, %v956
        %v3854 = vsel %vm1291, %v3540, %v958
        %v3856 = vsel %vm1291, %v3541, %v960
        %v3858 = vsel %vm1291, %v3542, %v962
        %v3860 = vsel %vm1291, %v3543, %v964
        %v3862 = vsel %vm1291, %v3544, %v966
        %v3864 = vsel %vm697, %v3834, %v3626
        %v3866 = vsel %vm697, %v3836, %v3628
        %v3868 = vsel %vm697, %v3838, %v3630
        %v3870 = vsel %vm697, %v3840, %v3632
        %v3872 = vsel %vm697, %v3842, %v3634
        %v3874 = vsel %vm697, %v3844, %v3636
        %v3876 = vsel %vm697, %v3846, %v3638
        %v3878 = vsel %vm697, %v3848, %v3640
        %v3880 = vsel %vm697, %v3850, %v3642
        %v3882 = vsel %vm697, %v3852, %v3644
        %v3884 = vsel %vm697, %v3854, %v3646
        %v3886 = vsel %vm697, %v3856, %v3648
        %v3888 = vsel %vm697, %v3858, %v3650
        %v3890 = vsel %vm697, %v3860, %v3652
        %v3892 = vsel %vm697, %v3862, %v3654
        %v3894 = vsel %vm1367, %v3864, %v3704
        %v3896 = vsel %vm1367, %v3866, %v3706
        %v3898 = vsel %vm1367, %v3868, %v3708
        %v3900 = vsel %vm1367, %v3870, %v3710
        %v3902 = vsel %vm1367, %v3872, %v3712
        %v3904 = vsel %vm1367, %v3874, %v3714
        %v3906 = vsel %vm1367, %v3876, %v3716
        %v3908 = vsel %vm1367, %v3878, %v3718
        %v3910 = vsel %vm1367, %v3864, %v3720
        %v3912 = vsel %vm1367, %v3880, %v3722
        %v3914 = vsel %vm1367, %v3882, %v3724
        %v3916 = vsel %vm1367, %v3884, %v3726
        %v3918 = vsel %vm1367, %v3886, %v3728
        %v3920 = vsel %vm1367, %v3888, %v3730
        %v3922 = vsel %vm1367, %v3890, %v3732
        %v3924 = vsel %vm1367, %v3892, %v3734
        %v3925 = vsel %vm1400, %v3894, %v1129
        %v3926 = vsel %vm1400, %v3896, %v1131
        %v3927 = vsel %vm1400, %v3898, %v1133
        %v3928 = vsel %vm1400, %v3900, %v1135
        %v3929 = vsel %vm1400, %v3902, %v1137
        %v3930 = vsel %vm1400, %v3904, %v1139
        %v3931 = vsel %vm1400, %v3906, %v1141
        %v3932 = vsel %vm1400, %v3908, %v1143
        %v3933 = vsel %vm1400, %v3910, %v1145
        %v3934 = vsel %vm1400, %v3912, %v1147
        %v3935 = vsel %vm1400, %v3914, %v1149
        %v3936 = vsel %vm1400, %v3916, %v1151
        %v3937 = vsel %vm1400, %v3918, %v1153
        %v3938 = vsel %vm1400, %v3920, %v1155
        %v3939 = vsel %vm1400, %v3922, %v1157
        %v3940 = vsel %vm1400, %v3924, %v1159
        %v3942 = vsel %vm1433, %v3925, %v3742
        %v3944 = vsel %vm1433, %v3926, %v3744
        %v3946 = vsel %vm1433, %v3927, %v3746
        %v3948 = vsel %vm1433, %v3928, %v3748
        %v3950 = vsel %vm1433, %v3929, %v3750
        %v3952 = vsel %vm1433, %v3930, %v3752
        %v3954 = vsel %vm1433, %v3931, %v3754
        %v3956 = vsel %vm1433, %v3932, %v3756
        %v3958 = vsel %vm1433, %v3933, %v3758
        %v3960 = vsel %vm1433, %v3934, %v3760
        %v3962 = vsel %vm1433, %v3935, %v3762
        %v3964 = vsel %vm1433, %v3936, %v3764
        %v3966 = vsel %vm1433, %v3937, %v3766
        %v3968 = vsel %vm1433, %v3938, %v3768
        %v3970 = vsel %vm1433, %v3939, %v3770
        %v3972 = vsel %vm1433, %v3940, %v3772
        %v3974 = vsel %vm1466, %v3942, %v3774
        %v3976 = vsel %vm1466, %v3944, %v3776
        %v3978 = vsel %vm1466, %v3946, %v3778
        %v3980 = vsel %vm1466, %v3948, %v3780
        %v3982 = vsel %vm1466, %v3950, %v3782
        %v3984 = vsel %vm1466, %v3952, %v3784
        %v3986 = vsel %vm1466, %v3954, %v3786
        %v3988 = vsel %vm1466, %v3956, %v3788
        %v3990 = vsel %vm1466, %v3958, %v3790
        %v3992 = vsel %vm1466, %v3960, %v3792
        %v3994 = vsel %vm1466, %v3962, %v3794
        %v3996 = vsel %vm1466, %v3964, %v3796
        %v3998 = vsel %vm1466, %v3966, %v3798
        %v4000 = vsel %vm1466, %v3968, %v3800
        %v4002 = vsel %vm1466, %v3970, %v3802
        %v4003 = vsel %vm1466, %v3972, %v3788
        %v4004 = vsel %vm1498, %v3974, %v1232
        %v4005 = vsel %vm1498, %v3976, %v1234
        %v4006 = vsel %vm1498, %v3978, %v1236
        %v4007 = vsel %vm1498, %v3980, %v1238
        %v4008 = vsel %vm1498, %v3982, %v1240
        %v4009 = vsel %vm1498, %v3984, %v1242
        %v4010 = vsel %vm1498, %v3986, %v1244
        %v4012 = vsel %vm1498, %v3988, %v3804
        %v4013 = vsel %vm1498, %v3990, %v1248
        %v4014 = vsel %vm1498, %v3992, %v1250
        %v4015 = vsel %vm1498, %v3994, %v1252
        %v4016 = vsel %vm1498, %v3996, %v1254
        %v4017 = vsel %vm1498, %v3998, %v1256
        %v4018 = vsel %vm1498, %v4000, %v1258
        %v4019 = vsel %vm1498, %v4002, %v1260
        %v4020 = vsel %vm1498, %v4003, %v3804
        %v4022 = vsel %vm1530, %v4004, %v3806
        %v4024 = vsel %vm1530, %v4005, %v3808
        %v4026 = vsel %vm1530, %v4006, %v3810
        %v4028 = vsel %vm1530, %v4007, %v3812
        %v4030 = vsel %vm1530, %v4008, %v3814
        %v4032 = vsel %vm1530, %v4009, %v3816
        %v4034 = vsel %vm1530, %v4010, %v3818
        %v4035 = vsel %vm1530, %v4012, %v2091
        %v4037 = vsel %vm1530, %v4013, %v3820
        %v4039 = vsel %vm1530, %v4014, %v3822
        %v4041 = vsel %vm1530, %v4015, %v3824
        %v4043 = vsel %vm1530, %v4016, %v3826
        %v4045 = vsel %vm1530, %v4017, %v3828
        %v4047 = vsel %vm1530, %v4018, %v3830
        %v4049 = vsel %vm1530, %v4019, %v3832
        %v4050 = vsel %vm1530, %v4020, %v2091
        %v4051 = vld [vmem:[%s9] sm:$0xf]
        %v4052 = vld [vmem:[%s9 + $0x4] sm:$0xf]
        %v4053 = vld [vmem:[%s9 + $0x8] sm:$0xf]
        %v4054 = vld [vmem:[%s9 + $0xc] sm:$0xf]
        %v4055 = vld [vmem:[%s9 + $0x10] sm:$0xf]
        %v4056 = vld [vmem:[%s9 + $0x14] sm:$0xf]
        %v4057 = vld [vmem:[%s9 + $0x18] sm:$0xf]
        %v4058 = vld [vmem:[%s9 + $0x1c] sm:$0xf]
        %v4059 = vld [vmem:[%s9 + $0x20] sm:$0xf]
        %v4060 = vld [vmem:[%s10] sm:$0x1]
        %v4062 = vperm.slane %v4060, 0
        %v4080 = vunpack.c.l.b16 %v4022
        %v4081 = vunpack.c.l.b16 %v4024
        %v4082 = vunpack.c.l.b16 %v4026
        %v4083 = vunpack.c.l.b16 %v4028
        %v4084 = vunpack.c.l.b16 %v4030
        %v4085 = vunpack.c.l.b16 %v4032
        %v4086 = vunpack.c.l.b16 %v4034
        %v4087 = vunpack.c.l.b16 %v4035
        %v4088 = vunpack.c.l.b16 %v4037
        %v4089 = vunpack.c.l.b16 %v4039
        %v4090 = vunpack.c.l.b16 %v4041
        %v4091 = vunpack.c.l.b16 %v4043
        %v4092 = vunpack.c.l.b16 %v4045
        %v4093 = vunpack.c.l.b16 %v4047
        %v4094 = vunpack.c.l.b16 %v4049
        %v4095 = vunpack.c.l.b16 %v4050
        %v4096 = vpack.c.b16 %v4081, %v4080
        %v4097 = vpack.c.b16 %v4083, %v4082
        %v4098 = vpack.c.b16 %v4085, %v4084
        %v4099 = vpack.c.b16 %v4087, %v4086
        %v4100 = vpack.c.b16 %v4089, %v4088
        %v4101 = vpack.c.b16 %v4091, %v4090
        %v4102 = vpack.c.b16 %v4093, %v4092
        %v4103 = vpack.c.b16 %v4095, %v4094
        %v4113 = vunpack.c.l.b16 %v4051
        %v4114 = vunpack.c.l.b16 %v4052
        %v4115 = vunpack.c.l.b16 %v4053
        %v4116 = vunpack.c.l.b16 %v4054
        %v4117 = vunpack.c.l.b16 %v4055
        %v4118 = vunpack.c.l.b16 %v4056
        %v4119 = vunpack.c.l.b16 %v4057
        %v4120 = vunpack.c.l.b16 %v4058
        %v4121 = vunpack.c.l.b16 %v4059
        %v4122 = vpack.c.b16 %v4114, %v4113
        %v4123 = vpack.c.b16 %v4116, %v4115
        %v4124 = vpack.c.b16 %v4118, %v4117
        %v4125 = vpack.c.b16 %v4120, %v4119
        %v4126 = vpack.c.b16 %v4121, %v4121
        %v4132 = vsel %vm1642, %v4096, 0
        %v4135 = vsel %vm1642, %v4097, 0
        %v4138 = vsel %vm1642, %v4098, 0
        %v4141 = vsel %vm1642, %v4099, 0
        %v4144 = vsel %vm1642, %v4100, 0
        %v4147 = vsel %vm1642, %v4101, 0
        %v4150 = vsel %vm1642, %v4102, 0
        %v4153 = vsel %vm1642, %v4103, 0
        %v4156 = vsel %vm1667, %v4126, 0
        %4158 = vmatpush.bf16.msra.mxu0 0
        %4159 = vmatpush.bf16.msra.mxu0 0
        %4160 = vmatpush.bf16.msra.mxu0 0
        %4161 = vmatpush.bf16.msra.mxu0 %v4156
        %4162 = vmatpush.bf16.msra.mxu0 %v4125
        %4163 = vmatpush.bf16.msra.mxu0 %v4124
        %4164 = vmatpush.bf16.msra.mxu0 %v4123
        %4165 = vmatpush.bf16.msra.mxu0 %v4122
        %4166 = vmatmul.bf16.gmra.mxu0 %v4132
        %v4167 = vpop.f32.mrf.mxu0
        %v4168 = vadd.f32 %v4062, %v4167
        %v4169 = vpop.f32.mrf.mxu0
        %v4170 = vadd.f32 %v4062, %v4169
        %4171 = vmatmul.bf16.gmra.mxu0 %v4135
        %v4172 = vpop.f32.mrf.mxu0
        %v4173 = vadd.f32 %v4062, %v4172
        %v4174 = vpop.f32.mrf.mxu0
        %v4175 = vadd.f32 %v4062, %v4174
        %4176 = vmatmul.bf16.gmra.mxu0 %v4138
        %v4177 = vpop.f32.mrf.mxu0
        %v4178 = vadd.f32 %v4062, %v4177
        %v4179 = vpop.f32.mrf.mxu0
        %v4180 = vadd.f32 %v4062, %v4179
        %4181 = vmatmul.bf16.gmra.mxu0 %v4141
        %v4182 = vpop.f32.mrf.mxu0
        %v4183 = vadd.f32 %v4062, %v4182
        %v4184 = vpop.f32.mrf.mxu0
        %v4185 = vadd.f32 %v4062, %v4184
        %4186 = vmatmul.bf16.gmra.mxu0 %v4144
        %v4187 = vpop.f32.mrf.mxu0
        %v4188 = vadd.f32 %v4062, %v4187
        %v4189 = vpop.f32.mrf.mxu0
        %v4190 = vadd.f32 %v4062, %v4189
        %4191 = vmatmul.bf16.gmra.mxu0 %v4147
        %v4192 = vpop.f32.mrf.mxu0
        %v4193 = vadd.f32 %v4062, %v4192
        %v4194 = vpop.f32.mrf.mxu0
        %v4195 = vadd.f32 %v4062, %v4194
        %4196 = vmatmul.bf16.gmra.mxu0 %v4150
        %v4197 = vpop.f32.mrf.mxu0
        %v4198 = vadd.f32 %v4062, %v4197
        %v4199 = vpop.f32.mrf.mxu0
        %v4200 = vadd.f32 %v4062, %v4199
        %4201 = vmatmul.bf16.gmra.mxu0 %v4153
        %v4202 = vpop.f32.mrf.mxu0
        %v4203 = vadd.f32 %v4062, %v4202
        %v4204 = vpop.f32.mrf.mxu0
        %v4205 = vadd.f32 %v4062, %v4204
        %4206 = vdwg.mxu0
        %4223 = vrot.lane.b32.xlu0 %v4168, 8
        %v4224 = vpop.permute.xlu0 %4223
        %4225 = vrot.lane.b32.xlu0 %v4170, 8
        %v4226 = vpop.permute.xlu0 %4225
        %4227 = vrot.lane.b32.xlu0 %v4173, 8
        %v4228 = vpop.permute.xlu0 %4227
        %4229 = vrot.lane.b32.xlu0 %v4175, 8
        %v4230 = vpop.permute.xlu0 %4229
        %4231 = vrot.lane.b32.xlu0 %v4178, 8
        %v4232 = vpop.permute.xlu0 %4231
        %4233 = vrot.lane.b32.xlu0 %v4180, 8
        %v4234 = vpop.permute.xlu0 %4233
        %4235 = vrot.lane.b32.xlu0 %v4183, 8
        %v4236 = vpop.permute.xlu0 %4235
        %4237 = vrot.lane.b32.xlu0 %v4185, 8
        %v4238 = vpop.permute.xlu0 %4237
        %4239 = vrot.lane.b32.xlu0 %v4188, 8
        %v4240 = vpop.permute.xlu0 %4239
        %4241 = vrot.lane.b32.xlu0 %v4190, 8
        %v4242 = vpop.permute.xlu0 %4241
        %4243 = vrot.lane.b32.xlu0 %v4193, 8
        %v4244 = vpop.permute.xlu0 %4243
        %4245 = vrot.lane.b32.xlu0 %v4195, 8
        %v4246 = vpop.permute.xlu0 %4245
        %4247 = vrot.lane.b32.xlu0 %v4198, 8
        %v4248 = vpop.permute.xlu0 %4247
        %4249 = vrot.lane.b32.xlu0 %v4200, 8
        %v4250 = vpop.permute.xlu0 %4249
        %4251 = vrot.lane.b32.xlu0 %v4203, 8
        %v4252 = vpop.permute.xlu0 %4251
        %4253 = vrot.lane.b32.xlu0 %v4205, 8
        %v4254 = vpop.permute.xlu0 %4253
        %v4271 = vsub.f32 %v3348, %v4224
        %v4272 = vsub.f32 %v3349, %v4226
        %v4273 = vsub.f32 %v3350, %v4228
        %v4274 = vsub.f32 %v3351, %v4230
        %v4275 = vsub.f32 %v3352, %v4232
        %v4276 = vsub.f32 %v3353, %v4234
        %v4277 = vsub.f32 %v3354, %v4236
        %v4278 = vsub.f32 %v3355, %v4238
        %v4279 = vsub.f32 %v3356, %v4240
        %v4280 = vsub.f32 %v3357, %v4242
        %v4281 = vsub.f32 %v3358, %v4244
        %v4282 = vsub.f32 %v3359, %v4246
        %v4283 = vsub.f32 %v3360, %v4248
        %v4284 = vsub.f32 %v3361, %v4250
        %v4285 = vsub.f32 %v3362, %v4252
        %v4286 = vsub.f32 %v3363, %v4254
        %v4287 = vsub.f32 0.0, %v4168
        %v4288 = vsub.f32 0.0, %v4170
        %v4289 = vsub.f32 0.0, %v4173
        %v4290 = vsub.f32 0.0, %v4175
        %v4291 = vsub.f32 0.0, %v4178
        %v4292 = vsub.f32 0.0, %v4180
        %v4293 = vsub.f32 0.0, %v4183
        %v4294 = vsub.f32 0.0, %v4185
        %v4295 = vsub.f32 0.0, %v4188
        %v4296 = vsub.f32 0.0, %v4190
        %v4297 = vsub.f32 0.0, %v4193
        %v4298 = vsub.f32 0.0, %v4195
        %v4299 = vsub.f32 0.0, %v4198
        %v4300 = vsub.f32 0.0, %v4200
        %v4301 = vsub.f32 0.0, %v4203
        %v4302 = vsub.f32 0.0, %v4205
        %v4303 = vmul.f32 %v4287, 1.442695
        %v4304 = vpow.pop %v4303
        %v4305 = vmul.f32 %v4288, 1.442695
        %v4306 = vpow.pop %v4305
        %v4307 = vmul.f32 %v4289, 1.442695
        %v4308 = vpow.pop %v4307
        %v4309 = vmul.f32 %v4290, 1.442695
        %v4310 = vpow.pop %v4309
        %v4311 = vmul.f32 %v4291, 1.442695
        %v4312 = vpow.pop %v4311
        %v4313 = vmul.f32 %v4292, 1.442695
        %v4314 = vpow.pop %v4313
        %v4315 = vmul.f32 %v4293, 1.442695
        %v4316 = vpow.pop %v4315
        %v4317 = vmul.f32 %v4294, 1.442695
        %v4318 = vpow.pop %v4317
        %v4319 = vmul.f32 %v4295, 1.442695
        %v4320 = vpow.pop %v4319
        %v4321 = vmul.f32 %v4296, 1.442695
        %v4322 = vpow.pop %v4321
        %v4323 = vmul.f32 %v4297, 1.442695
        %v4324 = vpow.pop %v4323
        %v4325 = vmul.f32 %v4298, 1.442695
        %v4326 = vpow.pop %v4325
        %v4327 = vmul.f32 %v4299, 1.442695
        %v4328 = vpow.pop %v4327
        %v4329 = vmul.f32 %v4300, 1.442695
        %v4330 = vpow.pop %v4329
        %v4331 = vmul.f32 %v4301, 1.442695
        %v4332 = vpow.pop %v4331
        %v4333 = vmul.f32 %v4302, 1.442695
        %v4334 = vpow.pop %v4333
        %v4335 = vmul.f32 %v4271, %v4304
        %v4336 = vmul.f32 %v4272, %v4306
        %v4337 = vmul.f32 %v4273, %v4308
        %v4338 = vmul.f32 %v4274, %v4310
        %v4339 = vmul.f32 %v4275, %v4312
        %v4340 = vmul.f32 %v4276, %v4314
        %v4341 = vmul.f32 %v4277, %v4316
        %v4342 = vmul.f32 %v4278, %v4318
        %v4343 = vmul.f32 %v4279, %v4320
        %v4344 = vmul.f32 %v4280, %v4322
        %v4345 = vmul.f32 %v4281, %v4324
        %v4346 = vmul.f32 %v4282, %v4326
        %v4347 = vmul.f32 %v4283, %v4328
        %v4348 = vmul.f32 %v4284, %v4330
        %v4349 = vmul.f32 %v4285, %v4332
        %v4350 = vmul.f32 %v4286, %v4334
        %v4351 = vmul.f32 %v4335, -0.5
        %v4352 = vmul.f32 %v4336, -0.5
        %v4353 = vmul.f32 %v4337, -0.5
        %v4354 = vmul.f32 %v4338, -0.5
        %v4355 = vmul.f32 %v4339, -0.5
        %v4356 = vmul.f32 %v4340, -0.5
        %v4357 = vmul.f32 %v4341, -0.5
        %v4358 = vmul.f32 %v4342, -0.5
        %v4359 = vmul.f32 %v4343, -0.5
        %v4360 = vmul.f32 %v4344, -0.5
        %v4361 = vmul.f32 %v4345, -0.5
        %v4362 = vmul.f32 %v4346, -0.5
        %v4363 = vmul.f32 %v4347, -0.5
        %v4364 = vmul.f32 %v4348, -0.5
        %v4365 = vmul.f32 %v4349, -0.5
        %v4366 = vmul.f32 %v4350, -0.5
        %v4367 = vmul.f32 %v4351, %v4335
        %v4368 = vmul.f32 %v4352, %v4336
        %v4369 = vmul.f32 %v4353, %v4337
        %v4370 = vmul.f32 %v4354, %v4338
        %v4371 = vmul.f32 %v4355, %v4339
        %v4372 = vmul.f32 %v4356, %v4340
        %v4373 = vmul.f32 %v4357, %v4341
        %v4374 = vmul.f32 %v4358, %v4342
        %v4375 = vmul.f32 %v4359, %v4343
        %v4376 = vmul.f32 %v4360, %v4344
        %v4377 = vmul.f32 %v4361, %v4345
        %v4378 = vmul.f32 %v4362, %v4346
        %v4379 = vmul.f32 %v4363, %v4347
        %v4380 = vmul.f32 %v4364, %v4348
        %v4381 = vmul.f32 %v4365, %v4349
        %v4382 = vmul.f32 %v4366, %v4350
        %v4383 = vsub.f32 %v4367, %v4168
        %v4384 = vsub.f32 %v4368, %v4170
        %v4385 = vsub.f32 %v4369, %v4173
        %v4386 = vsub.f32 %v4370, %v4175
        %v4387 = vsub.f32 %v4371, %v4178
        %v4388 = vsub.f32 %v4372, %v4180
        %v4389 = vsub.f32 %v4373, %v4183
        %v4390 = vsub.f32 %v4374, %v4185
        %v4391 = vsub.f32 %v4375, %v4188
        %v4392 = vsub.f32 %v4376, %v4190
        %v4393 = vsub.f32 %v4377, %v4193
        %v4394 = vsub.f32 %v4378, %v4195
        %v4395 = vsub.f32 %v4379, %v4198
        %v4396 = vsub.f32 %v4380, %v4200
        %v4397 = vsub.f32 %v4381, %v4203
        %v4398 = vsub.f32 %v4382, %v4205
        %v4399 = vsub.f32 %v4383, 0.9189385
        %v4400 = vsub.f32 %v4384, 0.9189385
        %v4401 = vsub.f32 %v4385, 0.9189385
        %v4402 = vsub.f32 %v4386, 0.9189385
        %v4403 = vsub.f32 %v4387, 0.9189385
        %v4404 = vsub.f32 %v4388, 0.9189385
        %v4405 = vsub.f32 %v4389, 0.9189385
        %v4406 = vsub.f32 %v4390, 0.9189385
        %v4407 = vsub.f32 %v4391, 0.9189385
        %v4408 = vsub.f32 %v4392, 0.9189385
        %v4409 = vsub.f32 %v4393, 0.9189385
        %v4410 = vsub.f32 %v4394, 0.9189385
        %v4411 = vsub.f32 %v4395, 0.9189385
        %v4412 = vsub.f32 %v4396, 0.9189385
        %v4413 = vsub.f32 %v4397, 0.9189385
        %v4414 = vsub.f32 %v4398, 0.9189385
        %4431 = vrot.lane.b32.xlu0 %v4399, 120
        %v4432 = vpop.permute.xlu0 %4431
        %4433 = vrot.lane.b32.xlu0 %v4400, 120
        %v4434 = vpop.permute.xlu0 %4433
        %4435 = vrot.lane.b32.xlu0 %v4401, 120
        %v4436 = vpop.permute.xlu0 %4435
        %4437 = vrot.lane.b32.xlu0 %v4402, 120
        %v4438 = vpop.permute.xlu0 %4437
        %4439 = vrot.lane.b32.xlu0 %v4403, 120
        %v4440 = vpop.permute.xlu0 %4439
        %4441 = vrot.lane.b32.xlu0 %v4404, 120
        %v4442 = vpop.permute.xlu0 %4441
        %4443 = vrot.lane.b32.xlu0 %v4405, 120
        %v4444 = vpop.permute.xlu0 %4443
        %4445 = vrot.lane.b32.xlu0 %v4406, 120
        %v4446 = vpop.permute.xlu0 %4445
        %4447 = vrot.lane.b32.xlu0 %v4407, 120
        %v4448 = vpop.permute.xlu0 %4447
        %4449 = vrot.lane.b32.xlu0 %v4408, 120
        %v4450 = vpop.permute.xlu0 %4449
        %4451 = vrot.lane.b32.xlu0 %v4409, 120
        %v4452 = vpop.permute.xlu0 %4451
        %4453 = vrot.lane.b32.xlu0 %v4410, 120
        %v4454 = vpop.permute.xlu0 %4453
        %4455 = vrot.lane.b32.xlu0 %v4411, 120
        %v4456 = vpop.permute.xlu0 %4455
        %4457 = vrot.lane.b32.xlu0 %v4412, 120
        %v4458 = vpop.permute.xlu0 %4457
        %4459 = vrot.lane.b32.xlu0 %v4413, 120
        %v4460 = vpop.permute.xlu0 %4459
        %4461 = vrot.lane.b32.xlu0 %v4414, 120
        %v4462 = vpop.permute.xlu0 %4461
        %v4479 = vsel %vm1291, %v4432, 0.0
        %4480 = vadd.xlane.f32.xlu0 %v4479
        %v4481 = vpop.xlane.xlu0 %4480
        %v4482 = vsel %vm1291, %v4434, 0.0
        %4483 = vadd.xlane.f32.xlu0 %v4482
        %v4484 = vpop.xlane.xlu0 %4483
        %v4485 = vsel %vm1291, %v4436, 0.0
        %4486 = vadd.xlane.f32.xlu0 %v4485
        %v4487 = vpop.xlane.xlu0 %4486
        %v4488 = vsel %vm1291, %v4438, 0.0
        %4489 = vadd.xlane.f32.xlu0 %v4488
        %v4490 = vpop.xlane.xlu0 %4489
        %v4491 = vsel %vm1291, %v4440, 0.0
        %4492 = vadd.xlane.f32.xlu0 %v4491
        %v4493 = vpop.xlane.xlu0 %4492
        %v4494 = vsel %vm1291, %v4442, 0.0
        %4495 = vadd.xlane.f32.xlu0 %v4494
        %v4496 = vpop.xlane.xlu0 %4495
        %v4497 = vsel %vm1291, %v4444, 0.0
        %4498 = vadd.xlane.f32.xlu0 %v4497
        %v4499 = vpop.xlane.xlu0 %4498
        %v4500 = vsel %vm1291, %v4446, 0.0
        %4501 = vadd.xlane.f32.xlu0 %v4500
        %v4502 = vpop.xlane.xlu0 %4501
        %v4503 = vsel %vm1291, %v4448, 0.0
        %4504 = vadd.xlane.f32.xlu0 %v4503
        %v4505 = vpop.xlane.xlu0 %4504
        %v4506 = vsel %vm1291, %v4450, 0.0
        %4507 = vadd.xlane.f32.xlu0 %v4506
        %v4508 = vpop.xlane.xlu0 %4507
        %v4509 = vsel %vm1291, %v4452, 0.0
        %4510 = vadd.xlane.f32.xlu0 %v4509
        %v4511 = vpop.xlane.xlu0 %4510
        %v4512 = vsel %vm1291, %v4454, 0.0
        %4513 = vadd.xlane.f32.xlu0 %v4512
        %v4514 = vpop.xlane.xlu0 %4513
        %v4515 = vsel %vm1291, %v4456, 0.0
        %4516 = vadd.xlane.f32.xlu0 %v4515
        %v4517 = vpop.xlane.xlu0 %4516
        %v4518 = vsel %vm1291, %v4458, 0.0
        %4519 = vadd.xlane.f32.xlu0 %v4518
        %v4520 = vpop.xlane.xlu0 %4519
        %v4521 = vsel %vm1291, %v4460, 0.0
        %4522 = vadd.xlane.f32.xlu0 %v4521
        %v4523 = vpop.xlane.xlu0 %4522
        %v4524 = vsel %vm1291, %v4462, 0.0
        %4525 = vadd.xlane.f32.xlu0 %v4524
        %v4526 = vpop.xlane.xlu0 %4525
        %v4527 = vadd.f32 %v4481, %v4484
        %v4528 = vadd.f32 %v4527, %v4487
        %v4529 = vadd.f32 %v4528, %v4490
        %v4530 = vadd.f32 %v4529, %v4493
        %v4531 = vadd.f32 %v4530, %v4496
        %v4532 = vadd.f32 %v4531, %v4499
        %v4533 = vadd.f32 %v4532, %v4502
        %v4534 = vrot.slane %v4533, 4
        %v4535 = vadd.f32 %v4533, %v4534
        %v4536 = vrot.slane %v4535, 2
        %v4537 = vadd.f32 %v4535, %v4536
        %v4538 = vrot.slane %v4537, 1
        %v4539 = vadd.f32 %v4537, %v4538
        %v4540 = vadd.f32 %v4505, %v4508
        %v4541 = vadd.f32 %v4540, %v4511
        %v4542 = vadd.f32 %v4541, %v4514
        %v4543 = vadd.f32 %v4542, %v4517
        %v4544 = vadd.f32 %v4543, %v4520
        %v4545 = vadd.f32 %v4544, %v4523
        %v4546 = vadd.f32 %v4545, %v4526
        %v4547 = vrot.slane %v4546, 4
        %v4548 = vadd.f32 %v4546, %v4547
        %v4549 = vrot.slane %v4548, 2
        %v4550 = vadd.f32 %v4548, %v4549
        %v4551 = vrot.slane %v4550, 1
        %v4552 = vadd.f32 %v4550, %v4551
        %4553 = vst.msk [vmem:[%s618] sm:$0x1] %vm3506, %v4539
        %4554 = vst.msk [vmem:[%s618 + $0x1] sm:$0x1] %vm3506, %v4552
      $region72: #{glow_block_forward.1} parent=63 // pred_fallthru
        _
      %s4555 = smul.u32 2, %s29
      %p4556 = scmp.lt.s32.totalorder %s4555, 1
      %s4557 = scalar_select %p4556, %s4555, 1
      %s4558 = smul.addr %s4557, 8
      %s4559 = smul.addr %s4558, 8
      %s4560 = scalar_lea.vmem %s11, %s4559
      %s4561 = smul.u32 2, %s29
      %p4562 = scmp.lt.s32.totalorder %s4561, 1
      %s4563 = scalar_select %p4562, %s4561, 1
      %s4564 = scalar_lea.vmem %s12, %s4563
      %s4565 = smul.u32 2, %s29
      %p4566 = scmp.lt.s32.totalorder %s4565, 1
      %s4567 = scalar_select %p4566, %s4565, 1
      %s4568 = scalar_lea.vmem %s13, %s4567
      // Predicated region
      $region73: #{glow_block_forward.1} parent=63 // pred_check
        %p4569 = pneg %p331
      $region74: #{glow_block_forward.1} parent=63 // pred_check_branch
        %4571 = sbr.rel (%p4569) target = $region76
      $region75: #{glow_block_forward.1} parent=63 // pred_region
        %s4572 = smul.u32 2, %s29
      $region76: #{glow_block_forward.1} parent=63 // pred_fallthru
        _
      // Predicated region
      $region77: #{glow_block_forward.1} parent=63 // pred_check
        %p4573 = pneg %p357
      $region78: #{glow_block_forward.1} parent=63 // pred_check_branch
        %4575 = sbr.rel (%p4573) target = $region80
      $region79: #{glow_block_forward.1} parent=63 // pred_region
        %s4576 = smul.u32 2, %s29
      $region80: #{glow_block_forward.1} parent=63 // pred_fallthru
        _
      // Predicated region
      $region81: #{glow_block_forward.1} parent=63 // pred_check
        %p4577 = pneg %p383
      $region82: #{glow_block_forward.1} parent=63 // pred_check_branch
        %4579 = sbr.rel (%p4577) target = $region84
      $region83: #{glow_block_forward.1} parent=63 // pred_region
        %s4580 = smul.u32 2, %s29
      $region84: #{glow_block_forward.1} parent=63 // pred_fallthru
        _
      // Predicated region
      $region85: #{glow_block_forward.1} parent=63 // pred_check
        %p4581 = pneg %p331
      $region86: #{glow_block_forward.1} parent=63 // pred_check_branch
        %4583 = sbr.rel (%p4581) target = $region88
      $region87: #{glow_block_forward.1} parent=63 // pred_region
        %s4584 = smul.u32 2, %s29
        %p4585 = scmp.lt.s32.totalorder %s4584, 1
        %s4586 = scalar_select %p4585, %s4584, 1
        %s4587 = smul.addr %s4586, 8
        %s4588 = smul.addr %s4587, 8
        %s4589 = scalar_lea.vmem %s11, %s4588
      $region88: #{glow_block_forward.1} parent=63 // pred_fallthru
        _
      // Predicated region
      $region89: #{glow_block_forward.1} parent=63 // pred_check
        %p4590 = pneg %p357
      $region90: #{glow_block_forward.1} parent=63 // pred_check_branch
        %4592 = sbr.rel (%p4590) target = $region92
      $region91: #{glow_block_forward.1} parent=63 // pred_region
        %s4593 = smul.u32 2, %s29
        %p4594 = scmp.lt.s32.totalorder %s4593, 1
        %s4595 = scalar_select %p4594, %s4593, 1
        %s4596 = scalar_lea.vmem %s12, %s4595
      $region92: #{glow_block_forward.1} parent=63 // pred_fallthru
        _
      // Predicated region
      $region93: #{glow_block_forward.1} parent=63 // pred_check
        %p4597 = pneg %p383
      $region94: #{glow_block_forward.1} parent=63 // pred_check_branch
        %4599 = sbr.rel (%p4597) target = $region96
      $region95: #{glow_block_forward.1} parent=63 // pred_region
        %s4600 = smul.u32 2, %s29
        %p4601 = scmp.lt.s32.totalorder %s4600, 1
        %s4602 = scalar_select %p4601, %s4600, 1
        %s4603 = scalar_lea.vmem %s13, %s4602
      $region96: #{glow_block_forward.1} parent=63 // pred_fallthru
        _
    $region64: #{glow_block_forward.1} parent=5 // pred_fallthru
      _
    %p4604 = scmp.le.s32.totalorder 2, %s20
    // Predicated region
    $region97: #{glow_block_forward.1} parent=5 // pred_check
      %p4605 = pneg %p4604
    $region98: #{glow_block_forward.1} parent=5 // pred_check_branch
      %4607 = sbr.rel (%p4605) target = $region100
    $region99: #{glow_block_forward.1} parent=5 // pred_region
      %s4608 = ssub.s32 %s20, 2
    $region100: #{glow_block_forward.1} parent=5 // pred_fallthru
      _
  $region6: #{glow_block_forward.1} parent=0 // loop_footer
    %s24 = sadd.s32 1, %s20
  $region7: #{glow_block_forward.1} parent=0 // loop_footer_branch
    %19 = sbr.rel target = $region3
  $region8: #{glow_block_forward.1} parent=0 // loop_exit
    _

</llo_original>
